<compile_context>
chip_gen: v6e
topology: v6e:2x2x1
jax: 0.10.0
libtpu: 0.0.40
codegen_flags: <defaults>
</compile_context>

<pallas_src>
import functools

import jax
import jax.numpy as jnp
import numpy as np
from jax import lax
from jax.experimental import pallas as pl
from jax.experimental.pallas import tpu as pltpu

EPS = 1e-5
MXU_DTYPE = jnp.bfloat16       # MXU operand dtype; accumulation is always f32.


# ------------------------------- fused kernel ------------------------------- #

def _encoder_kernel(*refs, num_res_blocks, eps, deltas2, deltas3, pad1, pad2):
    """Whole-encoder fused forward.  Positional refs:
       patches1, w1, g1, b1, sub2, mask2, w2, g2, b2, mask_r1, mask_r2,
       (wr1, gr1, br1, wr2, gr2, br2, gpost, bpost) * num_res_blocks,
       wf, gf, bf, out, pb1, pb2, pb3
    """
    pb1, pb2, pb3 = refs[-3:]
    out_ref = refs[-4]
    it = iter(refs[:-4])
    (patches1, w1, g1, b1,
     sub2, mask2, w2, g2, b2,
     mask_r1, mask_r2) = (next(it) for _ in range(11))
    res = [tuple(next(it) for _ in range(8)) for _ in range(num_res_blocks)]
    wf, gf, bff = (next(it) for _ in range(3))

    def bn(y, g_ref, beta_ref):
        # BatchNorm2d (training mode) over all (N,H,W) rows of the VMEM-resident
        # block; single-pass stats (sum / sum-of-squares) instead of two reductions.
        inv_m = 1.0 / y.shape[0]
        s1 = jnp.sum(y, axis=0, keepdims=True)
        s2 = jnp.sum(y * y, axis=0, keepdims=True)
        mean = s1 * inv_m
        var = s2 * inv_m - mean * mean
        return (y - mean) * lax.rsqrt(var + eps) * g_ref[...] + beta_ref[...]

    def gather(src, pb_ref, pad, deltas):
        # im2col via shifted row-window reads of a zero-padded VMEM scratch:
        #   out[:, t*C:(t+1)*C] = src[rows + deltas[t]]   (pad rows read as 0)
        # No MXU work and no O(M^2) gather matrices; boundary (wrap) rows are
        # killed later by the host-built 0/1 mask.
        n = src.shape[0]
        pb_ref[pad:pad + n, :] = src                       # aligned store (pad % 8 == 0)
        taps = [pb_ref[pl.ds(pad + d, n), :] for d in deltas]
        return jnp.concatenate(taps, axis=1)               # (n, taps * C) f32

    def mconv(patches_f32, mask_ref, w_ref):
        # One wide-K conv matmul: mask out-of-window rows, cast to bf16, single dot.
        p = (patches_f32 * mask_ref[...]).astype(MXU_DTYPE)
        return jnp.dot(p, w_ref[...], preferred_element_type=jnp.float32)

    # Zero the padded scratch buffers once (interiors are rewritten before each read;
    # pad rows stay zero for the whole kernel).
    pb1[...] = jnp.zeros(pb1.shape, pb1.dtype)
    pb2[...] = jnp.zeros(pb2.shape, pb2.dtype)
    pb3[...] = jnp.zeros(pb3.shape, pb3.dtype)

    # ---- self.blocks: (conv4x4/s2 + BN + ReLU) x 2 -------------------------
    y = jnp.dot(patches1[...], w1[...], preferred_element_type=jnp.float32)
    h = jnp.maximum(bn(y, g1, b1), 0.0)                            # (M1, C1) f32

    # conv2 (4x4/s2): shifted reads give "stride-1" patches at all M1 rows; a one-hot
    # (M2, M1) matrix picks the stride-2 output rows (0/1 exact in bf16), then the
    # masked wide-K matmul computes the conv.
    p_full = gather(h, pb1, pad1, deltas2)                         # (M1, 16*C1)
    p2 = jnp.dot(sub2[...], p_full.astype(MXU_DTYPE),
                 preferred_element_type=jnp.float32)               # (M2, 16*C1)
    h = jnp.maximum(bn(mconv(p2, mask2, w2), g2, b2), 0.0)         # (M2, CH)

    # ---- self.res_blocks: [ResBlock2D, BatchNorm2d] * R ---------------------
    for (wr1, gr1, br1, wr2, gr2, br2, gp, bp) in res:
        r = jnp.maximum(bn(mconv(gather(h, pb2, pad2, deltas3), mask_r1, wr1),
                           gr1, br1), 0.0)                         # (M2, C1)
        y = bn(mconv(gather(r, pb3, pad2, deltas3), mask_r2, wr2), gr2, br2)
        h = jnp.maximum(y + h, 0.0)          # residual add + final ReLU of ResBlock2D
        h = bn(h, gp, bp)                    # trailing BatchNorm2d (fused)

    # ---- self.final: conv1x1 + BN (no ReLU) ---------------------------------
    y = jnp.dot(h.astype(MXU_DTYPE), wf[...], preferred_element_type=jnp.float32)
    out_ref[...] = bn(y, gf, bff)


# ------------------------------ JAX-side glue ------------------------------- #

def _conv_out(n, k, stride, pad):
    return (n + 2 * pad - k) // stride + 1


def _im2col(x_nhwc, kh, kw, stride, pad):
    """Wrapper-side patch extraction, used only for the first conv (external input).
    Column order is (cin, ki, kj), matching OIHW weight flattening."""
    B, H, W, C = x_nhwc.shape
    xp = jnp.pad(x_nhwc, ((0, 0), (pad, pad), (pad, pad), (0, 0)))
    Ho, Wo = _conv_out(H, kh, stride, pad), _conv_out(W, kw, stride, pad)
    cols = [xp[:, ki:ki + Ho * stride:stride, kj:kj + Wo * stride:stride, :]
            for ki in range(kh) for kj in range(kw)]
    p = jnp.stack(cols, axis=3)                 # (B, Ho, Wo, kh*kw, C)
    p = jnp.transpose(p, (0, 1, 2, 4, 3))       # (B, Ho, Wo, C, kh*kw)
    return p.reshape(B * Ho * Wo, C * kh * kw)


def _flat_tap_weight(w_oihw):
    """OIHW conv weight -> (KH*KW*Cin, Cout) wide-K matmul weight (bf16),
    tap-major / cin-minor rows, matching the in-kernel tap concatenation order."""
    co, ci, kh, kw = w_oihw.shape
    return jnp.transpose(w_oihw, (2, 3, 1, 0)).reshape(kh * kw * ci, co).astype(MXU_DTYPE)


def _subsample_matrix(B, Hi, Wi, Ho, Wo):
    """(B*Ho*Wo, B*Hi*Wi) one-hot stride-2 row subsample (exact in bf16)."""
    S = np.zeros((B * Ho * Wo, B * Hi * Wi), np.float32)
    for b in range(B):
        for ho in range(Ho):
            for wo in range(Wo):
                S[(b * Ho + ho) * Wo + wo, (b * Hi + 2 * ho) * Wi + 2 * wo] = 1.0
    return jnp.asarray(S, MXU_DTYPE)


def _tap_mask(B, Ho, Wo, kh, kw, stride, pad, Hi, Wi, cin):
    """(B*Ho*Wo, kh*kw*cin) 0/1 mask: 1 where tap (ki,kj) of output (b,ho,wo) reads an
    in-bounds input pixel (zero rows encode conv zero-padding and row-wrap)."""
    m = np.zeros((B * Ho * Wo, kh * kw, cin), np.float32)
    for b in range(B):
        for ho in range(Ho):
            for wo in range(Wo):
                row = (b * Ho + ho) * Wo + wo
                for ki in range(kh):
                    for kj in range(kw):
                        hi, wi = ho * stride + ki - pad, wo * stride + kj - pad
                        if 0 <= hi < Hi and 0 <= wi < Wi:
                            m[row, ki * kw + kj, :] = 1.0
    return jnp.asarray(m.reshape(B * Ho * Wo, kh * kw * cin), jnp.float32)


def _row(v):
    return v.reshape(1, -1).astype(jnp.float32)


def _full_spec(shape):
    # default-arg binding avoids the late-binding closure bug
    return pl.BlockSpec(shape, lambda i, _n=len(shape): (0,) * _n)


def _pad_rows(deltas):
    m = max(max(deltas), -min(deltas))
    return ((m + 7) // 8) * 8          # multiple of 8 -> aligned interior store


@jax.jit
def encoder2d_forward(x_nchw, p):
    B, Cin, H, W = x_nchw.shape
    num_res = len(p["res_blocks"])
    cb_dim = p["final_w"].shape[0]
    ch = p["conv2_w"].shape[0]          # hidden_dim
    c1 = p["conv1_w"].shape[0]          # hidden_dim // 2

    x = jnp.transpose(x_nchw, (0, 2, 3, 1)).astype(jnp.float32)   # NCHW -> NHWC
    H1, W1 = _conv_out(H, 4, 2, 1), _conv_out(W, 4, 2, 1)
    H2, W2 = _conv_out(H1, 4, 2, 1), _conv_out(W1, 4, 2, 1)
    M1, M2 = B * H1 * W1, B * H2 * W2

    # static row shifts for each conv tap (flattened (b,h,w) row ordering)
    deltas2 = tuple((ki - 1) * W1 + (kj - 1) for ki in range(4) for kj in range(4))
    deltas3 = tuple((ki - 1) * W2 + (kj - 1) for ki in range(3) for kj in range(3))
    pad1, pad2 = _pad_rows(deltas2), _pad_rows(deltas3)

    # -------- kernel inputs (weights pre-laid-out for matmul, bf16) ----------
    patches1 = _im2col(x, 4, 4, 2, 1).astype(MXU_DTYPE)           # (M1, Cin*16)
    w1 = p["conv1_w"].reshape(c1, -1).T.astype(MXU_DTYPE)
    # NOTE: conv biases are intentionally not passed -- training-mode BN cancels them.
    args = [patches1, w1, _row(p["bn1_g"]), _row(p["bn1_b"]),
            _subsample_matrix(B, H1, W1, H2, W2),                 # (M2, M1) one-hot
            _tap_mask(B, H2, W2, 4, 4, 2, 1, H1, W1, c1),         # (M2, 16*c1)
            _flat_tap_weight(p["conv2_w"]), _row(p["bn2_g"]), _row(p["bn2_b"]),
            _tap_mask(B, H2, W2, 3, 3, 1, 1, H2, W2, ch),         # (M2, 9*ch)
            _tap_mask(B, H2, W2, 3, 3, 1, 1, H2, W2, c1)]         # (M2, 9*c1)
    for rb in p["res_blocks"]:
        args += [_flat_tap_weight(rb["c1_w"]), _row(rb["bn1_g"]), _row(rb["bn1_b"]),
                 _flat_tap_weight(rb["c2_w"]), _row(rb["bn2_g"]), _row(rb["bn2_b"]),
                 _row(rb["post_g"]), _row(rb["post_b"])]
    args += [p["final_w"].reshape(cb_dim, ch).T.astype(MXU_DTYPE),
             _row(p["final_g"]), _row(p["final_beta"])]

    out = pl.pallas_call(
        functools.partial(_encoder_kernel, num_res_blocks=num_res, eps=EPS,
                          deltas2=deltas2, deltas3=deltas3, pad1=pad1, pad2=pad2),
        out_shape=jax.ShapeDtypeStruct((M2, cb_dim), jnp.float32),
        grid=(1,),
        in_specs=[_full_spec(a.shape) for a in args],
        out_specs=_full_spec((M2, cb_dim)),
        scratch_shapes=[pltpu.VMEM((M1 + 2 * pad1, c1), jnp.float32),   # conv2 input pad
                        pltpu.VMEM((M2 + 2 * pad2, ch), jnp.float32),   # res conv1 input
                        pltpu.VMEM((M2 + 2 * pad2, c1), jnp.float32)],  # res conv2 input
        compiler_params=pltpu.CompilerParams(
            dimension_semantics=("arbitrary",),
            vmem_limit_bytes=32 * 1024 * 1024),
    )(*args)
    return jnp.transpose(out.reshape(B, H2, W2, cb_dim), (0, 3, 1, 2))  # -> NCHW


# ------------------------------ parameter init ------------------------------ #

def init_params(key, in_feat_dim, codebook_dim, hidden_dim, num_res_blocks):
    def conv_init(key, cout, cin, k):
        kw_, kb_ = jax.random.split(key)
        scale = 1.0 / jnp.sqrt(cin * k * k)
        w = jax.random.uniform(kw_, (cout, cin, k, k), jnp.float32, -scale, scale)
        b = jax.random.uniform(kb_, (cout,), jnp.float32, -scale, scale)
        return w, b

    def bn_init(c):
        return jnp.ones((c,), jnp.float32), jnp.zeros((c,), jnp.float32)

    keys = jax.random.split(key, 4 + 2 * num_res_blocks)
    h2 = hidden_dim // 2
    p = {}
    p["conv1_w"], p["conv1_b"] = conv_init(keys[0], h2, in_feat_dim, 4)
    p["bn1_g"], p["bn1_b"] = bn_init(h2)
    p["conv2_w"], p["conv2_b"] = conv_init(keys[1], hidden_dim, h2, 4)
    p["bn2_g"], p["bn2_b"] = bn_init(hidden_dim)

    p["res_blocks"] = []
    for r in range(num_res_blocks):
        rb = {}
        rb["c1_w"], rb["c1_b"] = conv_init(keys[2 + 2 * r], h2, hidden_dim, 3)
        rb["bn1_g"], rb["bn1_b"] = bn_init(h2)
        rb["c2_w"], rb["c2_b"] = conv_init(keys[3 + 2 * r], hidden_dim, h2, 3)
        rb["bn2_g"], rb["bn2_b"] = bn_init(hidden_dim)
        rb["post_g"], rb["post_b"] = bn_init(hidden_dim)   # BatchNorm2d after the block
        p["res_blocks"].append(rb)

    p["final_w"], p["final_b"] = conv_init(keys[-1], codebook_dim, hidden_dim, 1)
    p["final_g"], p["final_beta"] = bn_init(codebook_dim)
    return p


# --------------------------- pure-JAX reference ----------------------------- #
# Follows the PyTorch module math exactly, with conv operands cast to bf16 at the same
# points the kernel feeds the MXU (f32 accumulation), so the comparison isolates
# implementation errors from the intentional bf16 precision.

def _ref_conv(x, w, b, stride, pad):
    y = lax.conv_general_dilated(
        x.astype(MXU_DTYPE), w.astype(MXU_DTYPE), (stride, stride),
        [(pad, pad), (pad, pad)], dimension_numbers=("NCHW", "OIHW", "NCHW"),
        preferred_element_type=jnp.float32)
    return y + b[None, :, None, None]


def _ref_bn(x, g, beta):
    mean = x.mean(axis=(0, 2, 3), keepdims=True)
    var = jnp.square(x - mean).mean(axis=(0, 2, 3), keepdims=True)
    return (x - mean) * lax.rsqrt(var + EPS) * g[None, :, None, None] \
        + beta[None, :, None, None]


def encoder2d_reference(x, p):
    x = x.astype(jnp.float32)
    x = jnp.maximum(_ref_bn(_ref_conv(x, p["conv1_w"], p["conv1_b"], 2, 1),
                            p["bn1_g"], p["bn1_b"]), 0.0)
    x = jnp.maximum(_ref_bn(_ref_conv(x, p["conv2_w"], p["conv2_b"], 2, 1),
                            p["bn2_g"], p["bn2_b"]), 0.0)
    for rb in p["res_blocks"]:
        inp = x
        h = jnp.maximum(_ref_bn(_ref_conv(x, rb["c1_w"], rb["c1_b"], 1, 1),
                                rb["bn1_g"], rb["bn1_b"]), 0.0)
        h = _ref_bn(_ref_conv(h, rb["c2_w"], rb["c2_b"], 1, 1),
                    rb["bn2_g"], rb["bn2_b"])
        x = jnp.maximum(h + inp, 0.0)
        x = _ref_bn(x, rb["post_g"], rb["post_b"])
    x = _ref_bn(_ref_conv(x, p["final_w"], p["final_b"], 1, 0),
                p["final_g"], p["final_beta"])
    return x


# ----------------------------------- main ----------------------------------- #

if __name__ == "__main__":
    B, C_IN, HW = 2, 4, 16
    HIDDEN, CODEBOOK, NUM_RES = 32, 8, 1

    key = jax.random.PRNGKey(0)
    k_x, k_p = jax.random.split(key)
    x = jax.random.normal(k_x, (B, C_IN, HW, HW), jnp.float32)
    params = init_params(k_p, C_IN, CODEBOOK, HIDDEN, NUM_RES)

    out = jax.block_until_ready(encoder2d_forward(x, params))
    ref = jax.block_until_ready(encoder2d_reference(x, params))

    assert out.shape == (B, CODEBOOK, HW // 4, HW // 4), out.shape
    max_err = float(jnp.max(jnp.abs(out - ref)))
    assert jnp.allclose(out, ref, atol=2e-3, rtol=2e-3), f"max abs err {max_err}"
    print("KERNEL_OK")
</pallas_src>

<mosaic_0001>
module attributes {stable_mosaic.version = 11 : i64} {
  func.func @_encoder_kernel(%arg0: i32, %arg1: memref<128x64xbf16, #tpu.memory_space<vmem>>, %arg2: memref<64x16xbf16, #tpu.memory_space<vmem>>, %arg3: memref<1x16xf32, #tpu.memory_space<vmem>>, %arg4: memref<1x16xf32, #tpu.memory_space<vmem>>, %arg5: memref<32x128xbf16, #tpu.memory_space<vmem>>, %arg6: memref<32x256xf32, #tpu.memory_space<vmem>>, %arg7: memref<256x32xbf16, #tpu.memory_space<vmem>>, %arg8: memref<1x32xf32, #tpu.memory_space<vmem>>, %arg9: memref<1x32xf32, #tpu.memory_space<vmem>>, %arg10: memref<32x288xf32, #tpu.memory_space<vmem>>, %arg11: memref<32x144xf32, #tpu.memory_space<vmem>>, %arg12: memref<288x16xbf16, #tpu.memory_space<vmem>>, %arg13: memref<1x16xf32, #tpu.memory_space<vmem>>, %arg14: memref<1x16xf32, #tpu.memory_space<vmem>>, %arg15: memref<144x32xbf16, #tpu.memory_space<vmem>>, %arg16: memref<1x32xf32, #tpu.memory_space<vmem>>, %arg17: memref<1x32xf32, #tpu.memory_space<vmem>>, %arg18: memref<1x32xf32, #tpu.memory_space<vmem>>, %arg19: memref<1x32xf32, #tpu.memory_space<vmem>>, %arg20: memref<32x8xbf16, #tpu.memory_space<vmem>>, %arg21: memref<1x8xf32, #tpu.memory_space<vmem>>, %arg22: memref<1x8xf32, #tpu.memory_space<vmem>>, %arg23: memref<32x8xf32, #tpu.memory_space<vmem>>, %arg24: memref<176x16xf32, #tpu.memory_space<vmem>>, %arg25: memref<48x32xf32, #tpu.memory_space<vmem>>, %arg26: memref<48x16xf32, #tpu.memory_space<vmem>>) attributes {dimension_semantics = [#tpu.dimension_semantics<arbitrary>], iteration_bounds = array<i64: 1>, scalar_prefetch = 0 : i64, scratch_operands = 3 : i64, tpu.core_type = #tpu.core_type<tc>, window_params = [{pipeline_mode = #tpu.pipeline_mode<synchronous>, transform_indices = @transform_0, window_bounds = array<i64: 128, 64>}, {pipeline_mode = #tpu.pipeline_mode<synchronous>, transform_indices = @transform_1, window_bounds = array<i64: 64, 16>}, {pipeline_mode = #tpu.pipeline_mode<synchronous>, transform_indices = @transform_2, window_bounds = array<i64: 1, 16>}, {pipeline_mode = #tpu.pipeline_mode<synchronous>, transform_indices = @transform_3, window_bounds = array<i64: 1, 16>}, {pipeline_mode = #tpu.pipeline_mode<synchronous>, transform_indices = @transform_4, window_bounds = array<i64: 32, 128>}, {pipeline_mode = #tpu.pipeline_mode<synchronous>, transform_indices = @transform_5, window_bounds = array<i64: 32, 256>}, {pipeline_mode = #tpu.pipeline_mode<synchronous>, transform_indices = @transform_6, window_bounds = array<i64: 256, 32>}, {pipeline_mode = #tpu.pipeline_mode<synchronous>, transform_indices = @transform_7, window_bounds = array<i64: 1, 32>}, {pipeline_mode = #tpu.pipeline_mode<synchronous>, transform_indices = @transform_8, window_bounds = array<i64: 1, 32>}, {pipeline_mode = #tpu.pipeline_mode<synchronous>, transform_indices = @transform_9, window_bounds = array<i64: 32, 288>}, {pipeline_mode = #tpu.pipeline_mode<synchronous>, transform_indices = @transform_10, window_bounds = array<i64: 32, 144>}, {pipeline_mode = #tpu.pipeline_mode<synchronous>, transform_indices = @transform_11, window_bounds = array<i64: 288, 16>}, {pipeline_mode = #tpu.pipeline_mode<synchronous>, transform_indices = @transform_12, window_bounds = array<i64: 1, 16>}, {pipeline_mode = #tpu.pipeline_mode<synchronous>, transform_indices = @transform_13, window_bounds = array<i64: 1, 16>}, {pipeline_mode = #tpu.pipeline_mode<synchronous>, transform_indices = @transform_14, window_bounds = array<i64: 144, 32>}, {pipeline_mode = #tpu.pipeline_mode<synchronous>, transform_indices = @transform_15, window_bounds = array<i64: 1, 32>}, {pipeline_mode = #tpu.pipeline_mode<synchronous>, transform_indices = @transform_16, window_bounds = array<i64: 1, 32>}, {pipeline_mode = #tpu.pipeline_mode<synchronous>, transform_indices = @transform_17, window_bounds = array<i64: 1, 32>}, {pipeline_mode = #tpu.pipeline_mode<synchronous>, transform_indices = @transform_18, window_bounds = array<i64: 1, 32>}, {pipeline_mode = #tpu.pipeline_mode<synchronous>, transform_indices = @transform_19, window_bounds = array<i64: 32, 8>}, {pipeline_mode = #tpu.pipeline_mode<synchronous>, transform_indices = @transform_20, window_bounds = array<i64: 1, 8>}, {pipeline_mode = #tpu.pipeline_mode<synchronous>, transform_indices = @transform_21, window_bounds = array<i64: 1, 8>}, {pipeline_mode = #tpu.pipeline_mode<synchronous>, transform_indices = @transform_22, window_bounds = array<i64: 32, 8>}]} {
    %cst = arith.constant 0.000000e+00 : f32
    %0 = vector.broadcast %cst : f32 to vector<176x16xf32>
    %c0 = arith.constant 0 : index
    %c0_0 = arith.constant 0 : index
    %1 = vector.load %arg24[%c0, %c0_0] : memref<176x16xf32, #tpu.memory_space<vmem>>, vector<176x16xf32>
    tpu.vector_store %arg24[%c0, %c0_0], %0 {strides = array<i32>} : memref<176x16xf32, #tpu.memory_space<vmem>>, vector<176x16xf32>,
    %cst_1 = arith.constant 0.000000e+00 : f32
    %2 = vector.broadcast %cst_1 : f32 to vector<48x32xf32>
    %c0_2 = arith.constant 0 : index
    %c0_3 = arith.constant 0 : index
    %3 = vector.load %arg25[%c0_2, %c0_3] : memref<48x32xf32, #tpu.memory_space<vmem>>, vector<48x32xf32>
    tpu.vector_store %arg25[%c0_2, %c0_3], %2 {strides = array<i32>} : memref<48x32xf32, #tpu.memory_space<vmem>>, vector<48x32xf32>,
    %cst_4 = arith.constant 0.000000e+00 : f32
    %4 = vector.broadcast %cst_4 : f32 to vector<48x16xf32>
    %c0_5 = arith.constant 0 : index
    %c0_6 = arith.constant 0 : index
    %5 = vector.load %arg26[%c0_5, %c0_6] : memref<48x16xf32, #tpu.memory_space<vmem>>, vector<48x16xf32>
    tpu.vector_store %arg26[%c0_5, %c0_6], %4 {strides = array<i32>} : memref<48x16xf32, #tpu.memory_space<vmem>>, vector<48x16xf32>,
    %c0_7 = arith.constant 0 : index
    %c0_8 = arith.constant 0 : index
    %6 = vector.load %arg1[%c0_7, %c0_8] : memref<128x64xbf16, #tpu.memory_space<vmem>>, vector<128x64xbf16>
    %c0_9 = arith.constant 0 : index
    %c0_10 = arith.constant 0 : index
    %7 = vector.load %arg2[%c0_9, %c0_10] : memref<64x16xbf16, #tpu.memory_space<vmem>>, vector<64x16xbf16>
    %cst_11 = arith.constant dense<0.000000e+00> : vector<128x16xf32>
    %8 = tpu.matmul %6, %7, %cst_11 {dimension_numbers = #tpu.dot_dimension_numbers<[1], [0], [0], [1], [0, 0, 1, 1], [], []>} : vector<128x64xbf16>, vector<64x16xbf16>, vector<128x16xf32> -> vector<128x16xf32>
    %cst_12 = arith.constant dense<0.000000e+00> : vector<16xf32>
    %9 = vector.multi_reduction <add>, %8, %cst_12 [0] : vector<128x16xf32> to vector<16xf32>
    %10 = vector.shape_cast %9 : vector<16xf32> to vector<1x16xf32>
    %11 = arith.mulf %8, %8 : vector<128x16xf32>
    %cst_13 = arith.constant dense<0.000000e+00> : vector<16xf32>
    %12 = vector.multi_reduction <add>, %11, %cst_13 [0] : vector<128x16xf32> to vector<16xf32>
    %13 = vector.shape_cast %12 : vector<16xf32> to vector<1x16xf32>
    %cst_14 = arith.constant 7.812500e-03 : f32
    %14 = vector.broadcast %cst_14 : f32 to vector<1x16xf32>
    %15 = arith.mulf %10, %14 : vector<1x16xf32>
    %cst_15 = arith.constant 7.812500e-03 : f32
    %16 = vector.broadcast %cst_15 : f32 to vector<1x16xf32>
    %17 = arith.mulf %13, %16 : vector<1x16xf32>
    %18 = arith.mulf %15, %15 : vector<1x16xf32>
    %19 = arith.subf %17, %18 : vector<1x16xf32>
    %20 = vector.broadcast %15 : vector<1x16xf32> to vector<128x16xf32>
    %21 = arith.subf %8, %20 : vector<128x16xf32>
    %cst_16 = arith.constant 9.99999974E-6 : f32
    %22 = vector.broadcast %cst_16 : f32 to vector<1x16xf32>
    %23 = arith.addf %19, %22 : vector<1x16xf32>
    %24 = math.rsqrt %23 : vector<1x16xf32>
    %25 = vector.broadcast %24 : vector<1x16xf32> to vector<128x16xf32>
    %26 = arith.mulf %21, %25 : vector<128x16xf32>
    %c0_17 = arith.constant 0 : index
    %c0_18 = arith.constant 0 : index
    %27 = vector.load %arg3[%c0_17, %c0_18] : memref<1x16xf32, #tpu.memory_space<vmem>>, vector<1x16xf32>
    %28 = vector.broadcast %27 : vector<1x16xf32> to vector<128x16xf32>
    %29 = arith.mulf %26, %28 : vector<128x16xf32>
    %c0_19 = arith.constant 0 : index
    %c0_20 = arith.constant 0 : index
    %30 = vector.load %arg4[%c0_19, %c0_20] : memref<1x16xf32, #tpu.memory_space<vmem>>, vector<1x16xf32>
    %31 = vector.broadcast %30 : vector<1x16xf32> to vector<128x16xf32>
    %32 = arith.addf %29, %31 : vector<128x16xf32>
    %cst_21 = arith.constant 0.000000e+00 : f32
    %33 = vector.broadcast %cst_21 : f32 to vector<128x16xf32>
    %34 = arith.maximumf %32, %33 : vector<128x16xf32>
    %c24 = arith.constant 24 : index
    %c0_22 = arith.constant 0 : index
    %35 = vector.load %arg24[%c24, %c0_22] : memref<176x16xf32, #tpu.memory_space<vmem>>, vector<128x16xf32>
    tpu.vector_store %arg24[%c24, %c0_22], %34 {strides = array<i32>} : memref<176x16xf32, #tpu.memory_space<vmem>>, vector<128x16xf32>,
    %c15 = arith.constant 15 : index
    %c0_23 = arith.constant 0 : index
    %36 = vector.load %arg24[%c15, %c0_23] : memref<176x16xf32, #tpu.memory_space<vmem>>, vector<128x16xf32>
    %c16 = arith.constant 16 : index
    %c0_24 = arith.constant 0 : index
    %37 = vector.load %arg24[%c16, %c0_24] : memref<176x16xf32, #tpu.memory_space<vmem>>, vector<128x16xf32>
    %c17 = arith.constant 17 : index
    %c0_25 = arith.constant 0 : index
    %38 = vector.load %arg24[%c17, %c0_25] : memref<176x16xf32, #tpu.memory_space<vmem>>, vector<128x16xf32>
    %c18 = arith.constant 18 : index
    %c0_26 = arith.constant 0 : index
    %39 = vector.load %arg24[%c18, %c0_26] : memref<176x16xf32, #tpu.memory_space<vmem>>, vector<128x16xf32>
    %c23 = arith.constant 23 : index
    %c0_27 = arith.constant 0 : index
    %40 = vector.load %arg24[%c23, %c0_27] : memref<176x16xf32, #tpu.memory_space<vmem>>, vector<128x16xf32>
    %c24_28 = arith.constant 24 : index
    %c0_29 = arith.constant 0 : index
    %41 = vector.load %arg24[%c24_28, %c0_29] : memref<176x16xf32, #tpu.memory_space<vmem>>, vector<128x16xf32>
    %c25 = arith.constant 25 : index
    %c0_30 = arith.constant 0 : index
    %42 = vector.load %arg24[%c25, %c0_30] : memref<176x16xf32, #tpu.memory_space<vmem>>, vector<128x16xf32>
    %c26 = arith.constant 26 : index
    %c0_31 = arith.constant 0 : index
    %43 = vector.load %arg24[%c26, %c0_31] : memref<176x16xf32, #tpu.memory_space<vmem>>, vector<128x16xf32>
    %c31 = arith.constant 31 : index
    %c0_32 = arith.constant 0 : index
    %44 = vector.load %arg24[%c31, %c0_32] : memref<176x16xf32, #tpu.memory_space<vmem>>, vector<128x16xf32>
    %c32 = arith.constant 32 : index
    %c0_33 = arith.constant 0 : index
    %45 = vector.load %arg24[%c32, %c0_33] : memref<176x16xf32, #tpu.memory_space<vmem>>, vector<128x16xf32>
    %c33 = arith.constant 33 : index
    %c0_34 = arith.constant 0 : index
    %46 = vector.load %arg24[%c33, %c0_34] : memref<176x16xf32, #tpu.memory_space<vmem>>, vector<128x16xf32>
    %c34 = arith.constant 34 : index
    %c0_35 = arith.constant 0 : index
    %47 = vector.load %arg24[%c34, %c0_35] : memref<176x16xf32, #tpu.memory_space<vmem>>, vector<128x16xf32>
    %c39 = arith.constant 39 : index
    %c0_36 = arith.constant 0 : index
    %48 = vector.load %arg24[%c39, %c0_36] : memref<176x16xf32, #tpu.memory_space<vmem>>, vector<128x16xf32>
    %c40 = arith.constant 40 : index
    %c0_37 = arith.constant 0 : index
    %49 = vector.load %arg24[%c40, %c0_37] : memref<176x16xf32, #tpu.memory_space<vmem>>, vector<128x16xf32>
    %c41 = arith.constant 41 : index
    %c0_38 = arith.constant 0 : index
    %50 = vector.load %arg24[%c41, %c0_38] : memref<176x16xf32, #tpu.memory_space<vmem>>, vector<128x16xf32>
    %c42 = arith.constant 42 : index
    %c0_39 = arith.constant 0 : index
    %51 = vector.load %arg24[%c42, %c0_39] : memref<176x16xf32, #tpu.memory_space<vmem>>, vector<128x16xf32>
    %52 = tpu.concatenate %36, %37, %38, %39, %40, %41, %42, %43, %44, %45, %46, %47, %48, %49, %50, %51 in 1 : vector<128x16xf32>, vector<128x16xf32>, vector<128x16xf32>, vector<128x16xf32>, vector<128x16xf32>, vector<128x16xf32>, vector<128x16xf32>, vector<128x16xf32>, vector<128x16xf32>, vector<128x16xf32>, vector<128x16xf32>, vector<128x16xf32>, vector<128x16xf32>, vector<128x16xf32>, vector<128x16xf32>, vector<128x16xf32> -> vector<128x256xf32>
    %c0_40 = arith.constant 0 : index
    %c0_41 = arith.constant 0 : index
    %53 = vector.load %arg5[%c0_40, %c0_41] : memref<32x128xbf16, #tpu.memory_space<vmem>>, vector<32x128xbf16>
    %54 = arith.truncf %52 : vector<128x256xf32> to vector<128x256xbf16>
    %cst_42 = arith.constant dense<0.000000e+00> : vector<32x256xf32>
    %55 = tpu.matmul %53, %54, %cst_42 {dimension_numbers = #tpu.dot_dimension_numbers<[1], [0], [0], [1], [0, 0, 1, 1], [], []>} : vector<32x128xbf16>, vector<128x256xbf16>, vector<32x256xf32> -> vector<32x256xf32>
    %c0_43 = arith.constant 0 : index
    %c0_44 = arith.constant 0 : index
    %56 = vector.load %arg6[%c0_43, %c0_44] : memref<32x256xf32, #tpu.memory_space<vmem>>, vector<32x256xf32>
    %57 = arith.mulf %55, %56 : vector<32x256xf32>
    %58 = arith.truncf %57 : vector<32x256xf32> to vector<32x256xbf16>
    %c0_45 = arith.constant 0 : index
    %c0_46 = arith.constant 0 : index
    %59 = vector.load %arg7[%c0_45, %c0_46] : memref<256x32xbf16, #tpu.memory_space<vmem>>, vector<256x32xbf16>
    %cst_47 = arith.constant dense<0.000000e+00> : vector<32x32xf32>
    %60 = tpu.matmul %58, %59, %cst_47 {dimension_numbers = #tpu.dot_dimension_numbers<[1], [0], [0], [1], [0, 0, 1, 1], [], []>} : vector<32x256xbf16>, vector<256x32xbf16>, vector<32x32xf32> -> vector<32x32xf32>
    %cst_48 = arith.constant dense<0.000000e+00> : vector<32xf32>
    %61 = vector.multi_reduction <add>, %60, %cst_48 [0] : vector<32x32xf32> to vector<32xf32>
    %62 = vector.shape_cast %61 : vector<32xf32> to vector<1x32xf32>
    %63 = arith.mulf %60, %60 : vector<32x32xf32>
    %cst_49 = arith.constant dense<0.000000e+00> : vector<32xf32>
    %64 = vector.multi_reduction <add>, %63, %cst_49 [0] : vector<32x32xf32> to vector<32xf32>
    %65 = vector.shape_cast %64 : vector<32xf32> to vector<1x32xf32>
    %cst_50 = arith.constant 3.125000e-02 : f32
    %66 = vector.broadcast %cst_50 : f32 to vector<1x32xf32>
    %67 = arith.mulf %62, %66 : vector<1x32xf32>
    %cst_51 = arith.constant 3.125000e-02 : f32
    %68 = vector.broadcast %cst_51 : f32 to vector<1x32xf32>
    %69 = arith.mulf %65, %68 : vector<1x32xf32>
    %70 = arith.mulf %67, %67 : vector<1x32xf32>
    %71 = arith.subf %69, %70 : vector<1x32xf32>
    %72 = vector.broadcast %67 : vector<1x32xf32> to vector<32x32xf32>
    %73 = arith.subf %60, %72 : vector<32x32xf32>
    %cst_52 = arith.constant 9.99999974E-6 : f32
    %74 = vector.broadcast %cst_52 : f32 to vector<1x32xf32>
    %75 = arith.addf %71, %74 : vector<1x32xf32>
    %76 = math.rsqrt %75 : vector<1x32xf32>
    %77 = vector.broadcast %76 : vector<1x32xf32> to vector<32x32xf32>
    %78 = arith.mulf %73, %77 : vector<32x32xf32>
    %c0_53 = arith.constant 0 : index
    %c0_54 = arith.constant 0 : index
    %79 = vector.load %arg8[%c0_53, %c0_54] : memref<1x32xf32, #tpu.memory_space<vmem>>, vector<1x32xf32>
    %80 = vector.broadcast %79 : vector<1x32xf32> to vector<32x32xf32>
    %81 = arith.mulf %78, %80 : vector<32x32xf32>
    %c0_55 = arith.constant 0 : index
    %c0_56 = arith.constant 0 : index
    %82 = vector.load %arg9[%c0_55, %c0_56] : memref<1x32xf32, #tpu.memory_space<vmem>>, vector<1x32xf32>
    %83 = vector.broadcast %82 : vector<1x32xf32> to vector<32x32xf32>
    %84 = arith.addf %81, %83 : vector<32x32xf32>
    %cst_57 = arith.constant 0.000000e+00 : f32
    %85 = vector.broadcast %cst_57 : f32 to vector<32x32xf32>
    %86 = arith.maximumf %84, %85 : vector<32x32xf32>
    %c8 = arith.constant 8 : index
    %c0_58 = arith.constant 0 : index
    %87 = vector.load %arg25[%c8, %c0_58] : memref<48x32xf32, #tpu.memory_space<vmem>>, vector<32x32xf32>
    tpu.vector_store %arg25[%c8, %c0_58], %86 {strides = array<i32>} : memref<48x32xf32, #tpu.memory_space<vmem>>, vector<32x32xf32>,
    %c3 = arith.constant 3 : index
    %c0_59 = arith.constant 0 : index
    %88 = vector.load %arg25[%c3, %c0_59] : memref<48x32xf32, #tpu.memory_space<vmem>>, vector<32x32xf32>
    %c4 = arith.constant 4 : index
    %c0_60 = arith.constant 0 : index
    %89 = vector.load %arg25[%c4, %c0_60] : memref<48x32xf32, #tpu.memory_space<vmem>>, vector<32x32xf32>
    %c5 = arith.constant 5 : index
    %c0_61 = arith.constant 0 : index
    %90 = vector.load %arg25[%c5, %c0_61] : memref<48x32xf32, #tpu.memory_space<vmem>>, vector<32x32xf32>
    %c7 = arith.constant 7 : index
    %c0_62 = arith.constant 0 : index
    %91 = vector.load %arg25[%c7, %c0_62] : memref<48x32xf32, #tpu.memory_space<vmem>>, vector<32x32xf32>
    %c8_63 = arith.constant 8 : index
    %c0_64 = arith.constant 0 : index
    %92 = vector.load %arg25[%c8_63, %c0_64] : memref<48x32xf32, #tpu.memory_space<vmem>>, vector<32x32xf32>
    %c9 = arith.constant 9 : index
    %c0_65 = arith.constant 0 : index
    %93 = vector.load %arg25[%c9, %c0_65] : memref<48x32xf32, #tpu.memory_space<vmem>>, vector<32x32xf32>
    %c11 = arith.constant 11 : index
    %c0_66 = arith.constant 0 : index
    %94 = vector.load %arg25[%c11, %c0_66] : memref<48x32xf32, #tpu.memory_space<vmem>>, vector<32x32xf32>
    %c12 = arith.constant 12 : index
    %c0_67 = arith.constant 0 : index
    %95 = vector.load %arg25[%c12, %c0_67] : memref<48x32xf32, #tpu.memory_space<vmem>>, vector<32x32xf32>
    %c13 = arith.constant 13 : index
    %c0_68 = arith.constant 0 : index
    %96 = vector.load %arg25[%c13, %c0_68] : memref<48x32xf32, #tpu.memory_space<vmem>>, vector<32x32xf32>
    %97 = tpu.concatenate %88, %89, %90, %91, %92, %93, %94, %95, %96 in 1 : vector<32x32xf32>, vector<32x32xf32>, vector<32x32xf32>, vector<32x32xf32>, vector<32x32xf32>, vector<32x32xf32>, vector<32x32xf32>, vector<32x32xf32>, vector<32x32xf32> -> vector<32x288xf32>
    %c0_69 = arith.constant 0 : index
    %c0_70 = arith.constant 0 : index
    %98 = vector.load %arg10[%c0_69, %c0_70] : memref<32x288xf32, #tpu.memory_space<vmem>>, vector<32x288xf32>
    %99 = arith.mulf %97, %98 : vector<32x288xf32>
    %100 = arith.truncf %99 : vector<32x288xf32> to vector<32x288xbf16>
    %c0_71 = arith.constant 0 : index
    %c0_72 = arith.constant 0 : index
    %101 = vector.load %arg12[%c0_71, %c0_72] : memref<288x16xbf16, #tpu.memory_space<vmem>>, vector<288x16xbf16>
    %cst_73 = arith.constant dense<0.000000e+00> : vector<32x16xf32>
    %102 = tpu.matmul %100, %101, %cst_73 {dimension_numbers = #tpu.dot_dimension_numbers<[1], [0], [0], [1], [0, 0, 1, 1], [], []>} : vector<32x288xbf16>, vector<288x16xbf16>, vector<32x16xf32> -> vector<32x16xf32>
    %cst_74 = arith.constant dense<0.000000e+00> : vector<16xf32>
    %103 = vector.multi_reduction <add>, %102, %cst_74 [0] : vector<32x16xf32> to vector<16xf32>
    %104 = vector.shape_cast %103 : vector<16xf32> to vector<1x16xf32>
    %105 = arith.mulf %102, %102 : vector<32x16xf32>
    %cst_75 = arith.constant dense<0.000000e+00> : vector<16xf32>
    %106 = vector.multi_reduction <add>, %105, %cst_75 [0] : vector<32x16xf32> to vector<16xf32>
    %107 = vector.shape_cast %106 : vector<16xf32> to vector<1x16xf32>
    %cst_76 = arith.constant 3.125000e-02 : f32
    %108 = vector.broadcast %cst_76 : f32 to vector<1x16xf32>
    %109 = arith.mulf %104, %108 : vector<1x16xf32>
    %cst_77 = arith.constant 3.125000e-02 : f32
    %110 = vector.broadcast %cst_77 : f32 to vector<1x16xf32>
    %111 = arith.mulf %107, %110 : vector<1x16xf32>
    %112 = arith.mulf %109, %109 : vector<1x16xf32>
    %113 = arith.subf %111, %112 : vector<1x16xf32>
    %114 = vector.broadcast %109 : vector<1x16xf32> to vector<32x16xf32>
    %115 = arith.subf %102, %114 : vector<32x16xf32>
    %cst_78 = arith.constant 9.99999974E-6 : f32
    %116 = vector.broadcast %cst_78 : f32 to vector<1x16xf32>
    %117 = arith.addf %113, %116 : vector<1x16xf32>
    %118 = math.rsqrt %117 : vector<1x16xf32>
    %119 = vector.broadcast %118 : vector<1x16xf32> to vector<32x16xf32>
    %120 = arith.mulf %115, %119 : vector<32x16xf32>
    %c0_79 = arith.constant 0 : index
    %c0_80 = arith.constant 0 : index
    %121 = vector.load %arg13[%c0_79, %c0_80] : memref<1x16xf32, #tpu.memory_space<vmem>>, vector<1x16xf32>
    %122 = vector.broadcast %121 : vector<1x16xf32> to vector<32x16xf32>
    %123 = arith.mulf %120, %122 : vector<32x16xf32>
    %c0_81 = arith.constant 0 : index
    %c0_82 = arith.constant 0 : index
    %124 = vector.load %arg14[%c0_81, %c0_82] : memref<1x16xf32, #tpu.memory_space<vmem>>, vector<1x16xf32>
    %125 = vector.broadcast %124 : vector<1x16xf32> to vector<32x16xf32>
    %126 = arith.addf %123, %125 : vector<32x16xf32>
    %cst_83 = arith.constant 0.000000e+00 : f32
    %127 = vector.broadcast %cst_83 : f32 to vector<32x16xf32>
    %128 = arith.maximumf %126, %127 : vector<32x16xf32>
    %c8_84 = arith.constant 8 : index
    %c0_85 = arith.constant 0 : index
    %129 = vector.load %arg26[%c8_84, %c0_85] : memref<48x16xf32, #tpu.memory_space<vmem>>, vector<32x16xf32>
    tpu.vector_store %arg26[%c8_84, %c0_85], %128 {strides = array<i32>} : memref<48x16xf32, #tpu.memory_space<vmem>>, vector<32x16xf32>,
    %c3_86 = arith.constant 3 : index
    %c0_87 = arith.constant 0 : index
    %130 = vector.load %arg26[%c3_86, %c0_87] : memref<48x16xf32, #tpu.memory_space<vmem>>, vector<32x16xf32>
    %c4_88 = arith.constant 4 : index
    %c0_89 = arith.constant 0 : index
    %131 = vector.load %arg26[%c4_88, %c0_89] : memref<48x16xf32, #tpu.memory_space<vmem>>, vector<32x16xf32>
    %c5_90 = arith.constant 5 : index
    %c0_91 = arith.constant 0 : index
    %132 = vector.load %arg26[%c5_90, %c0_91] : memref<48x16xf32, #tpu.memory_space<vmem>>, vector<32x16xf32>
    %c7_92 = arith.constant 7 : index
    %c0_93 = arith.constant 0 : index
    %133 = vector.load %arg26[%c7_92, %c0_93] : memref<48x16xf32, #tpu.memory_space<vmem>>, vector<32x16xf32>
    %c8_94 = arith.constant 8 : index
    %c0_95 = arith.constant 0 : index
    %134 = vector.load %arg26[%c8_94, %c0_95] : memref<48x16xf32, #tpu.memory_space<vmem>>, vector<32x16xf32>
    %c9_96 = arith.constant 9 : index
    %c0_97 = arith.constant 0 : index
    %135 = vector.load %arg26[%c9_96, %c0_97] : memref<48x16xf32, #tpu.memory_space<vmem>>, vector<32x16xf32>
    %c11_98 = arith.constant 11 : index
    %c0_99 = arith.constant 0 : index
    %136 = vector.load %arg26[%c11_98, %c0_99] : memref<48x16xf32, #tpu.memory_space<vmem>>, vector<32x16xf32>
    %c12_100 = arith.constant 12 : index
    %c0_101 = arith.constant 0 : index
    %137 = vector.load %arg26[%c12_100, %c0_101] : memref<48x16xf32, #tpu.memory_space<vmem>>, vector<32x16xf32>
    %c13_102 = arith.constant 13 : index
    %c0_103 = arith.constant 0 : index
    %138 = vector.load %arg26[%c13_102, %c0_103] : memref<48x16xf32, #tpu.memory_space<vmem>>, vector<32x16xf32>
    %139 = tpu.concatenate %130, %131, %132, %133, %134, %135, %136, %137, %138 in 1 : vector<32x16xf32>, vector<32x16xf32>, vector<32x16xf32>, vector<32x16xf32>, vector<32x16xf32>, vector<32x16xf32>, vector<32x16xf32>, vector<32x16xf32>, vector<32x16xf32> -> vector<32x144xf32>
    %c0_104 = arith.constant 0 : index
    %c0_105 = arith.constant 0 : index
    %140 = vector.load %arg11[%c0_104, %c0_105] : memref<32x144xf32, #tpu.memory_space<vmem>>, vector<32x144xf32>
    %141 = arith.mulf %139, %140 : vector<32x144xf32>
    %142 = arith.truncf %141 : vector<32x144xf32> to vector<32x144xbf16>
    %c0_106 = arith.constant 0 : index
    %c0_107 = arith.constant 0 : index
    %143 = vector.load %arg15[%c0_106, %c0_107] : memref<144x32xbf16, #tpu.memory_space<vmem>>, vector<144x32xbf16>
    %cst_108 = arith.constant dense<0.000000e+00> : vector<32x32xf32>
    %144 = tpu.matmul %142, %143, %cst_108 {dimension_numbers = #tpu.dot_dimension_numbers<[1], [0], [0], [1], [0, 0, 1, 1], [], []>} : vector<32x144xbf16>, vector<144x32xbf16>, vector<32x32xf32> -> vector<32x32xf32>
    %cst_109 = arith.constant dense<0.000000e+00> : vector<32xf32>
    %145 = vector.multi_reduction <add>, %144, %cst_109 [0] : vector<32x32xf32> to vector<32xf32>
    %146 = vector.shape_cast %145 : vector<32xf32> to vector<1x32xf32>
    %147 = arith.mulf %144, %144 : vector<32x32xf32>
    %cst_110 = arith.constant dense<0.000000e+00> : vector<32xf32>
    %148 = vector.multi_reduction <add>, %147, %cst_110 [0] : vector<32x32xf32> to vector<32xf32>
    %149 = vector.shape_cast %148 : vector<32xf32> to vector<1x32xf32>
    %cst_111 = arith.constant 3.125000e-02 : f32
    %150 = vector.broadcast %cst_111 : f32 to vector<1x32xf32>
    %151 = arith.mulf %146, %150 : vector<1x32xf32>
    %cst_112 = arith.constant 3.125000e-02 : f32
    %152 = vector.broadcast %cst_112 : f32 to vector<1x32xf32>
    %153 = arith.mulf %149, %152 : vector<1x32xf32>
    %154 = arith.mulf %151, %151 : vector<1x32xf32>
    %155 = arith.subf %153, %154 : vector<1x32xf32>
    %156 = vector.broadcast %151 : vector<1x32xf32> to vector<32x32xf32>
    %157 = arith.subf %144, %156 : vector<32x32xf32>
    %cst_113 = arith.constant 9.99999974E-6 : f32
    %158 = vector.broadcast %cst_113 : f32 to vector<1x32xf32>
    %159 = arith.addf %155, %158 : vector<1x32xf32>
    %160 = math.rsqrt %159 : vector<1x32xf32>
    %161 = vector.broadcast %160 : vector<1x32xf32> to vector<32x32xf32>
    %162 = arith.mulf %157, %161 : vector<32x32xf32>
    %c0_114 = arith.constant 0 : index
    %c0_115 = arith.constant 0 : index
    %163 = vector.load %arg16[%c0_114, %c0_115] : memref<1x32xf32, #tpu.memory_space<vmem>>, vector<1x32xf32>
    %164 = vector.broadcast %163 : vector<1x32xf32> to vector<32x32xf32>
    %165 = arith.mulf %162, %164 : vector<32x32xf32>
    %c0_116 = arith.constant 0 : index
    %c0_117 = arith.constant 0 : index
    %166 = vector.load %arg17[%c0_116, %c0_117] : memref<1x32xf32, #tpu.memory_space<vmem>>, vector<1x32xf32>
    %167 = vector.broadcast %166 : vector<1x32xf32> to vector<32x32xf32>
    %168 = arith.addf %165, %167 : vector<32x32xf32>
    %169 = arith.addf %168, %86 : vector<32x32xf32>
    %cst_118 = arith.constant 0.000000e+00 : f32
    %170 = vector.broadcast %cst_118 : f32 to vector<32x32xf32>
    %171 = arith.maximumf %169, %170 : vector<32x32xf32>
    %cst_119 = arith.constant dense<0.000000e+00> : vector<32xf32>
    %172 = vector.multi_reduction <add>, %171, %cst_119 [0] : vector<32x32xf32> to vector<32xf32>
    %173 = vector.shape_cast %172 : vector<32xf32> to vector<1x32xf32>
    %174 = arith.mulf %171, %171 : vector<32x32xf32>
    %cst_120 = arith.constant dense<0.000000e+00> : vector<32xf32>
    %175 = vector.multi_reduction <add>, %174, %cst_120 [0] : vector<32x32xf32> to vector<32xf32>
    %176 = vector.shape_cast %175 : vector<32xf32> to vector<1x32xf32>
    %cst_121 = arith.constant 3.125000e-02 : f32
    %177 = vector.broadcast %cst_121 : f32 to vector<1x32xf32>
    %178 = arith.mulf %173, %177 : vector<1x32xf32>
    %cst_122 = arith.constant 3.125000e-02 : f32
    %179 = vector.broadcast %cst_122 : f32 to vector<1x32xf32>
    %180 = arith.mulf %176, %179 : vector<1x32xf32>
    %181 = arith.mulf %178, %178 : vector<1x32xf32>
    %182 = arith.subf %180, %181 : vector<1x32xf32>
    %183 = vector.broadcast %178 : vector<1x32xf32> to vector<32x32xf32>
    %184 = arith.subf %171, %183 : vector<32x32xf32>
    %cst_123 = arith.constant 9.99999974E-6 : f32
    %185 = vector.broadcast %cst_123 : f32 to vector<1x32xf32>
    %186 = arith.addf %182, %185 : vector<1x32xf32>
    %187 = math.rsqrt %186 : vector<1x32xf32>
    %188 = vector.broadcast %187 : vector<1x32xf32> to vector<32x32xf32>
    %189 = arith.mulf %184, %188 : vector<32x32xf32>
    %c0_124 = arith.constant 0 : index
    %c0_125 = arith.constant 0 : index
    %190 = vector.load %arg18[%c0_124, %c0_125] : memref<1x32xf32, #tpu.memory_space<vmem>>, vector<1x32xf32>
    %191 = vector.broadcast %190 : vector<1x32xf32> to vector<32x32xf32>
    %192 = arith.mulf %189, %191 : vector<32x32xf32>
    %c0_126 = arith.constant 0 : index
    %c0_127 = arith.constant 0 : index
    %193 = vector.load %arg19[%c0_126, %c0_127] : memref<1x32xf32, #tpu.memory_space<vmem>>, vector<1x32xf32>
    %194 = vector.broadcast %193 : vector<1x32xf32> to vector<32x32xf32>
    %195 = arith.addf %192, %194 : vector<32x32xf32>
    %196 = arith.truncf %195 : vector<32x32xf32> to vector<32x32xbf16>
    %c0_128 = arith.constant 0 : index
    %c0_129 = arith.constant 0 : index
    %197 = vector.load %arg20[%c0_128, %c0_129] : memref<32x8xbf16, #tpu.memory_space<vmem>>, vector<32x8xbf16>
    %cst_130 = arith.constant dense<0.000000e+00> : vector<32x8xf32>
    %198 = tpu.matmul %196, %197, %cst_130 {dimension_numbers = #tpu.dot_dimension_numbers<[1], [0], [0], [1], [0, 0, 1, 1], [], []>} : vector<32x32xbf16>, vector<32x8xbf16>, vector<32x8xf32> -> vector<32x8xf32>
    %cst_131 = arith.constant dense<0.000000e+00> : vector<8xf32>
    %199 = vector.multi_reduction <add>, %198, %cst_131 [0] : vector<32x8xf32> to vector<8xf32>
    %200 = vector.shape_cast %199 : vector<8xf32> to vector<1x8xf32>
    %201 = arith.mulf %198, %198 : vector<32x8xf32>
    %cst_132 = arith.constant dense<0.000000e+00> : vector<8xf32>
    %202 = vector.multi_reduction <add>, %201, %cst_132 [0] : vector<32x8xf32> to vector<8xf32>
    %203 = vector.shape_cast %202 : vector<8xf32> to vector<1x8xf32>
    %cst_133 = arith.constant 3.125000e-02 : f32
    %204 = vector.broadcast %cst_133 : f32 to vector<1x8xf32>
    %205 = arith.mulf %200, %204 : vector<1x8xf32>
    %cst_134 = arith.constant 3.125000e-02 : f32
    %206 = vector.broadcast %cst_134 : f32 to vector<1x8xf32>
    %207 = arith.mulf %203, %206 : vector<1x8xf32>
    %208 = arith.mulf %205, %205 : vector<1x8xf32>
    %209 = arith.subf %207, %208 : vector<1x8xf32>
    %210 = vector.broadcast %205 : vector<1x8xf32> to vector<32x8xf32>
    %211 = arith.subf %198, %210 : vector<32x8xf32>
    %cst_135 = arith.constant 9.99999974E-6 : f32
    %212 = vector.broadcast %cst_135 : f32 to vector<1x8xf32>
    %213 = arith.addf %209, %212 : vector<1x8xf32>
    %214 = math.rsqrt %213 : vector<1x8xf32>
    %215 = vector.broadcast %214 : vector<1x8xf32> to vector<32x8xf32>
    %216 = arith.mulf %211, %215 : vector<32x8xf32>
    %c0_136 = arith.constant 0 : index
    %c0_137 = arith.constant 0 : index
    %217 = vector.load %arg21[%c0_136, %c0_137] : memref<1x8xf32, #tpu.memory_space<vmem>>, vector<1x8xf32>
    %218 = vector.broadcast %217 : vector<1x8xf32> to vector<32x8xf32>
    %219 = arith.mulf %216, %218 : vector<32x8xf32>
    %c0_138 = arith.constant 0 : index
    %c0_139 = arith.constant 0 : index
    %220 = vector.load %arg22[%c0_138, %c0_139] : memref<1x8xf32, #tpu.memory_space<vmem>>, vector<1x8xf32>
    %221 = vector.broadcast %220 : vector<1x8xf32> to vector<32x8xf32>
    %222 = arith.addf %219, %221 : vector<32x8xf32>
    %c0_140 = arith.constant 0 : index
    %c0_141 = arith.constant 0 : index
    %223 = vector.load %arg23[%c0_140, %c0_141] : memref<32x8xf32, #tpu.memory_space<vmem>>, vector<32x8xf32>
    tpu.vector_store %arg23[%c0_140, %c0_141], %222 {strides = array<i32>} : memref<32x8xf32, #tpu.memory_space<vmem>>, vector<32x8xf32>,
    return
  }
  func.func @transform_0(%arg0: i32) -> (i32, i32) {
    %c0_i32 = arith.constant 0 : i32
    %c0_i32_0 = arith.constant 0 : i32
    %c0_i32_1 = arith.constant 0 : i32
    return %c0_i32, %c0_i32_0 : i32, i32
  }
  func.func @transform_1(%arg0: i32) -> (i32, i32) {
    %c0_i32 = arith.constant 0 : i32
    %c0_i32_0 = arith.constant 0 : i32
    %c0_i32_1 = arith.constant 0 : i32
    return %c0_i32, %c0_i32_0 : i32, i32
  }
  func.func @transform_2(%arg0: i32) -> (i32, i32) {
    %c0_i32 = arith.constant 0 : i32
    %c0_i32_0 = arith.constant 0 : i32
    %c0_i32_1 = arith.constant 0 : i32
    return %c0_i32, %c0_i32_0 : i32, i32
  }
  func.func @transform_3(%arg0: i32) -> (i32, i32) {
    %c0_i32 = arith.constant 0 : i32
    %c0_i32_0 = arith.constant 0 : i32
    %c0_i32_1 = arith.constant 0 : i32
    return %c0_i32, %c0_i32_0 : i32, i32
  }
  func.func @transform_4(%arg0: i32) -> (i32, i32) {
    %c0_i32 = arith.constant 0 : i32
    %c0_i32_0 = arith.constant 0 : i32
    %c0_i32_1 = arith.constant 0 : i32
    return %c0_i32, %c0_i32_0 : i32, i32
  }
  func.func @transform_5(%arg0: i32) -> (i32, i32) {
    %c0_i32 = arith.constant 0 : i32
    %c0_i32_0 = arith.constant 0 : i32
    %c0_i32_1 = arith.constant 0 : i32
    return %c0_i32, %c0_i32_0 : i32, i32
  }
  func.func @transform_6(%arg0: i32) -> (i32, i32) {
    %c0_i32 = arith.constant 0 : i32
    %c0_i32_0 = arith.constant 0 : i32
    %c0_i32_1 = arith.constant 0 : i32
    return %c0_i32, %c0_i32_0 : i32, i32
  }
  func.func @transform_7(%arg0: i32) -> (i32, i32) {
    %c0_i32 = arith.constant 0 : i32
    %c0_i32_0 = arith.constant 0 : i32
    %c0_i32_1 = arith.constant 0 : i32
    return %c0_i32, %c0_i32_0 : i32, i32
  }
  func.func @transform_8(%arg0: i32) -> (i32, i32) {
    %c0_i32 = arith.constant 0 : i32
    %c0_i32_0 = arith.constant 0 : i32
    %c0_i32_1 = arith.constant 0 : i32
    return %c0_i32, %c0_i32_0 : i32, i32
  }
  func.func @transform_9(%arg0: i32) -> (i32, i32) {
    %c0_i32 = arith.constant 0 : i32
    %c0_i32_0 = arith.constant 0 : i32
    %c0_i32_1 = arith.constant 0 : i32
    return %c0_i32, %c0_i32_0 : i32, i32
  }
  func.func @transform_10(%arg0: i32) -> (i32, i32) {
    %c0_i32 = arith.constant 0 : i32
    %c0_i32_0 = arith.constant 0 : i32
    %c0_i32_1 = arith.constant 0 : i32
    return %c0_i32, %c0_i32_0 : i32, i32
  }
  func.func @transform_11(%arg0: i32) -> (i32, i32) {
    %c0_i32 = arith.constant 0 : i32
    %c0_i32_0 = arith.constant 0 : i32
    %c0_i32_1 = arith.constant 0 : i32
    return %c0_i32, %c0_i32_0 : i32, i32
  }
  func.func @transform_12(%arg0: i32) -> (i32, i32) {
    %c0_i32 = arith.constant 0 : i32
    %c0_i32_0 = arith.constant 0 : i32
    %c0_i32_1 = arith.constant 0 : i32
    return %c0_i32, %c0_i32_0 : i32, i32
  }
  func.func @transform_13(%arg0: i32) -> (i32, i32) {
    %c0_i32 = arith.constant 0 : i32
    %c0_i32_0 = arith.constant 0 : i32
    %c0_i32_1 = arith.constant 0 : i32
    return %c0_i32, %c0_i32_0 : i32, i32
  }
  func.func @transform_14(%arg0: i32) -> (i32, i32) {
    %c0_i32 = arith.constant 0 : i32
    %c0_i32_0 = arith.constant 0 : i32
    %c0_i32_1 = arith.constant 0 : i32
    return %c0_i32, %c0_i32_0 : i32, i32
  }
  func.func @transform_15(%arg0: i32) -> (i32, i32) {
    %c0_i32 = arith.constant 0 : i32
    %c0_i32_0 = arith.constant 0 : i32
    %c0_i32_1 = arith.constant 0 : i32
    return %c0_i32, %c0_i32_0 : i32, i32
  }
  func.func @transform_16(%arg0: i32) -> (i32, i32) {
    %c0_i32 = arith.constant 0 : i32
    %c0_i32_0 = arith.constant 0 : i32
    %c0_i32_1 = arith.constant 0 : i32
    return %c0_i32, %c0_i32_0 : i32, i32
  }
  func.func @transform_17(%arg0: i32) -> (i32, i32) {
    %c0_i32 = arith.constant 0 : i32
    %c0_i32_0 = arith.constant 0 : i32
    %c0_i32_1 = arith.constant 0 : i32
    return %c0_i32, %c0_i32_0 : i32, i32
  }
  func.func @transform_18(%arg0: i32) -> (i32, i32) {
    %c0_i32 = arith.constant 0 : i32
    %c0_i32_0 = arith.constant 0 : i32
    %c0_i32_1 = arith.constant 0 : i32
    return %c0_i32, %c0_i32_0 : i32, i32
  }
  func.func @transform_19(%arg0: i32) -> (i32, i32) {
    %c0_i32 = arith.constant 0 : i32
    %c0_i32_0 = arith.constant 0 : i32
    %c0_i32_1 = arith.constant 0 : i32
    return %c0_i32, %c0_i32_0 : i32, i32
  }
  func.func @transform_20(%arg0: i32) -> (i32, i32) {
    %c0_i32 = arith.constant 0 : i32
    %c0_i32_0 = arith.constant 0 : i32
    %c0_i32_1 = arith.constant 0 : i32
    return %c0_i32, %c0_i32_0 : i32, i32
  }
  func.func @transform_21(%arg0: i32) -> (i32, i32) {
    %c0_i32 = arith.constant 0 : i32
    %c0_i32_0 = arith.constant 0 : i32
    %c0_i32_1 = arith.constant 0 : i32
    return %c0_i32, %c0_i32_0 : i32, i32
  }
  func.func @transform_22(%arg0: i32) -> (i32, i32) {
    %c0_i32 = arith.constant 0 : i32
    %c0_i32_0 = arith.constant 0 : i32
    %c0_i32_1 = arith.constant 0 : i32
    return %c0_i32, %c0_i32_0 : i32, i32
  }
}

</mosaic_0001>

<llo_original>
// kernel: encoder2d_forward.1
$region0: #{encoder2d_forward.1}
  #allocation0 [shape = 'u32[]', space=smem, size = 0x4, offset = 0x4, fixed_abs, tag = 'smem constant byte address 0x4 - core index']
  #allocation1 [shape = 'u32[144,128]{1,0:T(1,128)}', space=vmem, size = 0x12000, scoped, tag = 'internal scratch']
  #allocation2 [shape = 'f32[176,16]{1,0:T(8,128)}', space=vmem, size = 0x16000, scoped, tag = 'scratch operand']
  #allocation3 [shape = 'f32[48,32]{1,0:T(8,128)}', space=vmem, size = 0x6000, scoped, tag = 'scratch operand']
  #allocation4 [shape = 'f32[48,16]{1,0:T(8,128)}', space=vmem, size = 0x6000, scoped, tag = 'scratch operand']
  %s0 = inlined_call_operand.vmem [shape: bf16[128,64], index: 0, kind: input, shape index: {}]
  %s1 = inlined_call_operand.vmem [shape: bf16[64,16], index: 1, kind: input, shape index: {}]
  %s2 = inlined_call_operand.vmem [shape: f32[1,16], index: 2, kind: input, shape index: {}]
  %s3 = inlined_call_operand.vmem [shape: f32[1,16], index: 3, kind: input, shape index: {}]
  %s4 = inlined_call_operand.vmem [shape: bf16[32,128], index: 4, kind: input, shape index: {}]
  %s5 = inlined_call_operand.vmem [shape: f32[32,256], index: 5, kind: input, shape index: {}]
  %s6 = inlined_call_operand.vmem [shape: bf16[256,32], index: 6, kind: input, shape index: {}]
  %s7 = inlined_call_operand.vmem [shape: f32[1,32], index: 7, kind: input, shape index: {}]
  %s8 = inlined_call_operand.vmem [shape: f32[1,32], index: 8, kind: input, shape index: {}]
  %s9 = inlined_call_operand.vmem [shape: f32[32,288], index: 9, kind: input, shape index: {}]
  %s10 = inlined_call_operand.vmem [shape: f32[32,144], index: 10, kind: input, shape index: {}]
  %s11 = inlined_call_operand.vmem [shape: bf16[288,16], index: 11, kind: input, shape index: {}]
  %s12 = inlined_call_operand.vmem [shape: f32[1,16], index: 12, kind: input, shape index: {}]
  %s13 = inlined_call_operand.vmem [shape: f32[1,16], index: 13, kind: input, shape index: {}]
  %s14 = inlined_call_operand.vmem [shape: bf16[144,32], index: 14, kind: input, shape index: {}]
  %s15 = inlined_call_operand.vmem [shape: f32[1,32], index: 15, kind: input, shape index: {}]
  %s16 = inlined_call_operand.vmem [shape: f32[1,32], index: 16, kind: input, shape index: {}]
  %s17 = inlined_call_operand.vmem [shape: f32[1,32], index: 17, kind: input, shape index: {}]
  %s18 = inlined_call_operand.vmem [shape: f32[1,32], index: 18, kind: input, shape index: {}]
  %s19 = inlined_call_operand.vmem [shape: bf16[32,8], index: 19, kind: input, shape index: {}]
  %s20 = inlined_call_operand.vmem [shape: f32[1,8], index: 20, kind: input, shape index: {}]
  %s21 = inlined_call_operand.vmem [shape: f32[1,8], index: 21, kind: input, shape index: {}]
  %s22 = inlined_call_operand.hbm [shape: f32[32,8], index: 22, kind: output, shape index: {}]
  %s23 = sld [smem:[#allocation0]]
  $region98: #{encoder2d_forward.1} parent=0
    _
  %s25 = ssub.s32 1, %s23
  %s26 = scalar_select 0, %s25, %s23
  $region1: #{encoder2d_forward.1} parent=0
    #allocation5 [shape = 'u8[16384]{0}', space=vmem, size = 0x4000, scoped, tag = 'output window, operand 0, single buffered']
    #allocation6 [shape = 's32[1]{0}', space=sflag, size = 0x4, scoped, tag = 'scoped memory for encoder2d_forward.1']
    %27 = vsyncpa [#allocation6], 0
    // Predicated region
    $region2: #{encoder2d_forward.1} parent=1 // pred_check
      _
    $region3: #{encoder2d_forward.1} parent=1 // pred_check_branch
      %29 = sbr.rel (0) target = $region5
    $region4: #{encoder2d_forward.1} parent=1 // pred_region
      _
    $region5: #{encoder2d_forward.1} parent=1 // pred_fallthru
      _
    // Predicated region
    $region6: #{encoder2d_forward.1} parent=1 // pred_check
      _
    $region7: #{encoder2d_forward.1} parent=1 // pred_check_branch
      %31 = sbr.rel (0) target = $region9
    $region8: #{encoder2d_forward.1} parent=1 // pred_region
      _
    $region9: #{encoder2d_forward.1} parent=1 // pred_fallthru
      _
    // Predicated region
    $region10: #{encoder2d_forward.1} parent=1 // pred_check
      _
    $region11: #{encoder2d_forward.1} parent=1 // pred_check_branch
      %33 = sbr.rel (0) target = $region13
    $region12: #{encoder2d_forward.1} parent=1 // pred_region
      _
    $region13: #{encoder2d_forward.1} parent=1 // pred_fallthru
      _
    // Predicated region
    $region14: #{encoder2d_forward.1} parent=1 // pred_check
      _
    $region15: #{encoder2d_forward.1} parent=1 // pred_check_branch
      %35 = sbr.rel (0) target = $region17
    $region16: #{encoder2d_forward.1} parent=1 // pred_region
      _
    $region17: #{encoder2d_forward.1} parent=1 // pred_fallthru
      _
    // Predicated region
    $region18: #{encoder2d_forward.1} parent=1 // pred_check
      _
    $region19: #{encoder2d_forward.1} parent=1 // pred_check_branch
      %37 = sbr.rel (0) target = $region21
    $region20: #{encoder2d_forward.1} parent=1 // pred_region
      _
    $region21: #{encoder2d_forward.1} parent=1 // pred_fallthru
      _
    // Predicated region
    $region22: #{encoder2d_forward.1} parent=1 // pred_check
      _
    $region23: #{encoder2d_forward.1} parent=1 // pred_check_branch
      %39 = sbr.rel (0) target = $region25
    $region24: #{encoder2d_forward.1} parent=1 // pred_region
      _
    $region25: #{encoder2d_forward.1} parent=1 // pred_fallthru
      _
    // Predicated region
    $region26: #{encoder2d_forward.1} parent=1 // pred_check
      _
    $region27: #{encoder2d_forward.1} parent=1 // pred_check_branch
      %41 = sbr.rel (0) target = $region29
    $region28: #{encoder2d_forward.1} parent=1 // pred_region
      _
    $region29: #{encoder2d_forward.1} parent=1 // pred_fallthru
      _
    // Predicated region
    $region30: #{encoder2d_forward.1} parent=1 // pred_check
      _
    $region31: #{encoder2d_forward.1} parent=1 // pred_check_branch
      %43 = sbr.rel (0) target = $region33
    $region32: #{encoder2d_forward.1} parent=1 // pred_region
      _
    $region33: #{encoder2d_forward.1} parent=1 // pred_fallthru
      _
    // Predicated region
    $region34: #{encoder2d_forward.1} parent=1 // pred_check
      _
    $region35: #{encoder2d_forward.1} parent=1 // pred_check_branch
      %45 = sbr.rel (0) target = $region37
    $region36: #{encoder2d_forward.1} parent=1 // pred_region
      _
    $region37: #{encoder2d_forward.1} parent=1 // pred_fallthru
      _
    // Predicated region
    $region38: #{encoder2d_forward.1} parent=1 // pred_check
      _
    $region39: #{encoder2d_forward.1} parent=1 // pred_check_branch
      %47 = sbr.rel (0) target = $region41
    $region40: #{encoder2d_forward.1} parent=1 // pred_region
      _
    $region41: #{encoder2d_forward.1} parent=1 // pred_fallthru
      _
    // Predicated region
    $region42: #{encoder2d_forward.1} parent=1 // pred_check
      _
    $region43: #{encoder2d_forward.1} parent=1 // pred_check_branch
      %49 = sbr.rel (0) target = $region45
    $region44: #{encoder2d_forward.1} parent=1 // pred_region
      _
    $region45: #{encoder2d_forward.1} parent=1 // pred_fallthru
      _
    // Predicated region
    $region46: #{encoder2d_forward.1} parent=1 // pred_check
      _
    $region47: #{encoder2d_forward.1} parent=1 // pred_check_branch
      %51 = sbr.rel (0) target = $region49
    $region48: #{encoder2d_forward.1} parent=1 // pred_region
      _
    $region49: #{encoder2d_forward.1} parent=1 // pred_fallthru
      _
    // Predicated region
    $region50: #{encoder2d_forward.1} parent=1 // pred_check
      _
    $region51: #{encoder2d_forward.1} parent=1 // pred_check_branch
      %53 = sbr.rel (0) target = $region53
    $region52: #{encoder2d_forward.1} parent=1 // pred_region
      _
    $region53: #{encoder2d_forward.1} parent=1 // pred_fallthru
      _
    // Predicated region
    $region54: #{encoder2d_forward.1} parent=1 // pred_check
      _
    $region55: #{encoder2d_forward.1} parent=1 // pred_check_branch
      %55 = sbr.rel (0) target = $region57
    $region56: #{encoder2d_forward.1} parent=1 // pred_region
      _
    $region57: #{encoder2d_forward.1} parent=1 // pred_fallthru
      _
    // Predicated region
    $region58: #{encoder2d_forward.1} parent=1 // pred_check
      _
    $region59: #{encoder2d_forward.1} parent=1 // pred_check_branch
      %57 = sbr.rel (0) target = $region61
    $region60: #{encoder2d_forward.1} parent=1 // pred_region
      _
    $region61: #{encoder2d_forward.1} parent=1 // pred_fallthru
      _
    // Predicated region
    $region62: #{encoder2d_forward.1} parent=1 // pred_check
      _
    $region63: #{encoder2d_forward.1} parent=1 // pred_check_branch
      %59 = sbr.rel (0) target = $region65
    $region64: #{encoder2d_forward.1} parent=1 // pred_region
      _
    $region65: #{encoder2d_forward.1} parent=1 // pred_fallthru
      _
    // Predicated region
    $region66: #{encoder2d_forward.1} parent=1 // pred_check
      _
    $region67: #{encoder2d_forward.1} parent=1 // pred_check_branch
      %61 = sbr.rel (0) target = $region69
    $region68: #{encoder2d_forward.1} parent=1 // pred_region
      _
    $region69: #{encoder2d_forward.1} parent=1 // pred_fallthru
      _
    // Predicated region
    $region70: #{encoder2d_forward.1} parent=1 // pred_check
      _
    $region71: #{encoder2d_forward.1} parent=1 // pred_check_branch
      %63 = sbr.rel (0) target = $region73
    $region72: #{encoder2d_forward.1} parent=1 // pred_region
      _
    $region73: #{encoder2d_forward.1} parent=1 // pred_fallthru
      _
    // Predicated region
    $region74: #{encoder2d_forward.1} parent=1 // pred_check
      _
    $region75: #{encoder2d_forward.1} parent=1 // pred_check_branch
      %65 = sbr.rel (0) target = $region77
    $region76: #{encoder2d_forward.1} parent=1 // pred_region
      _
    $region77: #{encoder2d_forward.1} parent=1 // pred_fallthru
      _
    // Predicated region
    $region78: #{encoder2d_forward.1} parent=1 // pred_check
      _
    $region79: #{encoder2d_forward.1} parent=1 // pred_check_branch
      %67 = sbr.rel (0) target = $region81
    $region80: #{encoder2d_forward.1} parent=1 // pred_region
      _
    $region81: #{encoder2d_forward.1} parent=1 // pred_fallthru
      _
    // Predicated region
    $region82: #{encoder2d_forward.1} parent=1 // pred_check
      _
    $region83: #{encoder2d_forward.1} parent=1 // pred_check_branch
      %69 = sbr.rel (0) target = $region85
    $region84: #{encoder2d_forward.1} parent=1 // pred_region
      _
    $region85: #{encoder2d_forward.1} parent=1 // pred_fallthru
      _
    // Predicated region
    $region86: #{encoder2d_forward.1} parent=1 // pred_check
      _
    $region87: #{encoder2d_forward.1} parent=1 // pred_check_branch
      %71 = sbr.rel (0) target = $region89
    $region88: #{encoder2d_forward.1} parent=1 // pred_region
      _
    $region89: #{encoder2d_forward.1} parent=1 // pred_fallthru
      _
    %vm73 = vcmask 130048
    %74 = vst.msk [vmem:[#allocation2] sm:$0xff] %vm73, 0.0
    %75 = vst.msk [vmem:[#allocation2 + $0x8] sm:$0xff] %vm73, 0.0
    %76 = vst.msk [vmem:[#allocation2 + $0x10] sm:$0xff] %vm73, 0.0
    %77 = vst.msk [vmem:[#allocation2 + $0x18] sm:$0xff] %vm73, 0.0
    %78 = vst.msk [vmem:[#allocation2 + $0x20] sm:$0xff] %vm73, 0.0
    %79 = vst.msk [vmem:[#allocation2 + $0x28] sm:$0xff] %vm73, 0.0
    %80 = vst.msk [vmem:[#allocation2 + $0x30] sm:$0xff] %vm73, 0.0
    %81 = vst.msk [vmem:[#allocation2 + $0x38] sm:$0xff] %vm73, 0.0
    %82 = vst.msk [vmem:[#allocation2 + $0x40] sm:$0xff] %vm73, 0.0
    %83 = vst.msk [vmem:[#allocation2 + $0x48] sm:$0xff] %vm73, 0.0
    %84 = vst.msk [vmem:[#allocation2 + $0x50] sm:$0xff] %vm73, 0.0
    %85 = vst.msk [vmem:[#allocation2 + $0x58] sm:$0xff] %vm73, 0.0
    %86 = vst.msk [vmem:[#allocation2 + $0x60] sm:$0xff] %vm73, 0.0
    %87 = vst.msk [vmem:[#allocation2 + $0x68] sm:$0xff] %vm73, 0.0
    %88 = vst.msk [vmem:[#allocation2 + $0x70] sm:$0xff] %vm73, 0.0
    %89 = vst.msk [vmem:[#allocation2 + $0x78] sm:$0xff] %vm73, 0.0
    %90 = vst.msk [vmem:[#allocation2 + $0x80] sm:$0xff] %vm73, 0.0
    %91 = vst.msk [vmem:[#allocation2 + $0x88] sm:$0xff] %vm73, 0.0
    %92 = vst.msk [vmem:[#allocation2 + $0x90] sm:$0xff] %vm73, 0.0
    %93 = vst.msk [vmem:[#allocation2 + $0x98] sm:$0xff] %vm73, 0.0
    %94 = vst.msk [vmem:[#allocation2 + $0xa0] sm:$0xff] %vm73, 0.0
    %95 = vst.msk [vmem:[#allocation2 + $0xa8] sm:$0xff] %vm73, 0.0
    %vm96 = vcmask 261120
    %97 = vst.msk [vmem:[#allocation3] sm:$0xff] %vm96, 0.0
    %98 = vst.msk [vmem:[#allocation3 + $0x8] sm:$0xff] %vm96, 0.0
    %99 = vst.msk [vmem:[#allocation3 + $0x10] sm:$0xff] %vm96, 0.0
    %100 = vst.msk [vmem:[#allocation3 + $0x18] sm:$0xff] %vm96, 0.0
    %101 = vst.msk [vmem:[#allocation3 + $0x20] sm:$0xff] %vm96, 0.0
    %102 = vst.msk [vmem:[#allocation3 + $0x28] sm:$0xff] %vm96, 0.0
    %103 = vst.msk [vmem:[#allocation4] sm:$0xff] %vm73, 0.0
    %104 = vst.msk [vmem:[#allocation4 + $0x8] sm:$0xff] %vm73, 0.0
    %105 = vst.msk [vmem:[#allocation4 + $0x10] sm:$0xff] %vm73, 0.0
    %106 = vst.msk [vmem:[#allocation4 + $0x18] sm:$0xff] %vm73, 0.0
    %107 = vst.msk [vmem:[#allocation4 + $0x20] sm:$0xff] %vm73, 0.0
    %108 = vst.msk [vmem:[#allocation4 + $0x28] sm:$0xff] %vm73, 0.0
    %v109 = vld [vmem:[%s0] sm:$0xf]
    %v110 = vld [vmem:[%s0 + $0x4] sm:$0xf]
    %v111 = vld [vmem:[%s0 + $0x8] sm:$0xf]
    %v112 = vld [vmem:[%s0 + $0xc] sm:$0xf]
    %v113 = vld [vmem:[%s0 + $0x10] sm:$0xf]
    %v114 = vld [vmem:[%s0 + $0x14] sm:$0xf]
    %v115 = vld [vmem:[%s0 + $0x18] sm:$0xf]
    %v116 = vld [vmem:[%s0 + $0x1c] sm:$0xf]
    %v117 = vld [vmem:[%s0 + $0x20] sm:$0xf]
    %v118 = vld [vmem:[%s0 + $0x24] sm:$0xf]
    %v119 = vld [vmem:[%s0 + $0x28] sm:$0xf]
    %v120 = vld [vmem:[%s0 + $0x2c] sm:$0xf]
    %v121 = vld [vmem:[%s0 + $0x30] sm:$0xf]
    %v122 = vld [vmem:[%s0 + $0x34] sm:$0xf]
    %v123 = vld [vmem:[%s0 + $0x38] sm:$0xf]
    %v124 = vld [vmem:[%s0 + $0x3c] sm:$0xf]
    %v125 = vld [vmem:[%s1] sm:$0xf]
    %v126 = vld [vmem:[%s1 + $0x4] sm:$0xf]
    %v127 = vld [vmem:[%s1 + $0x8] sm:$0xf]
    %v128 = vld [vmem:[%s1 + $0xc] sm:$0xf]
    %v129 = vld [vmem:[%s1 + $0x10] sm:$0xf]
    %v130 = vld [vmem:[%s1 + $0x14] sm:$0xf]
    %v131 = vld [vmem:[%s1 + $0x18] sm:$0xf]
    %v132 = vld [vmem:[%s1 + $0x1c] sm:$0xf]
    %v149 = vunpack.c.l.b16 %v109
    %v150 = vunpack.c.l.b16 %v110
    %v151 = vunpack.c.l.b16 %v111
    %v152 = vunpack.c.l.b16 %v112
    %v153 = vunpack.c.l.b16 %v113
    %v154 = vunpack.c.l.b16 %v114
    %v155 = vunpack.c.l.b16 %v115
    %v156 = vunpack.c.l.b16 %v116
    %v157 = vunpack.c.l.b16 %v117
    %v158 = vunpack.c.l.b16 %v118
    %v159 = vunpack.c.l.b16 %v119
    %v160 = vunpack.c.l.b16 %v120
    %v161 = vunpack.c.l.b16 %v121
    %v162 = vunpack.c.l.b16 %v122
    %v163 = vunpack.c.l.b16 %v123
    %v164 = vunpack.c.l.b16 %v124
    %v165 = vpack.c.b16 %v150, %v149
    %v166 = vpack.c.b16 %v152, %v151
    %v167 = vpack.c.b16 %v154, %v153
    %v168 = vpack.c.b16 %v156, %v155
    %v169 = vpack.c.b16 %v158, %v157
    %v170 = vpack.c.b16 %v160, %v159
    %v171 = vpack.c.b16 %v162, %v161
    %v172 = vpack.c.b16 %v164, %v163
    %v181 = vunpack.c.l.b16 %v125
    %v182 = vunpack.c.l.b16 %v126
    %v183 = vunpack.c.l.b16 %v127
    %v184 = vunpack.c.l.b16 %v128
    %v185 = vunpack.c.l.b16 %v129
    %v186 = vunpack.c.l.b16 %v130
    %v187 = vunpack.c.l.b16 %v131
    %v188 = vunpack.c.l.b16 %v132
    %v189 = vpack.c.b16 %v182, %v181
    %v190 = vpack.c.b16 %v184, %v183
    %v191 = vpack.c.b16 %v186, %v185
    %v192 = vpack.c.b16 %v188, %v187
    %vm197 = vcmask 523264
    %v199 = vsel %vm197, %v165, 0
    %v202 = vsel %vm197, %v166, 0
    %v205 = vsel %vm197, %v167, 0
    %v208 = vsel %vm197, %v168, 0
    %v211 = vsel %vm197, %v169, 0
    %v214 = vsel %vm197, %v170, 0
    %v217 = vsel %vm197, %v171, 0
    %v220 = vsel %vm197, %v172, 0
    %222 = vmatprep.subr.bf16.mxu0 0
    %223 = vmatpush1.bf16.msra.mxu0 0
    %224 = vmatprep.subr.bf16.mxu0 0
    %225 = vmatpush1.bf16.msra.mxu0 0
    %226 = vmatprep.subr.bf16.mxu0 0
    %227 = vmatpush1.bf16.msra.mxu0 0
    %228 = vmatprep.subr.bf16.mxu0 0
    %229 = vmatpush1.bf16.msra.mxu0 0
    %230 = vmatprep.subr.bf16.mxu0 0
    %231 = vmatpush1.bf16.msra.mxu0 %v192
    %232 = vmatprep.subr.bf16.mxu0 0
    %233 = vmatpush1.bf16.msra.mxu0 %v191
    %234 = vmatprep.subr.bf16.mxu0 0
    %235 = vmatpush1.bf16.msra.mxu0 %v190
    %236 = vmatprep.subr.bf16.mxu0 0
    %237 = vmatpush1.bf16.msra.mxu0 %v189
    %238 = vmatprep.subr.bf16.mxu0 0
    %239 = vmatpush2.bf16.msra.mxu0 0
    %240 = vmatprep.subr.bf16.mxu0 0
    %241 = vmatpush2.bf16.msra.mxu0 0
    %242 = vmatprep.subr.bf16.mxu0 0
    %243 = vmatpush2.bf16.msra.mxu0 0
    %244 = vmatprep.subr.bf16.mxu0 0
    %245 = vmatpush2.bf16.msra.mxu0 0
    %246 = vmatprep.subr.bf16.mxu0 0
    %247 = vmatpush2.bf16.msra.mxu0 0
    %248 = vmatprep.subr.bf16.mxu0 0
    %249 = vmatpush2.bf16.msra.mxu0 0
    %250 = vmatprep.subr.bf16.mxu0 0
    %251 = vmatpush2.bf16.msra.mxu0 0
    %252 = vmatprep.subr.bf16.mxu0 0
    %253 = vmatpush2.bf16.msra.mxu0 0
    %254 = vmatprep.mubr.bf16.mxu0 0
    %255 = vmatmul.mubr.bf16.gmra.mxu0 %v199
    %v256 = vpop.f32.mrf.mxu0
    %v257 = vadd.f32 0.0, %v256
    %v258 = vpop.f32.mrf.mxu0
    %v259 = vpop.f32.mrf.mxu0
    %v260 = vadd.f32 0.0, %v259
    %v261 = vpop.f32.mrf.mxu0
    %262 = vmatprep.mubr.bf16.mxu0 0
    %263 = vmatmul.mubr.bf16.gmra.mxu0 %v202
    %v264 = vpop.f32.mrf.mxu0
    %v265 = vadd.f32 0.0, %v264
    %v266 = vpop.f32.mrf.mxu0
    %v267 = vpop.f32.mrf.mxu0
    %v268 = vadd.f32 0.0, %v267
    %v269 = vpop.f32.mrf.mxu0
    %270 = vmatprep.mubr.bf16.mxu0 0
    %271 = vmatmul.mubr.bf16.gmra.mxu0 %v205
    %v272 = vpop.f32.mrf.mxu0
    %v273 = vadd.f32 0.0, %v272
    %v274 = vpop.f32.mrf.mxu0
    %v275 = vpop.f32.mrf.mxu0
    %v276 = vadd.f32 0.0, %v275
    %v277 = vpop.f32.mrf.mxu0
    %278 = vmatprep.mubr.bf16.mxu0 0
    %279 = vmatmul.mubr.bf16.gmra.mxu0 %v208
    %v280 = vpop.f32.mrf.mxu0
    %v281 = vadd.f32 0.0, %v280
    %v282 = vpop.f32.mrf.mxu0
    %v283 = vpop.f32.mrf.mxu0
    %v284 = vadd.f32 0.0, %v283
    %v285 = vpop.f32.mrf.mxu0
    %286 = vmatprep.mubr.bf16.mxu0 0
    %287 = vmatmul.mubr.bf16.gmra.mxu0 %v211
    %v288 = vpop.f32.mrf.mxu0
    %v289 = vadd.f32 0.0, %v288
    %v290 = vpop.f32.mrf.mxu0
    %v291 = vpop.f32.mrf.mxu0
    %v292 = vadd.f32 0.0, %v291
    %v293 = vpop.f32.mrf.mxu0
    %294 = vmatprep.mubr.bf16.mxu0 0
    %295 = vmatmul.mubr.bf16.gmra.mxu0 %v214
    %v296 = vpop.f32.mrf.mxu0
    %v297 = vadd.f32 0.0, %v296
    %v298 = vpop.f32.mrf.mxu0
    %v299 = vpop.f32.mrf.mxu0
    %v300 = vadd.f32 0.0, %v299
    %v301 = vpop.f32.mrf.mxu0
    %302 = vmatprep.mubr.bf16.mxu0 0
    %303 = vmatmul.mubr.bf16.gmra.mxu0 %v217
    %v304 = vpop.f32.mrf.mxu0
    %v305 = vadd.f32 0.0, %v304
    %v306 = vpop.f32.mrf.mxu0
    %v307 = vpop.f32.mrf.mxu0
    %v308 = vadd.f32 0.0, %v307
    %v309 = vpop.f32.mrf.mxu0
    %310 = vmatprep.mubr.bf16.mxu0 0
    %311 = vmatmul.mubr.bf16.gmra.mxu0 %v220
    %v312 = vpop.f32.mrf.mxu0
    %v313 = vadd.f32 0.0, %v312
    %v314 = vpop.f32.mrf.mxu0
    %v315 = vpop.f32.mrf.mxu0
    %v316 = vadd.f32 0.0, %v315
    %v317 = vpop.f32.mrf.mxu0
    %318 = vdwg.mxu0
    %v319 = vsel %vm73, %v257, 0.0
    %v320 = vsel %vm73, %v260, 0.0
    %v321 = vadd.f32 %v319, %v320
    %v322 = vsel %vm73, %v265, 0.0
    %v323 = vadd.f32 %v321, %v322
    %v324 = vsel %vm73, %v268, 0.0
    %v325 = vadd.f32 %v323, %v324
    %v326 = vsel %vm73, %v273, 0.0
    %v327 = vadd.f32 %v325, %v326
    %v328 = vsel %vm73, %v276, 0.0
    %v329 = vadd.f32 %v327, %v328
    %v330 = vsel %vm73, %v281, 0.0
    %v331 = vadd.f32 %v329, %v330
    %v332 = vsel %vm73, %v284, 0.0
    %v333 = vadd.f32 %v331, %v332
    %v334 = vsel %vm73, %v289, 0.0
    %v335 = vadd.f32 %v333, %v334
    %v336 = vsel %vm73, %v292, 0.0
    %v337 = vadd.f32 %v335, %v336
    %v338 = vsel %vm73, %v297, 0.0
    %v339 = vadd.f32 %v337, %v338
    %v340 = vsel %vm73, %v300, 0.0
    %v341 = vadd.f32 %v339, %v340
    %v342 = vsel %vm73, %v305, 0.0
    %v343 = vadd.f32 %v341, %v342
    %v344 = vsel %vm73, %v308, 0.0
    %v345 = vadd.f32 %v343, %v344
    %v346 = vsel %vm73, %v313, 0.0
    %v347 = vadd.f32 %v345, %v346
    %v348 = vsel %vm73, %v316, 0.0
    %v349 = vadd.f32 %v347, %v348
    %v350 = vrot.slane %v349, 4
    %v351 = vadd.f32 %v349, %v350
    %v352 = vrot.slane %v351, 2
    %v353 = vadd.f32 %v351, %v352
    %v354 = vrot.slane %v353, 1
    %v355 = vadd.f32 %v353, %v354
    %v356 = vmul.f32 %v257, %v257
    %v357 = vmul.f32 %v260, %v260
    %v358 = vmul.f32 %v265, %v265
    %v359 = vmul.f32 %v268, %v268
    %v360 = vmul.f32 %v273, %v273
    %v361 = vmul.f32 %v276, %v276
    %v362 = vmul.f32 %v281, %v281
    %v363 = vmul.f32 %v284, %v284
    %v364 = vmul.f32 %v289, %v289
    %v365 = vmul.f32 %v292, %v292
    %v366 = vmul.f32 %v297, %v297
    %v367 = vmul.f32 %v300, %v300
    %v368 = vmul.f32 %v305, %v305
    %v369 = vmul.f32 %v308, %v308
    %v370 = vmul.f32 %v313, %v313
    %v371 = vmul.f32 %v316, %v316
    %v372 = vsel %vm73, %v356, 0.0
    %v373 = vsel %vm73, %v357, 0.0
    %v374 = vadd.f32 %v372, %v373
    %v375 = vsel %vm73, %v358, 0.0
    %v376 = vadd.f32 %v374, %v375
    %v377 = vsel %vm73, %v359, 0.0
    %v378 = vadd.f32 %v376, %v377
    %v379 = vsel %vm73, %v360, 0.0
    %v380 = vadd.f32 %v378, %v379
    %v381 = vsel %vm73, %v361, 0.0
    %v382 = vadd.f32 %v380, %v381
    %v383 = vsel %vm73, %v362, 0.0
    %v384 = vadd.f32 %v382, %v383
    %v385 = vsel %vm73, %v363, 0.0
    %v386 = vadd.f32 %v384, %v385
    %v387 = vsel %vm73, %v364, 0.0
    %v388 = vadd.f32 %v386, %v387
    %v389 = vsel %vm73, %v365, 0.0
    %v390 = vadd.f32 %v388, %v389
    %v391 = vsel %vm73, %v366, 0.0
    %v392 = vadd.f32 %v390, %v391
    %v393 = vsel %vm73, %v367, 0.0
    %v394 = vadd.f32 %v392, %v393
    %v395 = vsel %vm73, %v368, 0.0
    %v396 = vadd.f32 %v394, %v395
    %v397 = vsel %vm73, %v369, 0.0
    %v398 = vadd.f32 %v396, %v397
    %v399 = vsel %vm73, %v370, 0.0
    %v400 = vadd.f32 %v398, %v399
    %v401 = vsel %vm73, %v371, 0.0
    %v402 = vadd.f32 %v400, %v401
    %v403 = vrot.slane %v402, 4
    %v404 = vadd.f32 %v402, %v403
    %v405 = vrot.slane %v404, 2
    %v406 = vadd.f32 %v404, %v405
    %v407 = vrot.slane %v406, 1
    %v408 = vadd.f32 %v406, %v407
    %v409 = vmul.f32 %v355, 0.0078125
    %v410 = vmul.f32 %v408, 0.0078125
    %v411 = vmul.f32 %v409, %v409
    %v412 = vsub.f32 %v410, %v411
    %v413 = vsub.f32 %v257, %v409
    %v414 = vsub.f32 %v260, %v409
    %v415 = vsub.f32 %v265, %v409
    %v416 = vsub.f32 %v268, %v409
    %v417 = vsub.f32 %v273, %v409
    %v418 = vsub.f32 %v276, %v409
    %v419 = vsub.f32 %v281, %v409
    %v420 = vsub.f32 %v284, %v409
    %v421 = vsub.f32 %v289, %v409
    %v422 = vsub.f32 %v292, %v409
    %v423 = vsub.f32 %v297, %v409
    %v424 = vsub.f32 %v300, %v409
    %v425 = vsub.f32 %v305, %v409
    %v426 = vsub.f32 %v308, %v409
    %v427 = vsub.f32 %v313, %v409
    %v428 = vsub.f32 %v316, %v409
    %v429 = vadd.f32 %v412, 1e-05
    %v430 = vrsqrt.pop %v429
    %v431 = vmul.f32 %v413, %v430
    %v432 = vmul.f32 %v414, %v430
    %v433 = vmul.f32 %v415, %v430
    %v434 = vmul.f32 %v416, %v430
    %v435 = vmul.f32 %v417, %v430
    %v436 = vmul.f32 %v418, %v430
    %v437 = vmul.f32 %v419, %v430
    %v438 = vmul.f32 %v420, %v430
    %v439 = vmul.f32 %v421, %v430
    %v440 = vmul.f32 %v422, %v430
    %v441 = vmul.f32 %v423, %v430
    %v442 = vmul.f32 %v424, %v430
    %v443 = vmul.f32 %v425, %v430
    %v444 = vmul.f32 %v426, %v430
    %v445 = vmul.f32 %v427, %v430
    %v446 = vmul.f32 %v428, %v430
    %v447 = vld [vmem:[%s2] sm:$0x1]
    %v449 = vlaneseq
    %v450 = vshrl.u32 %v449, 7
    %v451 = vsub.s32 0, %v450
    %v452 = vrot.slane %v447, %v451
    %v454 = vmul.f32 %v431, %v452
    %v455 = vmul.f32 %v432, %v452
    %v456 = vmul.f32 %v433, %v452
    %v457 = vmul.f32 %v434, %v452
    %v458 = vmul.f32 %v435, %v452
    %v459 = vmul.f32 %v436, %v452
    %v460 = vmul.f32 %v437, %v452
    %v461 = vmul.f32 %v438, %v452
    %v462 = vmul.f32 %v439, %v452
    %v463 = vmul.f32 %v440, %v452
    %v464 = vmul.f32 %v441, %v452
    %v465 = vmul.f32 %v442, %v452
    %v466 = vmul.f32 %v443, %v452
    %v467 = vmul.f32 %v444, %v452
    %v468 = vmul.f32 %v445, %v452
    %v469 = vmul.f32 %v446, %v452
    %v470 = vld [vmem:[%s3] sm:$0x1]
    %v472 = vlaneseq
    %v473 = vshrl.u32 %v472, 7
    %v474 = vsub.s32 0, %v473
    %v475 = vrot.slane %v470, %v474
    %v477 = vadd.f32 %v454, %v475
    %v478 = vadd.f32 %v455, %v475
    %v479 = vadd.f32 %v456, %v475
    %v480 = vadd.f32 %v457, %v475
    %v481 = vadd.f32 %v458, %v475
    %v482 = vadd.f32 %v459, %v475
    %v483 = vadd.f32 %v460, %v475
    %v484 = vadd.f32 %v461, %v475
    %v485 = vadd.f32 %v462, %v475
    %v486 = vadd.f32 %v463, %v475
    %v487 = vadd.f32 %v464, %v475
    %v488 = vadd.f32 %v465, %v475
    %v489 = vadd.f32 %v466, %v475
    %v490 = vadd.f32 %v467, %v475
    %v491 = vadd.f32 %v468, %v475
    %v492 = vadd.f32 %v469, %v475
    %v493 = vmax.f32 %v477, 0.0
    %v494 = vmax.f32 %v478, 0.0
    %v495 = vmax.f32 %v479, 0.0
    %v496 = vmax.f32 %v480, 0.0
    %v497 = vmax.f32 %v481, 0.0
    %v498 = vmax.f32 %v482, 0.0
    %v499 = vmax.f32 %v483, 0.0
    %v500 = vmax.f32 %v484, 0.0
    %v501 = vmax.f32 %v485, 0.0
    %v502 = vmax.f32 %v486, 0.0
    %v503 = vmax.f32 %v487, 0.0
    %v504 = vmax.f32 %v488, 0.0
    %v505 = vmax.f32 %v489, 0.0
    %v506 = vmax.f32 %v490, 0.0
    %v507 = vmax.f32 %v491, 0.0
    %v508 = vmax.f32 %v492, 0.0
    %509 = vst.msk [vmem:[#allocation2 + $0x18] sm:$0xff] %vm73, %v493
    %510 = vst.msk [vmem:[#allocation2 + $0x20] sm:$0xff] %vm73, %v494
    %511 = vst.msk [vmem:[#allocation2 + $0x28] sm:$0xff] %vm73, %v495
    %512 = vst.msk [vmem:[#allocation2 + $0x30] sm:$0xff] %vm73, %v496
    %513 = vst.msk [vmem:[#allocation2 + $0x38] sm:$0xff] %vm73, %v497
    %514 = vst.msk [vmem:[#allocation2 + $0x40] sm:$0xff] %vm73, %v498
    %515 = vst.msk [vmem:[#allocation2 + $0x48] sm:$0xff] %vm73, %v499
    %516 = vst.msk [vmem:[#allocation2 + $0x50] sm:$0xff] %vm73, %v500
    %517 = vst.msk [vmem:[#allocation2 + $0x58] sm:$0xff] %vm73, %v501
    %518 = vst.msk [vmem:[#allocation2 + $0x60] sm:$0xff] %vm73, %v502
    %519 = vst.msk [vmem:[#allocation2 + $0x68] sm:$0xff] %vm73, %v503
    %520 = vst.msk [vmem:[#allocation2 + $0x70] sm:$0xff] %vm73, %v504
    %521 = vst.msk [vmem:[#allocation2 + $0x78] sm:$0xff] %vm73, %v505
    %522 = vst.msk [vmem:[#allocation2 + $0x80] sm:$0xff] %vm73, %v506
    %523 = vst.msk [vmem:[#allocation2 + $0x88] sm:$0xff] %vm73, %v507
    %524 = vst.msk [vmem:[#allocation2 + $0x90] sm:$0xff] %vm73, %v508
    %v525 = vld [vmem:[#allocation2 + $0xf] sm:$0xff]
    %v526 = vld [vmem:[#allocation2 + $0x17] sm:$0xff]
    %v527 = vld [vmem:[#allocation2 + $0x1f] sm:$0xff]
    %v528 = vld [vmem:[#allocation2 + $0x27] sm:$0xff]
    %v529 = vld [vmem:[#allocation2 + $0x2f] sm:$0xff]
    %v530 = vld [vmem:[#allocation2 + $0x37] sm:$0xff]
    %v531 = vld [vmem:[#allocation2 + $0x3f] sm:$0xff]
    %v532 = vld [vmem:[#allocation2 + $0x47] sm:$0xff]
    %v533 = vld [vmem:[#allocation2 + $0x4f] sm:$0xff]
    %v534 = vld [vmem:[#allocation2 + $0x57] sm:$0xff]
    %v535 = vld [vmem:[#allocation2 + $0x5f] sm:$0xff]
    %v536 = vld [vmem:[#allocation2 + $0x67] sm:$0xff]
    %v537 = vld [vmem:[#allocation2 + $0x6f] sm:$0xff]
    %v538 = vld [vmem:[#allocation2 + $0x77] sm:$0xff]
    %v539 = vld [vmem:[#allocation2 + $0x7f] sm:$0xff]
    %v540 = vld [vmem:[#allocation2 + $0x87] sm:$0xff]
    %v541 = vld [vmem:[#allocation2 + $0x10] sm:$0xff]
    %v542 = vld [vmem:[#allocation2 + $0x18] sm:$0xff]
    %v543 = vld [vmem:[#allocation2 + $0x20] sm:$0xff]
    %v544 = vld [vmem:[#allocation2 + $0x28] sm:$0xff]
    %v545 = vld [vmem:[#allocation2 + $0x30] sm:$0xff]
    %v546 = vld [vmem:[#allocation2 + $0x38] sm:$0xff]
    %v547 = vld [vmem:[#allocation2 + $0x40] sm:$0xff]
    %v548 = vld [vmem:[#allocation2 + $0x48] sm:$0xff]
    %v549 = vld [vmem:[#allocation2 + $0x50] sm:$0xff]
    %v550 = vld [vmem:[#allocation2 + $0x58] sm:$0xff]
    %v551 = vld [vmem:[#allocation2 + $0x60] sm:$0xff]
    %v552 = vld [vmem:[#allocation2 + $0x68] sm:$0xff]
    %v553 = vld [vmem:[#allocation2 + $0x70] sm:$0xff]
    %v554 = vld [vmem:[#allocation2 + $0x78] sm:$0xff]
    %v555 = vld [vmem:[#allocation2 + $0x80] sm:$0xff]
    %v556 = vld [vmem:[#allocation2 + $0x88] sm:$0xff]
    %v557 = vld [vmem:[#allocation2 + $0x11] sm:$0xff]
    %v558 = vld [vmem:[#allocation2 + $0x19] sm:$0xff]
    %v559 = vld [vmem:[#allocation2 + $0x21] sm:$0xff]
    %v560 = vld [vmem:[#allocation2 + $0x29] sm:$0xff]
    %v561 = vld [vmem:[#allocation2 + $0x31] sm:$0xff]
    %v562 = vld [vmem:[#allocation2 + $0x39] sm:$0xff]
    %v563 = vld [vmem:[#allocation2 + $0x41] sm:$0xff]
    %v564 = vld [vmem:[#allocation2 + $0x49] sm:$0xff]
    %v565 = vld [vmem:[#allocation2 + $0x51] sm:$0xff]
    %v566 = vld [vmem:[#allocation2 + $0x59] sm:$0xff]
    %v567 = vld [vmem:[#allocation2 + $0x61] sm:$0xff]
    %v568 = vld [vmem:[#allocation2 + $0x69] sm:$0xff]
    %v569 = vld [vmem:[#allocation2 + $0x71] sm:$0xff]
    %v570 = vld [vmem:[#allocation2 + $0x79] sm:$0xff]
    %v571 = vld [vmem:[#allocation2 + $0x81] sm:$0xff]
    %v572 = vld [vmem:[#allocation2 + $0x89] sm:$0xff]
    %v573 = vld [vmem:[#allocation2 + $0x12] sm:$0xff]
    %v574 = vld [vmem:[#allocation2 + $0x1a] sm:$0xff]
    %v575 = vld [vmem:[#allocation2 + $0x22] sm:$0xff]
    %v576 = vld [vmem:[#allocation2 + $0x2a] sm:$0xff]
    %v577 = vld [vmem:[#allocation2 + $0x32] sm:$0xff]
    %v578 = vld [vmem:[#allocation2 + $0x3a] sm:$0xff]
    %v579 = vld [vmem:[#allocation2 + $0x42] sm:$0xff]
    %v580 = vld [vmem:[#allocation2 + $0x4a] sm:$0xff]
    %v581 = vld [vmem:[#allocation2 + $0x52] sm:$0xff]
    %v582 = vld [vmem:[#allocation2 + $0x5a] sm:$0xff]
    %v583 = vld [vmem:[#allocation2 + $0x62] sm:$0xff]
    %v584 = vld [vmem:[#allocation2 + $0x6a] sm:$0xff]
    %v585 = vld [vmem:[#allocation2 + $0x72] sm:$0xff]
    %v586 = vld [vmem:[#allocation2 + $0x7a] sm:$0xff]
    %v587 = vld [vmem:[#allocation2 + $0x82] sm:$0xff]
    %v588 = vld [vmem:[#allocation2 + $0x8a] sm:$0xff]
    %v589 = vld [vmem:[#allocation2 + $0x8f] sm:$0xff]
    %v590 = vld [vmem:[#allocation2 + $0x90] sm:$0xff]
    %v591 = vld [vmem:[#allocation2 + $0x91] sm:$0xff]
    %v592 = vld [vmem:[#allocation2 + $0x92] sm:$0xff]
    %v593 = vld [vmem:[#allocation2 + $0x97] sm:$0xff]
    %v594 = vld [vmem:[#allocation2 + $0x98] sm:$0xff]
    %v595 = vld [vmem:[#allocation2 + $0x99] sm:$0xff]
    %v596 = vld [vmem:[#allocation2 + $0x9a] sm:$0xff]
    %v597 = vld [vmem:[#allocation2 + $0x9f] sm:$0xff]
    %v598 = vld [vmem:[#allocation2 + $0xa0] sm:$0xff]
    %v599 = vld [vmem:[#allocation2 + $0xa1] sm:$0xff]
    %v600 = vld [vmem:[#allocation2 + $0xa2] sm:$0xff]
    %617 = vrot.lane.b32.xlu0 %v541, 16
    %v618 = vpop.permute.xlu0 %617
    %619 = vrot.lane.b32.xlu0 %v542, 16
    %v620 = vpop.permute.xlu0 %619
    %621 = vrot.lane.b32.xlu0 %v543, 16
    %v622 = vpop.permute.xlu0 %621
    %623 = vrot.lane.b32.xlu0 %v544, 16
    %v624 = vpop.permute.xlu0 %623
    %625 = vrot.lane.b32.xlu0 %v545, 16
    %v626 = vpop.permute.xlu0 %625
    %627 = vrot.lane.b32.xlu0 %v546, 16
    %v628 = vpop.permute.xlu0 %627
    %629 = vrot.lane.b32.xlu0 %v547, 16
    %v630 = vpop.permute.xlu0 %629
    %631 = vrot.lane.b32.xlu0 %v548, 16
    %v632 = vpop.permute.xlu0 %631
    %633 = vrot.lane.b32.xlu0 %v549, 16
    %v634 = vpop.permute.xlu0 %633
    %635 = vrot.lane.b32.xlu0 %v550, 16
    %v636 = vpop.permute.xlu0 %635
    %637 = vrot.lane.b32.xlu0 %v551, 16
    %v638 = vpop.permute.xlu0 %637
    %639 = vrot.lane.b32.xlu0 %v552, 16
    %v640 = vpop.permute.xlu0 %639
    %641 = vrot.lane.b32.xlu0 %v553, 16
    %v642 = vpop.permute.xlu0 %641
    %643 = vrot.lane.b32.xlu0 %v554, 16
    %v644 = vpop.permute.xlu0 %643
    %645 = vrot.lane.b32.xlu0 %v555, 16
    %v646 = vpop.permute.xlu0 %645
    %647 = vrot.lane.b32.xlu0 %v556, 16
    %v648 = vpop.permute.xlu0 %647
    %681 = vrot.lane.b32.xlu0 %v557, 32
    %v682 = vpop.permute.xlu0 %681
    %683 = vrot.lane.b32.xlu0 %v558, 32
    %v684 = vpop.permute.xlu0 %683
    %685 = vrot.lane.b32.xlu0 %v559, 32
    %v686 = vpop.permute.xlu0 %685
    %687 = vrot.lane.b32.xlu0 %v560, 32
    %v688 = vpop.permute.xlu0 %687
    %689 = vrot.lane.b32.xlu0 %v561, 32
    %v690 = vpop.permute.xlu0 %689
    %691 = vrot.lane.b32.xlu0 %v562, 32
    %v692 = vpop.permute.xlu0 %691
    %693 = vrot.lane.b32.xlu0 %v563, 32
    %v694 = vpop.permute.xlu0 %693
    %695 = vrot.lane.b32.xlu0 %v564, 32
    %v696 = vpop.permute.xlu0 %695
    %697 = vrot.lane.b32.xlu0 %v565, 32
    %v698 = vpop.permute.xlu0 %697
    %699 = vrot.lane.b32.xlu0 %v566, 32
    %v700 = vpop.permute.xlu0 %699
    %701 = vrot.lane.b32.xlu0 %v567, 32
    %v702 = vpop.permute.xlu0 %701
    %703 = vrot.lane.b32.xlu0 %v568, 32
    %v704 = vpop.permute.xlu0 %703
    %705 = vrot.lane.b32.xlu0 %v569, 32
    %v706 = vpop.permute.xlu0 %705
    %707 = vrot.lane.b32.xlu0 %v570, 32
    %v708 = vpop.permute.xlu0 %707
    %709 = vrot.lane.b32.xlu0 %v571, 32
    %v710 = vpop.permute.xlu0 %709
    %711 = vrot.lane.b32.xlu0 %v572, 32
    %v712 = vpop.permute.xlu0 %711
    %745 = vrot.lane.b32.xlu0 %v573, 48
    %v746 = vpop.permute.xlu0 %745
    %747 = vrot.lane.b32.xlu0 %v574, 48
    %v748 = vpop.permute.xlu0 %747
    %749 = vrot.lane.b32.xlu0 %v575, 48
    %v750 = vpop.permute.xlu0 %749
    %751 = vrot.lane.b32.xlu0 %v576, 48
    %v752 = vpop.permute.xlu0 %751
    %753 = vrot.lane.b32.xlu0 %v577, 48
    %v754 = vpop.permute.xlu0 %753
    %755 = vrot.lane.b32.xlu0 %v578, 48
    %v756 = vpop.permute.xlu0 %755
    %757 = vrot.lane.b32.xlu0 %v579, 48
    %v758 = vpop.permute.xlu0 %757
    %759 = vrot.lane.b32.xlu0 %v580, 48
    %v760 = vpop.permute.xlu0 %759
    %761 = vrot.lane.b32.xlu0 %v581, 48
    %v762 = vpop.permute.xlu0 %761
    %763 = vrot.lane.b32.xlu0 %v582, 48
    %v764 = vpop.permute.xlu0 %763
    %765 = vrot.lane.b32.xlu0 %v583, 48
    %v766 = vpop.permute.xlu0 %765
    %767 = vrot.lane.b32.xlu0 %v584, 48
    %v768 = vpop.permute.xlu0 %767
    %769 = vrot.lane.b32.xlu0 %v585, 48
    %v770 = vpop.permute.xlu0 %769
    %771 = vrot.lane.b32.xlu0 %v586, 48
    %v772 = vpop.permute.xlu0 %771
    %773 = vrot.lane.b32.xlu0 %v587, 48
    %v774 = vpop.permute.xlu0 %773
    %775 = vrot.lane.b32.xlu0 %v588, 48
    %v776 = vpop.permute.xlu0 %775
    %809 = vrot.lane.b32.xlu0 %v526, 64
    %v810 = vpop.permute.xlu0 %809
    %811 = vrot.lane.b32.xlu0 %v527, 64
    %v812 = vpop.permute.xlu0 %811
    %813 = vrot.lane.b32.xlu0 %v528, 64
    %v814 = vpop.permute.xlu0 %813
    %815 = vrot.lane.b32.xlu0 %v529, 64
    %v816 = vpop.permute.xlu0 %815
    %817 = vrot.lane.b32.xlu0 %v530, 64
    %v818 = vpop.permute.xlu0 %817
    %819 = vrot.lane.b32.xlu0 %v531, 64
    %v820 = vpop.permute.xlu0 %819
    %821 = vrot.lane.b32.xlu0 %v532, 64
    %v822 = vpop.permute.xlu0 %821
    %823 = vrot.lane.b32.xlu0 %v533, 64
    %v824 = vpop.permute.xlu0 %823
    %825 = vrot.lane.b32.xlu0 %v534, 64
    %v826 = vpop.permute.xlu0 %825
    %827 = vrot.lane.b32.xlu0 %v535, 64
    %v828 = vpop.permute.xlu0 %827
    %829 = vrot.lane.b32.xlu0 %v536, 64
    %v830 = vpop.permute.xlu0 %829
    %831 = vrot.lane.b32.xlu0 %v537, 64
    %v832 = vpop.permute.xlu0 %831
    %833 = vrot.lane.b32.xlu0 %v538, 64
    %v834 = vpop.permute.xlu0 %833
    %835 = vrot.lane.b32.xlu0 %v539, 64
    %v836 = vpop.permute.xlu0 %835
    %837 = vrot.lane.b32.xlu0 %v540, 64
    %v838 = vpop.permute.xlu0 %837
    %839 = vrot.lane.b32.xlu0 %v589, 64
    %v840 = vpop.permute.xlu0 %839
    %858 = vrot.lane.b32.xlu0 %v542, 80
    %v859 = vpop.permute.xlu0 %858
    %860 = vrot.lane.b32.xlu0 %v543, 80
    %v861 = vpop.permute.xlu0 %860
    %862 = vrot.lane.b32.xlu0 %v544, 80
    %v863 = vpop.permute.xlu0 %862
    %864 = vrot.lane.b32.xlu0 %v545, 80
    %v865 = vpop.permute.xlu0 %864
    %866 = vrot.lane.b32.xlu0 %v546, 80
    %v867 = vpop.permute.xlu0 %866
    %868 = vrot.lane.b32.xlu0 %v547, 80
    %v869 = vpop.permute.xlu0 %868
    %870 = vrot.lane.b32.xlu0 %v548, 80
    %v871 = vpop.permute.xlu0 %870
    %872 = vrot.lane.b32.xlu0 %v549, 80
    %v873 = vpop.permute.xlu0 %872
    %874 = vrot.lane.b32.xlu0 %v550, 80
    %v875 = vpop.permute.xlu0 %874
    %876 = vrot.lane.b32.xlu0 %v551, 80
    %v877 = vpop.permute.xlu0 %876
    %878 = vrot.lane.b32.xlu0 %v552, 80
    %v879 = vpop.permute.xlu0 %878
    %880 = vrot.lane.b32.xlu0 %v553, 80
    %v881 = vpop.permute.xlu0 %880
    %882 = vrot.lane.b32.xlu0 %v554, 80
    %v883 = vpop.permute.xlu0 %882
    %884 = vrot.lane.b32.xlu0 %v555, 80
    %v885 = vpop.permute.xlu0 %884
    %886 = vrot.lane.b32.xlu0 %v556, 80
    %v887 = vpop.permute.xlu0 %886
    %888 = vrot.lane.b32.xlu0 %v590, 80
    %v889 = vpop.permute.xlu0 %888
    %907 = vrot.lane.b32.xlu0 %v558, 96
    %v908 = vpop.permute.xlu0 %907
    %909 = vrot.lane.b32.xlu0 %v559, 96
    %v910 = vpop.permute.xlu0 %909
    %911 = vrot.lane.b32.xlu0 %v560, 96
    %v912 = vpop.permute.xlu0 %911
    %913 = vrot.lane.b32.xlu0 %v561, 96
    %v914 = vpop.permute.xlu0 %913
    %915 = vrot.lane.b32.xlu0 %v562, 96
    %v916 = vpop.permute.xlu0 %915
    %917 = vrot.lane.b32.xlu0 %v563, 96
    %v918 = vpop.permute.xlu0 %917
    %919 = vrot.lane.b32.xlu0 %v564, 96
    %v920 = vpop.permute.xlu0 %919
    %921 = vrot.lane.b32.xlu0 %v565, 96
    %v922 = vpop.permute.xlu0 %921
    %923 = vrot.lane.b32.xlu0 %v566, 96
    %v924 = vpop.permute.xlu0 %923
    %925 = vrot.lane.b32.xlu0 %v567, 96
    %v926 = vpop.permute.xlu0 %925
    %927 = vrot.lane.b32.xlu0 %v568, 96
    %v928 = vpop.permute.xlu0 %927
    %929 = vrot.lane.b32.xlu0 %v569, 96
    %v930 = vpop.permute.xlu0 %929
    %931 = vrot.lane.b32.xlu0 %v570, 96
    %v932 = vpop.permute.xlu0 %931
    %933 = vrot.lane.b32.xlu0 %v571, 96
    %v934 = vpop.permute.xlu0 %933
    %935 = vrot.lane.b32.xlu0 %v572, 96
    %v936 = vpop.permute.xlu0 %935
    %937 = vrot.lane.b32.xlu0 %v591, 96
    %v938 = vpop.permute.xlu0 %937
    %956 = vrot.lane.b32.xlu0 %v574, 112
    %v957 = vpop.permute.xlu0 %956
    %958 = vrot.lane.b32.xlu0 %v575, 112
    %v959 = vpop.permute.xlu0 %958
    %960 = vrot.lane.b32.xlu0 %v576, 112
    %v961 = vpop.permute.xlu0 %960
    %962 = vrot.lane.b32.xlu0 %v577, 112
    %v963 = vpop.permute.xlu0 %962
    %964 = vrot.lane.b32.xlu0 %v578, 112
    %v965 = vpop.permute.xlu0 %964
    %966 = vrot.lane.b32.xlu0 %v579, 112
    %v967 = vpop.permute.xlu0 %966
    %968 = vrot.lane.b32.xlu0 %v580, 112
    %v969 = vpop.permute.xlu0 %968
    %970 = vrot.lane.b32.xlu0 %v581, 112
    %v971 = vpop.permute.xlu0 %970
    %972 = vrot.lane.b32.xlu0 %v582, 112
    %v973 = vpop.permute.xlu0 %972
    %974 = vrot.lane.b32.xlu0 %v583, 112
    %v975 = vpop.permute.xlu0 %974
    %976 = vrot.lane.b32.xlu0 %v584, 112
    %v977 = vpop.permute.xlu0 %976
    %978 = vrot.lane.b32.xlu0 %v585, 112
    %v979 = vpop.permute.xlu0 %978
    %980 = vrot.lane.b32.xlu0 %v586, 112
    %v981 = vpop.permute.xlu0 %980
    %982 = vrot.lane.b32.xlu0 %v587, 112
    %v983 = vpop.permute.xlu0 %982
    %984 = vrot.lane.b32.xlu0 %v588, 112
    %v985 = vpop.permute.xlu0 %984
    %986 = vrot.lane.b32.xlu0 %v592, 112
    %v987 = vpop.permute.xlu0 %986
    %1005 = vrot.lane.b32.xlu0 %v590, 16
    %v1006 = vpop.permute.xlu0 %1005
    %1007 = vrot.lane.b32.xlu0 %v594, 16
    %v1008 = vpop.permute.xlu0 %1007
    %1012 = vrot.lane.b32.xlu0 %v591, 32
    %v1013 = vpop.permute.xlu0 %1012
    %1014 = vrot.lane.b32.xlu0 %v595, 32
    %v1015 = vpop.permute.xlu0 %1014
    %1019 = vrot.lane.b32.xlu0 %v592, 48
    %v1020 = vpop.permute.xlu0 %1019
    %1021 = vrot.lane.b32.xlu0 %v596, 48
    %v1022 = vpop.permute.xlu0 %1021
    %1027 = vrot.lane.b32.xlu0 %v593, 64
    %v1028 = vpop.permute.xlu0 %1027
    %1029 = vrot.lane.b32.xlu0 %v597, 64
    %v1030 = vpop.permute.xlu0 %1029
    %1034 = vrot.lane.b32.xlu0 %v594, 80
    %v1035 = vpop.permute.xlu0 %1034
    %1036 = vrot.lane.b32.xlu0 %v598, 80
    %v1037 = vpop.permute.xlu0 %1036
    %1041 = vrot.lane.b32.xlu0 %v595, 96
    %v1042 = vpop.permute.xlu0 %1041
    %1043 = vrot.lane.b32.xlu0 %v599, 96
    %v1044 = vpop.permute.xlu0 %1043
    %1048 = vrot.lane.b32.xlu0 %v596, 112
    %v1049 = vpop.permute.xlu0 %1048
    %1050 = vrot.lane.b32.xlu0 %v600, 112
    %v1051 = vpop.permute.xlu0 %1050
    %v1054 = vsel %vm73, %v525, %v618
    %v1055 = vsel %vm73, %v526, %v620
    %v1056 = vsel %vm73, %v527, %v622
    %v1057 = vsel %vm73, %v528, %v624
    %v1058 = vsel %vm73, %v529, %v626
    %v1059 = vsel %vm73, %v530, %v628
    %v1060 = vsel %vm73, %v531, %v630
    %v1061 = vsel %vm73, %v532, %v632
    %v1062 = vsel %vm73, %v533, %v634
    %v1063 = vsel %vm73, %v534, %v636
    %v1064 = vsel %vm73, %v535, %v638
    %v1065 = vsel %vm73, %v536, %v640
    %v1066 = vsel %vm73, %v537, %v642
    %v1067 = vsel %vm73, %v538, %v644
    %v1068 = vsel %vm73, %v539, %v646
    %v1069 = vsel %vm73, %v540, %v648
    %v1070 = vsel %vm96, %v1054, %v682
    %v1071 = vsel %vm96, %v1055, %v684
    %v1072 = vsel %vm96, %v1056, %v686
    %v1073 = vsel %vm96, %v1057, %v688
    %v1074 = vsel %vm96, %v1058, %v690
    %v1075 = vsel %vm96, %v1059, %v692
    %v1076 = vsel %vm96, %v1060, %v694
    %v1077 = vsel %vm96, %v1061, %v696
    %v1078 = vsel %vm96, %v1062, %v698
    %v1079 = vsel %vm96, %v1063, %v700
    %v1080 = vsel %vm96, %v1064, %v702
    %v1081 = vsel %vm96, %v1065, %v704
    %v1082 = vsel %vm96, %v1066, %v706
    %v1083 = vsel %vm96, %v1067, %v708
    %v1084 = vsel %vm96, %v1068, %v710
    %v1085 = vsel %vm96, %v1069, %v712
    %vm1086 = vcmask 392192
    %v1087 = vsel %vm1086, %v1070, %v746
    %v1088 = vsel %vm1086, %v1071, %v748
    %v1089 = vsel %vm1086, %v1072, %v750
    %v1090 = vsel %vm1086, %v1073, %v752
    %v1091 = vsel %vm1086, %v1074, %v754
    %v1092 = vsel %vm1086, %v1075, %v756
    %v1093 = vsel %vm1086, %v1076, %v758
    %v1094 = vsel %vm1086, %v1077, %v760
    %v1095 = vsel %vm1086, %v1078, %v762
    %v1096 = vsel %vm1086, %v1079, %v764
    %v1097 = vsel %vm1086, %v1080, %v766
    %v1098 = vsel %vm1086, %v1081, %v768
    %v1099 = vsel %vm1086, %v1082, %v770
    %v1100 = vsel %vm1086, %v1083, %v772
    %v1101 = vsel %vm1086, %v1084, %v774
    %v1102 = vsel %vm1086, %v1085, %v776
    %v1103 = vsel %vm197, %v1087, %v810
    %v1104 = vsel %vm197, %v1088, %v812
    %v1105 = vsel %vm197, %v1089, %v814
    %v1106 = vsel %vm197, %v1090, %v816
    %v1107 = vsel %vm197, %v1091, %v818
    %v1108 = vsel %vm197, %v1092, %v820
    %v1109 = vsel %vm197, %v1093, %v822
    %v1110 = vsel %vm197, %v1094, %v824
    %v1111 = vsel %vm197, %v1095, %v826
    %v1112 = vsel %vm197, %v1096, %v828
    %v1113 = vsel %vm197, %v1097, %v830
    %v1114 = vsel %vm197, %v1098, %v832
    %v1115 = vsel %vm197, %v1099, %v834
    %v1116 = vsel %vm197, %v1100, %v836
    %v1117 = vsel %vm197, %v1101, %v838
    %v1118 = vsel %vm197, %v1102, %v840
    %vm1119 = vcmask 654336
    %v1120 = vsel %vm1119, %v1103, %v859
    %v1121 = vsel %vm1119, %v1104, %v861
    %v1122 = vsel %vm1119, %v1105, %v863
    %v1123 = vsel %vm1119, %v1106, %v865
    %v1124 = vsel %vm1119, %v1107, %v867
    %v1125 = vsel %vm1119, %v1108, %v869
    %v1126 = vsel %vm1119, %v1109, %v871
    %v1127 = vsel %vm1119, %v1110, %v873
    %v1128 = vsel %vm1119, %v1111, %v875
    %v1129 = vsel %vm1119, %v1112, %v877
    %v1130 = vsel %vm1119, %v1113, %v879
    %v1131 = vsel %vm1119, %v1114, %v881
    %v1132 = vsel %vm1119, %v1115, %v883
    %v1133 = vsel %vm1119, %v1116, %v885
    %v1134 = vsel %vm1119, %v1117, %v887
    %v1135 = vsel %vm1119, %v1118, %v889
    %vm1136 = vcmask 785408
    %v1137 = vsel %vm1136, %v1120, %v908
    %v1138 = vsel %vm1136, %v1121, %v910
    %v1139 = vsel %vm1136, %v1122, %v912
    %v1140 = vsel %vm1136, %v1123, %v914
    %v1141 = vsel %vm1136, %v1124, %v916
    %v1142 = vsel %vm1136, %v1125, %v918
    %v1143 = vsel %vm1136, %v1126, %v920
    %v1144 = vsel %vm1136, %v1127, %v922
    %v1145 = vsel %vm1136, %v1128, %v924
    %v1146 = vsel %vm1136, %v1129, %v926
    %v1147 = vsel %vm1136, %v1130, %v928
    %v1148 = vsel %vm1136, %v1131, %v930
    %v1149 = vsel %vm1136, %v1132, %v932
    %v1150 = vsel %vm1136, %v1133, %v934
    %v1151 = vsel %vm1136, %v1134, %v936
    %v1152 = vsel %vm1136, %v1135, %v938
    %vm1153 = vcmask 916480
    %v1154 = vsel %vm1153, %v1137, %v957
    %v1155 = vsel %vm1153, %v1138, %v959
    %v1156 = vsel %vm1153, %v1139, %v961
    %v1157 = vsel %vm1153, %v1140, %v963
    %v1158 = vsel %vm1153, %v1141, %v965
    %v1159 = vsel %vm1153, %v1142, %v967
    %v1160 = vsel %vm1153, %v1143, %v969
    %v1161 = vsel %vm1153, %v1144, %v971
    %v1162 = vsel %vm1153, %v1145, %v973
    %v1163 = vsel %vm1153, %v1146, %v975
    %v1164 = vsel %vm1153, %v1147, %v977
    %v1165 = vsel %vm1153, %v1148, %v979
    %v1166 = vsel %vm1153, %v1149, %v981
    %v1167 = vsel %vm1153, %v1150, %v983
    %v1168 = vsel %vm1153, %v1151, %v985
    %v1169 = vsel %vm1153, %v1152, %v987
    %v1170 = vsel %vm73, %v589, %v1006
    %v1171 = vsel %vm73, %v593, %v1008
    %v1172 = vsel %vm96, %v1170, %v1013
    %v1173 = vsel %vm96, %v1171, %v1015
    %v1174 = vsel %vm1086, %v1172, %v1020
    %v1175 = vsel %vm1086, %v1173, %v1022
    %v1176 = vsel %vm197, %v1174, %v1028
    %v1177 = vsel %vm197, %v1175, %v1030
    %v1178 = vsel %vm1119, %v1176, %v1035
    %v1179 = vsel %vm1119, %v1177, %v1037
    %v1180 = vsel %vm1136, %v1178, %v1042
    %v1181 = vsel %vm1136, %v1179, %v1044
    %v1182 = vsel %vm1153, %v1180, %v1049
    %v1183 = vsel %vm1153, %v1181, %v1051
    %v1184 = vld [vmem:[%s4] sm:$0xf]
    %v1185 = vld [vmem:[%s4 + $0x4] sm:$0xf]
    %v1186 = vld [vmem:[%s4 + $0x8] sm:$0xf]
    %v1187 = vld [vmem:[%s4 + $0xc] sm:$0xf]
    %v1188 = vpack.c.bf16 %v1155, %v1154
    %v1189 = vpack.c.bf16 %v1157, %v1156
    %v1190 = vpack.c.bf16 %v1159, %v1158
    %v1191 = vpack.c.bf16 %v1161, %v1160
    %v1192 = vpack.c.bf16 %v1163, %v1162
    %v1193 = vpack.c.bf16 %v1165, %v1164
    %v1194 = vpack.c.bf16 %v1167, %v1166
    %v1195 = vpack.c.bf16 %v1169, %v1168
    %v1196 = vpack.c.bf16 %v1183, %v1182
    %v1201 = vunpack.c.l.b16 %v1184
    %v1202 = vunpack.c.l.b16 %v1185
    %v1203 = vunpack.c.l.b16 %v1186
    %v1204 = vunpack.c.l.b16 %v1187
    %v1205 = vpack.c.b16 %v1202, %v1201
    %v1206 = vpack.c.b16 %v1204, %v1203
    %1209 = vmatprep.subr.bf16.mxu0 %v1196
    %1210 = vmatpush1.bf16.msra.mxu0 %v1195
    %1211 = vmatprep.subr.bf16.mxu0 %v1195
    %1212 = vmatpush1.bf16.msra.mxu0 %v1194
    %1213 = vmatprep.subr.bf16.mxu0 %v1194
    %1214 = vmatpush1.bf16.msra.mxu0 %v1193
    %1215 = vmatprep.subr.bf16.mxu0 %v1193
    %1216 = vmatpush1.bf16.msra.mxu0 %v1192
    %1217 = vmatprep.subr.bf16.mxu0 %v1192
    %1218 = vmatpush1.bf16.msra.mxu0 %v1191
    %1219 = vmatprep.subr.bf16.mxu0 %v1191
    %1220 = vmatpush1.bf16.msra.mxu0 %v1190
    %1221 = vmatprep.subr.bf16.mxu0 %v1190
    %1222 = vmatpush1.bf16.msra.mxu0 %v1189
    %1223 = vmatprep.subr.bf16.mxu0 %v1189
    %1224 = vmatpush1.bf16.msra.mxu0 %v1188
    %1225 = vmatprep.subr.bf16.mxu0 0
    %1226 = vmatpush2.bf16.msra.mxu0 0
    %1227 = vmatprep.subr.bf16.mxu0 0
    %1228 = vmatpush2.bf16.msra.mxu0 0
    %1229 = vmatprep.subr.bf16.mxu0 0
    %1230 = vmatpush2.bf16.msra.mxu0 0
    %1231 = vmatprep.subr.bf16.mxu0 0
    %1232 = vmatpush2.bf16.msra.mxu0 0
    %1233 = vmatprep.subr.bf16.mxu0 0
    %1234 = vmatpush2.bf16.msra.mxu0 0
    %1235 = vmatprep.subr.bf16.mxu0 0
    %1236 = vmatpush2.bf16.msra.mxu0 0
    %1237 = vmatprep.subr.bf16.mxu0 0
    %1238 = vmatpush2.bf16.msra.mxu0 0
    %1239 = vmatprep.subr.bf16.mxu0 0
    %1240 = vmatpush2.bf16.msra.mxu0 0
    %1241 = vmatprep.mubr.bf16.mxu0 0
    %1242 = vmatmul.mubr.bf16.gmra.mxu0 %v1205
    %v1243 = vpop.f32.mrf.mxu0
    %v1244 = vadd.f32 0.0, %v1243
    %v1245 = vpop.f32.mrf.mxu0
    %v1246 = vadd.f32 0.0, %v1245
    %v1247 = vpop.f32.mrf.mxu0
    %v1248 = vadd.f32 0.0, %v1247
    %v1249 = vpop.f32.mrf.mxu0
    %v1250 = vadd.f32 0.0, %v1249
    %1251 = vmatprep.mubr.bf16.mxu0 0
    %1252 = vmatmul.mubr.bf16.gmra.mxu0 %v1206
    %v1253 = vpop.f32.mrf.mxu0
    %v1254 = vadd.f32 0.0, %v1253
    %v1255 = vpop.f32.mrf.mxu0
    %v1256 = vadd.f32 0.0, %v1255
    %v1257 = vpop.f32.mrf.mxu0
    %v1258 = vadd.f32 0.0, %v1257
    %v1259 = vpop.f32.mrf.mxu0
    %v1260 = vadd.f32 0.0, %v1259
    %1261 = vdwg.mxu0
    %v1262 = vld [vmem:[%s5] sm:$0xff]
    %v1263 = vld [vmem:[%s5 + $0x8] sm:$0xff]
    %v1264 = vld [vmem:[%s5 + $0x10] sm:$0xff]
    %v1265 = vld [vmem:[%s5 + $0x18] sm:$0xff]
    %v1266 = vld [vmem:[%s5 + $0x20] sm:$0xff]
    %v1267 = vld [vmem:[%s5 + $0x28] sm:$0xff]
    %v1268 = vld [vmem:[%s5 + $0x30] sm:$0xff]
    %v1269 = vld [vmem:[%s5 + $0x38] sm:$0xff]
    %v1270 = vmul.f32 %v1244, %v1262
    %v1271 = vmul.f32 %v1246, %v1263
    %v1272 = vmul.f32 %v1248, %v1264
    %v1273 = vmul.f32 %v1250, %v1265
    %v1274 = vmul.f32 %v1254, %v1266
    %v1275 = vmul.f32 %v1256, %v1267
    %v1276 = vmul.f32 %v1258, %v1268
    %v1277 = vmul.f32 %v1260, %v1269
    %v1278 = vpack.c.bf16 %v1272, %v1270
    %v1279 = vpack.c.bf16 %v1273, %v1271
    %v1280 = vpack.c.bf16 %v1276, %v1274
    %v1281 = vpack.c.bf16 %v1277, %v1275
    %v1282 = vld [vmem:[%s6] sm:$0xf]
    %v1283 = vld [vmem:[%s6 + $0x4] sm:$0xf]
    %v1284 = vld [vmem:[%s6 + $0x8] sm:$0xf]
    %v1285 = vld [vmem:[%s6 + $0xc] sm:$0xf]
    %v1286 = vld [vmem:[%s6 + $0x10] sm:$0xf]
    %v1287 = vld [vmem:[%s6 + $0x14] sm:$0xf]
    %v1288 = vld [vmem:[%s6 + $0x18] sm:$0xf]
    %v1289 = vld [vmem:[%s6 + $0x1c] sm:$0xf]
    %v1290 = vld [vmem:[%s6 + $0x20] sm:$0xf]
    %v1291 = vld [vmem:[%s6 + $0x24] sm:$0xf]
    %v1292 = vld [vmem:[%s6 + $0x28] sm:$0xf]
    %v1293 = vld [vmem:[%s6 + $0x2c] sm:$0xf]
    %v1294 = vld [vmem:[%s6 + $0x30] sm:$0xf]
    %v1295 = vld [vmem:[%s6 + $0x34] sm:$0xf]
    %v1296 = vld [vmem:[%s6 + $0x38] sm:$0xf]
    %v1297 = vld [vmem:[%s6 + $0x3c] sm:$0xf]
    %v1298 = vld [vmem:[%s6 + $0x40] sm:$0xf]
    %v1299 = vld [vmem:[%s6 + $0x44] sm:$0xf]
    %v1300 = vld [vmem:[%s6 + $0x48] sm:$0xf]
    %v1301 = vld [vmem:[%s6 + $0x4c] sm:$0xf]
    %v1302 = vld [vmem:[%s6 + $0x50] sm:$0xf]
    %v1303 = vld [vmem:[%s6 + $0x54] sm:$0xf]
    %v1304 = vld [vmem:[%s6 + $0x58] sm:$0xf]
    %v1305 = vld [vmem:[%s6 + $0x5c] sm:$0xf]
    %v1306 = vld [vmem:[%s6 + $0x60] sm:$0xf]
    %v1307 = vld [vmem:[%s6 + $0x64] sm:$0xf]
    %v1308 = vld [vmem:[%s6 + $0x68] sm:$0xf]
    %v1309 = vld [vmem:[%s6 + $0x6c] sm:$0xf]
    %v1310 = vld [vmem:[%s6 + $0x70] sm:$0xf]
    %v1311 = vld [vmem:[%s6 + $0x74] sm:$0xf]
    %v1312 = vld [vmem:[%s6 + $0x78] sm:$0xf]
    %v1313 = vld [vmem:[%s6 + $0x7c] sm:$0xf]
    %v1346 = vunpack.c.l.b16 %v1282
    %v1347 = vunpack.c.l.b16 %v1283
    %v1348 = vunpack.c.l.b16 %v1284
    %v1349 = vunpack.c.l.b16 %v1285
    %v1350 = vunpack.c.l.b16 %v1286
    %v1351 = vunpack.c.l.b16 %v1287
    %v1352 = vunpack.c.l.b16 %v1288
    %v1353 = vunpack.c.l.b16 %v1289
    %v1354 = vunpack.c.l.b16 %v1290
    %v1355 = vunpack.c.l.b16 %v1291
    %v1356 = vunpack.c.l.b16 %v1292
    %v1357 = vunpack.c.l.b16 %v1293
    %v1358 = vunpack.c.l.b16 %v1294
    %v1359 = vunpack.c.l.b16 %v1295
    %v1360 = vunpack.c.l.b16 %v1296
    %v1361 = vunpack.c.l.b16 %v1297
    %v1362 = vunpack.c.l.b16 %v1298
    %v1363 = vunpack.c.l.b16 %v1299
    %v1364 = vunpack.c.l.b16 %v1300
    %v1365 = vunpack.c.l.b16 %v1301
    %v1366 = vunpack.c.l.b16 %v1302
    %v1367 = vunpack.c.l.b16 %v1303
    %v1368 = vunpack.c.l.b16 %v1304
    %v1369 = vunpack.c.l.b16 %v1305
    %v1370 = vunpack.c.l.b16 %v1306
    %v1371 = vunpack.c.l.b16 %v1307
    %v1372 = vunpack.c.l.b16 %v1308
    %v1373 = vunpack.c.l.b16 %v1309
    %v1374 = vunpack.c.l.b16 %v1310
    %v1375 = vunpack.c.l.b16 %v1311
    %v1376 = vunpack.c.l.b16 %v1312
    %v1377 = vunpack.c.l.b16 %v1313
    %v1378 = vpack.c.b16 %v1347, %v1346
    %v1379 = vpack.c.b16 %v1349, %v1348
    %v1380 = vpack.c.b16 %v1351, %v1350
    %v1381 = vpack.c.b16 %v1353, %v1352
    %v1382 = vpack.c.b16 %v1355, %v1354
    %v1383 = vpack.c.b16 %v1357, %v1356
    %v1384 = vpack.c.b16 %v1359, %v1358
    %v1385 = vpack.c.b16 %v1361, %v1360
    %v1386 = vpack.c.b16 %v1363, %v1362
    %v1387 = vpack.c.b16 %v1365, %v1364
    %v1388 = vpack.c.b16 %v1367, %v1366
    %v1389 = vpack.c.b16 %v1369, %v1368
    %v1390 = vpack.c.b16 %v1371, %v1370
    %v1391 = vpack.c.b16 %v1373, %v1372
    %v1392 = vpack.c.b16 %v1375, %v1374
    %v1393 = vpack.c.b16 %v1377, %v1376
    %1410 = vmatprep.subr.bf16.mxu0 0
    %1411 = vmatpush1.bf16.msra.mxu0 %v1385
    %1412 = vmatprep.subr.bf16.mxu0 0
    %1413 = vmatpush1.bf16.msra.mxu0 %v1384
    %1414 = vmatprep.subr.bf16.mxu0 0
    %1415 = vmatpush1.bf16.msra.mxu0 %v1383
    %1416 = vmatprep.subr.bf16.mxu0 0
    %1417 = vmatpush1.bf16.msra.mxu0 %v1382
    %1418 = vmatprep.subr.bf16.mxu0 0
    %1419 = vmatpush1.bf16.msra.mxu0 %v1381
    %1420 = vmatprep.subr.bf16.mxu0 0
    %1421 = vmatpush1.bf16.msra.mxu0 %v1380
    %1422 = vmatprep.subr.bf16.mxu0 0
    %1423 = vmatpush1.bf16.msra.mxu0 %v1379
    %1424 = vmatprep.subr.bf16.mxu0 0
    %1425 = vmatpush1.bf16.msra.mxu0 %v1378
    %1426 = vmatprep.subr.bf16.mxu0 0
    %1427 = vmatpush2.bf16.msra.mxu0 %v1393
    %1428 = vmatprep.subr.bf16.mxu0 0
    %1429 = vmatpush2.bf16.msra.mxu0 %v1392
    %1430 = vmatprep.subr.bf16.mxu0 0
    %1431 = vmatpush2.bf16.msra.mxu0 %v1391
    %1432 = vmatprep.subr.bf16.mxu0 0
    %1433 = vmatpush2.bf16.msra.mxu0 %v1390
    %1434 = vmatprep.subr.bf16.mxu0 0
    %1435 = vmatpush2.bf16.msra.mxu0 %v1389
    %1436 = vmatprep.subr.bf16.mxu0 0
    %1437 = vmatpush2.bf16.msra.mxu0 %v1388
    %1438 = vmatprep.subr.bf16.mxu0 0
    %1439 = vmatpush2.bf16.msra.mxu0 %v1387
    %1440 = vmatprep.subr.bf16.mxu0 0
    %1441 = vmatpush2.bf16.msra.mxu0 %v1386
    %1442 = vmatprep.mubr.bf16.mxu0 %v1279
    %1443 = vmatmul.mubr.bf16.gmra.mxu0 %v1278
    %v1444 = vpop.f32.mrf.mxu0
    %v1445 = vadd.f32 0.0, %v1444
    %v1446 = vpop.f32.mrf.mxu0
    %v1447 = vpop.f32.mrf.mxu0
    %v1448 = vadd.f32 0.0, %v1447
    %v1449 = vpop.f32.mrf.mxu0
    %1450 = vmatprep.mubr.bf16.mxu0 %v1281
    %1451 = vmatmul.mubr.bf16.gmra.mxu0 %v1280
    %v1452 = vpop.f32.mrf.mxu0
    %v1453 = vadd.f32 0.0, %v1452
    %v1454 = vpop.f32.mrf.mxu0
    %v1455 = vpop.f32.mrf.mxu0
    %v1456 = vadd.f32 0.0, %v1455
    %v1457 = vpop.f32.mrf.mxu0
    %1458 = vdwg.mxu0
    %v1459 = vsel %vm96, %v1445, 0.0
    %v1460 = vsel %vm96, %v1448, 0.0
    %v1461 = vadd.f32 %v1459, %v1460
    %v1462 = vsel %vm96, %v1453, 0.0
    %v1463 = vadd.f32 %v1461, %v1462
    %v1464 = vsel %vm96, %v1456, 0.0
    %v1465 = vadd.f32 %v1463, %v1464
    %v1466 = vrot.slane %v1465, 4
    %v1467 = vadd.f32 %v1465, %v1466
    %v1468 = vrot.slane %v1467, 2
    %v1469 = vadd.f32 %v1467, %v1468
    %v1470 = vrot.slane %v1469, 1
    %v1471 = vadd.f32 %v1469, %v1470
    %v1472 = vmul.f32 %v1445, %v1445
    %v1473 = vmul.f32 %v1448, %v1448
    %v1474 = vmul.f32 %v1453, %v1453
    %v1475 = vmul.f32 %v1456, %v1456
    %v1476 = vsel %vm96, %v1472, 0.0
    %v1477 = vsel %vm96, %v1473, 0.0
    %v1478 = vadd.f32 %v1476, %v1477
    %v1479 = vsel %vm96, %v1474, 0.0
    %v1480 = vadd.f32 %v1478, %v1479
    %v1481 = vsel %vm96, %v1475, 0.0
    %v1482 = vadd.f32 %v1480, %v1481
    %v1483 = vrot.slane %v1482, 4
    %v1484 = vadd.f32 %v1482, %v1483
    %v1485 = vrot.slane %v1484, 2
    %v1486 = vadd.f32 %v1484, %v1485
    %v1487 = vrot.slane %v1486, 1
    %v1488 = vadd.f32 %v1486, %v1487
    %v1489 = vmul.f32 %v1471, 0.03125
    %v1490 = vmul.f32 %v1488, 0.03125
    %v1491 = vmul.f32 %v1489, %v1489
    %v1492 = vsub.f32 %v1490, %v1491
    %v1493 = vsub.f32 %v1445, %v1489
    %v1494 = vsub.f32 %v1448, %v1489
    %v1495 = vsub.f32 %v1453, %v1489
    %v1496 = vsub.f32 %v1456, %v1489
    %v1497 = vadd.f32 %v1492, 1e-05
    %v1498 = vrsqrt.pop %v1497
    %v1499 = vmul.f32 %v1493, %v1498
    %v1500 = vmul.f32 %v1494, %v1498
    %v1501 = vmul.f32 %v1495, %v1498
    %v1502 = vmul.f32 %v1496, %v1498
    %v1503 = vld [vmem:[%s7] sm:$0x1]
    %v1505 = vlaneseq
    %v1506 = vshrl.u32 %v1505, 7
    %v1507 = vsub.s32 0, %v1506
    %v1508 = vrot.slane %v1503, %v1507
    %v1510 = vmul.f32 %v1499, %v1508
    %v1511 = vmul.f32 %v1500, %v1508
    %v1512 = vmul.f32 %v1501, %v1508
    %v1513 = vmul.f32 %v1502, %v1508
    %v1514 = vld [vmem:[%s8] sm:$0x1]
    %v1516 = vlaneseq
    %v1517 = vshrl.u32 %v1516, 7
    %v1518 = vsub.s32 0, %v1517
    %v1519 = vrot.slane %v1514, %v1518
    %v1521 = vadd.f32 %v1510, %v1519
    %v1522 = vadd.f32 %v1511, %v1519
    %v1523 = vadd.f32 %v1512, %v1519
    %v1524 = vadd.f32 %v1513, %v1519
    %v1525 = vmax.f32 %v1521, 0.0
    %v1526 = vmax.f32 %v1522, 0.0
    %v1527 = vmax.f32 %v1523, 0.0
    %v1528 = vmax.f32 %v1524, 0.0
    %1529 = vst.msk [vmem:[#allocation3 + $0x8] sm:$0xff] %vm96, %v1525
    %1530 = vst.msk [vmem:[#allocation3 + $0x10] sm:$0xff] %vm96, %v1526
    %1531 = vst.msk [vmem:[#allocation3 + $0x18] sm:$0xff] %vm96, %v1527
    %1532 = vst.msk [vmem:[#allocation3 + $0x20] sm:$0xff] %vm96, %v1528
    %v1533 = vld [vmem:[#allocation3 + $0x3] sm:$0xff]
    %v1534 = vld [vmem:[#allocation3 + $0xb] sm:$0xff]
    %v1535 = vld [vmem:[#allocation3 + $0x13] sm:$0xff]
    %v1536 = vld [vmem:[#allocation3 + $0x1b] sm:$0xff]
    %v1537 = vld [vmem:[#allocation3 + $0x4] sm:$0xff]
    %v1538 = vld [vmem:[#allocation3 + $0xc] sm:$0xff]
    %v1539 = vld [vmem:[#allocation3 + $0x14] sm:$0xff]
    %v1540 = vld [vmem:[#allocation3 + $0x1c] sm:$0xff]
    %v1541 = vld [vmem:[#allocation3 + $0x5] sm:$0xff]
    %v1542 = vld [vmem:[#allocation3 + $0xd] sm:$0xff]
    %v1543 = vld [vmem:[#allocation3 + $0x15] sm:$0xff]
    %v1544 = vld [vmem:[#allocation3 + $0x1d] sm:$0xff]
    %v1545 = vld [vmem:[#allocation3 + $0x7] sm:$0xff]
    %v1546 = vld [vmem:[#allocation3 + $0xf] sm:$0xff]
    %v1547 = vld [vmem:[#allocation3 + $0x17] sm:$0xff]
    %v1548 = vld [vmem:[#allocation3 + $0x1f] sm:$0xff]
    %v1549 = vld [vmem:[#allocation3 + $0x8] sm:$0xff]
    %v1550 = vld [vmem:[#allocation3 + $0x10] sm:$0xff]
    %v1551 = vld [vmem:[#allocation3 + $0x18] sm:$0xff]
    %v1552 = vld [vmem:[#allocation3 + $0x20] sm:$0xff]
    %v1553 = vld [vmem:[#allocation3 + $0x9] sm:$0xff]
    %v1554 = vld [vmem:[#allocation3 + $0x11] sm:$0xff]
    %v1555 = vld [vmem:[#allocation3 + $0x19] sm:$0xff]
    %v1556 = vld [vmem:[#allocation3 + $0x21] sm:$0xff]
    %v1557 = vld [vmem:[#allocation3 + $0x23] sm:$0xff]
    %v1558 = vld [vmem:[#allocation3 + $0x24] sm:$0xff]
    %v1559 = vld [vmem:[#allocation3 + $0x25] sm:$0xff]
    %1564 = vrot.lane.b32.xlu0 %v1537, 32
    %v1565 = vpop.permute.xlu0 %1564
    %1566 = vrot.lane.b32.xlu0 %v1538, 32
    %v1567 = vpop.permute.xlu0 %1566
    %1568 = vrot.lane.b32.xlu0 %v1539, 32
    %v1569 = vpop.permute.xlu0 %1568
    %1570 = vrot.lane.b32.xlu0 %v1540, 32
    %v1571 = vpop.permute.xlu0 %1570
    %1580 = vrot.lane.b32.xlu0 %v1541, 64
    %v1581 = vpop.permute.xlu0 %1580
    %1582 = vrot.lane.b32.xlu0 %v1542, 64
    %v1583 = vpop.permute.xlu0 %1582
    %1584 = vrot.lane.b32.xlu0 %v1543, 64
    %v1585 = vpop.permute.xlu0 %1584
    %1586 = vrot.lane.b32.xlu0 %v1544, 64
    %v1587 = vpop.permute.xlu0 %1586
    %1596 = vrot.lane.b32.xlu0 %v1545, 96
    %v1597 = vpop.permute.xlu0 %1596
    %1598 = vrot.lane.b32.xlu0 %v1546, 96
    %v1599 = vpop.permute.xlu0 %1598
    %1600 = vrot.lane.b32.xlu0 %v1547, 96
    %v1601 = vpop.permute.xlu0 %1600
    %1602 = vrot.lane.b32.xlu0 %v1548, 96
    %v1603 = vpop.permute.xlu0 %1602
    %1612 = vrot.lane.b32.xlu0 %v1553, 32
    %v1613 = vpop.permute.xlu0 %1612
    %1614 = vrot.lane.b32.xlu0 %v1554, 32
    %v1615 = vpop.permute.xlu0 %1614
    %1616 = vrot.lane.b32.xlu0 %v1555, 32
    %v1617 = vpop.permute.xlu0 %1616
    %1618 = vrot.lane.b32.xlu0 %v1556, 32
    %v1619 = vpop.permute.xlu0 %1618
    %1628 = vrot.lane.b32.xlu0 %v1534, 64
    %v1629 = vpop.permute.xlu0 %1628
    %1630 = vrot.lane.b32.xlu0 %v1535, 64
    %v1631 = vpop.permute.xlu0 %1630
    %1632 = vrot.lane.b32.xlu0 %v1536, 64
    %v1633 = vpop.permute.xlu0 %1632
    %1634 = vrot.lane.b32.xlu0 %v1557, 64
    %v1635 = vpop.permute.xlu0 %1634
    %1641 = vrot.lane.b32.xlu0 %v1538, 96
    %v1642 = vpop.permute.xlu0 %1641
    %1643 = vrot.lane.b32.xlu0 %v1539, 96
    %v1644 = vpop.permute.xlu0 %1643
    %1645 = vrot.lane.b32.xlu0 %v1540, 96
    %v1646 = vpop.permute.xlu0 %1645
    %1647 = vrot.lane.b32.xlu0 %v1558, 96
    %v1648 = vpop.permute.xlu0 %1647
    %v1653 = vsel %vm96, %v1533, %v1565
    %v1654 = vsel %vm96, %v1534, %v1567
    %v1655 = vsel %vm96, %v1535, %v1569
    %v1656 = vsel %vm96, %v1536, %v1571
    %v1657 = vsel %vm197, %v1653, %v1581
    %v1658 = vsel %vm197, %v1654, %v1583
    %v1659 = vsel %vm197, %v1655, %v1585
    %v1660 = vsel %vm197, %v1656, %v1587
    %v1661 = vsel %vm1136, %v1657, %v1597
    %v1662 = vsel %vm1136, %v1658, %v1599
    %v1663 = vsel %vm1136, %v1659, %v1601
    %v1664 = vsel %vm1136, %v1660, %v1603
    %v1665 = vsel %vm96, %v1549, %v1613
    %v1666 = vsel %vm96, %v1550, %v1615
    %v1667 = vsel %vm96, %v1551, %v1617
    %v1668 = vsel %vm96, %v1552, %v1619
    %v1669 = vsel %vm197, %v1665, %v1629
    %v1670 = vsel %vm197, %v1666, %v1631
    %v1671 = vsel %vm197, %v1667, %v1633
    %v1672 = vsel %vm197, %v1668, %v1635
    %v1673 = vsel %vm1136, %v1669, %v1642
    %v1674 = vsel %vm1136, %v1670, %v1644
    %v1675 = vsel %vm1136, %v1671, %v1646
    %v1676 = vsel %vm1136, %v1672, %v1648
    %v1677 = vld [vmem:[%s9] sm:$0xff]
    %v1678 = vld [vmem:[%s9 + $0x8] sm:$0xff]
    %v1679 = vld [vmem:[%s9 + $0x10] sm:$0xff]
    %v1680 = vld [vmem:[%s9 + $0x18] sm:$0xff]
    %v1681 = vld [vmem:[%s9 + $0x20] sm:$0xff]
    %v1682 = vld [vmem:[%s9 + $0x28] sm:$0xff]
    %v1683 = vld [vmem:[%s9 + $0x30] sm:$0xff]
    %v1684 = vld [vmem:[%s9 + $0x38] sm:$0xff]
    %v1685 = vld [vmem:[%s9 + $0x40] sm:$0xff]
    %v1686 = vld [vmem:[%s9 + $0x48] sm:$0xff]
    %v1687 = vld [vmem:[%s9 + $0x50] sm:$0xff]
    %v1688 = vld [vmem:[%s9 + $0x58] sm:$0xff]
    %v1689 = vmul.f32 %v1661, %v1677
    %v1690 = vmul.f32 %v1673, %v1678
    %v1691 = vmul.f32 %v1542, %v1679
    %v1692 = vmul.f32 %v1662, %v1680
    %v1693 = vmul.f32 %v1674, %v1681
    %v1694 = vmul.f32 %v1543, %v1682
    %v1695 = vmul.f32 %v1663, %v1683
    %v1696 = vmul.f32 %v1675, %v1684
    %v1697 = vmul.f32 %v1544, %v1685
    %v1698 = vmul.f32 %v1664, %v1686
    %v1699 = vmul.f32 %v1676, %v1687
    %v1700 = vmul.f32 %v1559, %v1688
    %v1701 = vpack.c.bf16 %v1692, %v1689
    %v1702 = vpack.c.bf16 %v1693, %v1690
    %v1703 = vpack.c.bf16 %v1694, %v1691
    %v1704 = vpack.c.bf16 %v1698, %v1695
    %v1705 = vpack.c.bf16 %v1699, %v1696
    %v1706 = vpack.c.bf16 %v1700, %v1697
    %v1707 = vld [vmem:[%s11] sm:$0xf]
    %v1708 = vld [vmem:[%s11 + $0x4] sm:$0xf]
    %v1709 = vld [vmem:[%s11 + $0x8] sm:$0xf]
    %v1710 = vld [vmem:[%s11 + $0xc] sm:$0xf]
    %v1711 = vld [vmem:[%s11 + $0x10] sm:$0xf]
    %v1712 = vld [vmem:[%s11 + $0x14] sm:$0xf]
    %v1713 = vld [vmem:[%s11 + $0x18] sm:$0xf]
    %v1714 = vld [vmem:[%s11 + $0x1c] sm:$0xf]
    %v1715 = vld [vmem:[%s11 + $0x20] sm:$0xf]
    %v1716 = vld [vmem:[%s11 + $0x24] sm:$0xf]
    %v1717 = vld [vmem:[%s11 + $0x28] sm:$0xf]
    %v1718 = vld [vmem:[%s11 + $0x2c] sm:$0xf]
    %v1719 = vld [vmem:[%s11 + $0x30] sm:$0xf]
    %v1720 = vld [vmem:[%s11 + $0x34] sm:$0xf]
    %v1721 = vld [vmem:[%s11 + $0x38] sm:$0xf]
    %v1722 = vld [vmem:[%s11 + $0x3c] sm:$0xf]
    %v1723 = vld [vmem:[%s11 + $0x40] sm:$0xf]
    %v1724 = vld [vmem:[%s11 + $0x44] sm:$0xf]
    %v1725 = vld [vmem:[%s11 + $0x48] sm:$0xf]
    %v1726 = vld [vmem:[%s11 + $0x4c] sm:$0xf]
    %v1727 = vld [vmem:[%s11 + $0x50] sm:$0xf]
    %v1728 = vld [vmem:[%s11 + $0x54] sm:$0xf]
    %v1729 = vld [vmem:[%s11 + $0x58] sm:$0xf]
    %v1730 = vld [vmem:[%s11 + $0x5c] sm:$0xf]
    %v1731 = vld [vmem:[%s11 + $0x60] sm:$0xf]
    %v1732 = vld [vmem:[%s11 + $0x64] sm:$0xf]
    %v1733 = vld [vmem:[%s11 + $0x68] sm:$0xf]
    %v1734 = vld [vmem:[%s11 + $0x6c] sm:$0xf]
    %v1735 = vld [vmem:[%s11 + $0x70] sm:$0xf]
    %v1736 = vld [vmem:[%s11 + $0x74] sm:$0xf]
    %v1737 = vld [vmem:[%s11 + $0x78] sm:$0xf]
    %v1738 = vld [vmem:[%s11 + $0x7c] sm:$0xf]
    %v1739 = vld [vmem:[%s11 + $0x80] sm:$0xf]
    %v1740 = vld [vmem:[%s11 + $0x84] sm:$0xf]
    %v1741 = vld [vmem:[%s11 + $0x88] sm:$0xf]
    %v1742 = vld [vmem:[%s11 + $0x8c] sm:$0xf]
    %v1779 = vunpack.c.l.b16 %v1707
    %v1780 = vunpack.c.l.b16 %v1708
    %v1781 = vunpack.c.l.b16 %v1709
    %v1782 = vunpack.c.l.b16 %v1710
    %v1783 = vunpack.c.l.b16 %v1711
    %v1784 = vunpack.c.l.b16 %v1712
    %v1785 = vunpack.c.l.b16 %v1713
    %v1786 = vunpack.c.l.b16 %v1714
    %v1787 = vunpack.c.l.b16 %v1715
    %v1788 = vunpack.c.l.b16 %v1716
    %v1789 = vunpack.c.l.b16 %v1717
    %v1790 = vunpack.c.l.b16 %v1718
    %v1791 = vunpack.c.l.b16 %v1719
    %v1792 = vunpack.c.l.b16 %v1720
    %v1793 = vunpack.c.l.b16 %v1721
    %v1794 = vunpack.c.l.b16 %v1722
    %v1795 = vunpack.c.l.b16 %v1723
    %v1796 = vunpack.c.l.b16 %v1724
    %v1797 = vunpack.c.l.b16 %v1725
    %v1798 = vunpack.c.l.b16 %v1726
    %v1799 = vunpack.c.l.b16 %v1727
    %v1800 = vunpack.c.l.b16 %v1728
    %v1801 = vunpack.c.l.b16 %v1729
    %v1802 = vunpack.c.l.b16 %v1730
    %v1803 = vunpack.c.l.b16 %v1731
    %v1804 = vunpack.c.l.b16 %v1732
    %v1805 = vunpack.c.l.b16 %v1733
    %v1806 = vunpack.c.l.b16 %v1734
    %v1807 = vunpack.c.l.b16 %v1735
    %v1808 = vunpack.c.l.b16 %v1736
    %v1809 = vunpack.c.l.b16 %v1737
    %v1810 = vunpack.c.l.b16 %v1738
    %v1811 = vunpack.c.l.b16 %v1739
    %v1812 = vunpack.c.l.b16 %v1740
    %v1813 = vunpack.c.l.b16 %v1741
    %v1814 = vunpack.c.l.b16 %v1742
    %v1815 = vpack.c.b16 %v1780, %v1779
    %v1816 = vpack.c.b16 %v1782, %v1781
    %v1817 = vpack.c.b16 %v1784, %v1783
    %v1818 = vpack.c.b16 %v1786, %v1785
    %v1819 = vpack.c.b16 %v1788, %v1787
    %v1820 = vpack.c.b16 %v1790, %v1789
    %v1821 = vpack.c.b16 %v1792, %v1791
    %v1822 = vpack.c.b16 %v1794, %v1793
    %v1823 = vpack.c.b16 %v1796, %v1795
    %v1824 = vpack.c.b16 %v1798, %v1797
    %v1825 = vpack.c.b16 %v1800, %v1799
    %v1826 = vpack.c.b16 %v1802, %v1801
    %v1827 = vpack.c.b16 %v1804, %v1803
    %v1828 = vpack.c.b16 %v1806, %v1805
    %v1829 = vpack.c.b16 %v1808, %v1807
    %v1830 = vpack.c.b16 %v1810, %v1809
    %v1831 = vpack.c.b16 %v1812, %v1811
    %v1832 = vpack.c.b16 %v1814, %v1813
    %v1852 = vsel %vm96, %v1703, 0
    %v1855 = vsel %vm96, %v1706, 0
    %1857 = vmatprep.subr.bf16.mxu0 0
    %1858 = vmatpush1.bf16.msra.mxu0 %v1822
    %1859 = vmatprep.subr.bf16.mxu0 0
    %1860 = vmatpush1.bf16.msra.mxu0 %v1821
    %1861 = vmatprep.subr.bf16.mxu0 0
    %1862 = vmatpush1.bf16.msra.mxu0 %v1820
    %1863 = vmatprep.subr.bf16.mxu0 0
    %1864 = vmatpush1.bf16.msra.mxu0 %v1819
    %1865 = vmatprep.subr.bf16.mxu0 0
    %1866 = vmatpush1.bf16.msra.mxu0 %v1818
    %1867 = vmatprep.subr.bf16.mxu0 0
    %1868 = vmatpush1.bf16.msra.mxu0 %v1817
    %1869 = vmatprep.subr.bf16.mxu0 0
    %1870 = vmatpush1.bf16.msra.mxu0 %v1816
    %1871 = vmatprep.subr.bf16.mxu0 0
    %1872 = vmatpush1.bf16.msra.mxu0 %v1815
    %1873 = vmatprep.subr.bf16.mxu0 0
    %1874 = vmatpush2.bf16.msra.mxu0 %v1830
    %1875 = vmatprep.subr.bf16.mxu0 0
    %1876 = vmatpush2.bf16.msra.mxu0 %v1829
    %1877 = vmatprep.subr.bf16.mxu0 0
    %1878 = vmatpush2.bf16.msra.mxu0 %v1828
    %1879 = vmatprep.subr.bf16.mxu0 0
    %1880 = vmatpush2.bf16.msra.mxu0 %v1827
    %1881 = vmatprep.subr.bf16.mxu0 0
    %1882 = vmatpush2.bf16.msra.mxu0 %v1826
    %1883 = vmatprep.subr.bf16.mxu0 0
    %1884 = vmatpush2.bf16.msra.mxu0 %v1825
    %1885 = vmatprep.subr.bf16.mxu0 0
    %1886 = vmatpush2.bf16.msra.mxu0 %v1824
    %1887 = vmatprep.subr.bf16.mxu0 0
    %1888 = vmatpush2.bf16.msra.mxu0 %v1823
    %1889 = vmatprep.mubr.bf16.mxu0 %v1702
    %1890 = vmatmul.mubr.bf16.gmra.mxu0 %v1701
    %v1891 = vpop.f32.mrf.mxu0
    %v1892 = vadd.f32 0.0, %v1891
    %v1893 = vpop.f32.mrf.mxu0
    %v1894 = vpop.f32.mrf.mxu0
    %v1895 = vadd.f32 0.0, %v1894
    %v1896 = vpop.f32.mrf.mxu0
    %1897 = vmatprep.mubr.bf16.mxu0 %v1705
    %1898 = vmatmul.mubr.bf16.gmra.mxu0 %v1704
    %v1899 = vpop.f32.mrf.mxu0
    %v1900 = vadd.f32 0.0, %v1899
    %v1901 = vpop.f32.mrf.mxu0
    %v1902 = vpop.f32.mrf.mxu0
    %v1903 = vadd.f32 0.0, %v1902
    %v1904 = vpop.f32.mrf.mxu0
    %1905 = vdwg.mxu0
    %1906 = vmatprep.subr.bf16.mxu0 0
    %1907 = vmatpush1.bf16.msra.mxu0 0
    %1908 = vmatprep.subr.bf16.mxu0 0
    %1909 = vmatpush1.bf16.msra.mxu0 0
    %1910 = vmatprep.subr.bf16.mxu0 0
    %1911 = vmatpush1.bf16.msra.mxu0 0
    %1912 = vmatprep.subr.bf16.mxu0 0
    %1913 = vmatpush1.bf16.msra.mxu0 0
    %1914 = vmatprep.subr.bf16.mxu0 0
    %1915 = vmatpush1.bf16.msra.mxu0 0
    %1916 = vmatprep.subr.bf16.mxu0 0
    %1917 = vmatpush1.bf16.msra.mxu0 0
    %1918 = vmatprep.subr.bf16.mxu0 0
    %1919 = vmatpush1.bf16.msra.mxu0 %v1832
    %1920 = vmatprep.subr.bf16.mxu0 0
    %1921 = vmatpush1.bf16.msra.mxu0 %v1831
    %1922 = vmatprep.subr.bf16.mxu0 0
    %1923 = vmatpush2.bf16.msra.mxu0 0
    %1924 = vmatprep.subr.bf16.mxu0 0
    %1925 = vmatpush2.bf16.msra.mxu0 0
    %1926 = vmatprep.subr.bf16.mxu0 0
    %1927 = vmatpush2.bf16.msra.mxu0 0
    %1928 = vmatprep.subr.bf16.mxu0 0
    %1929 = vmatpush2.bf16.msra.mxu0 0
    %1930 = vmatprep.subr.bf16.mxu0 0
    %1931 = vmatpush2.bf16.msra.mxu0 0
    %1932 = vmatprep.subr.bf16.mxu0 0
    %1933 = vmatpush2.bf16.msra.mxu0 0
    %1934 = vmatprep.subr.bf16.mxu0 0
    %1935 = vmatpush2.bf16.msra.mxu0 0
    %1936 = vmatprep.subr.bf16.mxu0 0
    %1937 = vmatpush2.bf16.msra.mxu0 0
    %1938 = vmatprep.mubr.bf16.mxu0 0
    %1939 = vmatmul.mubr.bf16.gmra.mxu0 %v1852
    %v1940 = vpop.f32.mrf.mxu0
    %v1941 = vadd.f32 %v1892, %v1940
    %v1942 = vpop.f32.mrf.mxu0
    %v1943 = vpop.f32.mrf.mxu0
    %v1944 = vadd.f32 %v1895, %v1943
    %v1945 = vpop.f32.mrf.mxu0
    %1946 = vmatprep.mubr.bf16.mxu0 0
    %1947 = vmatmul.mubr.bf16.gmra.mxu0 %v1855
    %v1948 = vpop.f32.mrf.mxu0
    %v1949 = vadd.f32 %v1900, %v1948
    %v1950 = vpop.f32.mrf.mxu0
    %v1951 = vpop.f32.mrf.mxu0
    %v1952 = vadd.f32 %v1903, %v1951
    %v1953 = vpop.f32.mrf.mxu0
    %1954 = vdwg.mxu0
    %v1955 = vsel %vm73, %v1941, 0.0
    %v1956 = vsel %vm73, %v1944, 0.0
    %v1957 = vadd.f32 %v1955, %v1956
    %v1958 = vsel %vm73, %v1949, 0.0
    %v1959 = vadd.f32 %v1957, %v1958
    %v1960 = vsel %vm73, %v1952, 0.0
    %v1961 = vadd.f32 %v1959, %v1960
    %v1962 = vrot.slane %v1961, 4
    %v1963 = vadd.f32 %v1961, %v1962
    %v1964 = vrot.slane %v1963, 2
    %v1965 = vadd.f32 %v1963, %v1964
    %v1966 = vrot.slane %v1965, 1
    %v1967 = vadd.f32 %v1965, %v1966
    %v1968 = vmul.f32 %v1941, %v1941
    %v1969 = vmul.f32 %v1944, %v1944
    %v1970 = vmul.f32 %v1949, %v1949
    %v1971 = vmul.f32 %v1952, %v1952
    %v1972 = vsel %vm73, %v1968, 0.0
    %v1973 = vsel %vm73, %v1969, 0.0
    %v1974 = vadd.f32 %v1972, %v1973
    %v1975 = vsel %vm73, %v1970, 0.0
    %v1976 = vadd.f32 %v1974, %v1975
    %v1977 = vsel %vm73, %v1971, 0.0
    %v1978 = vadd.f32 %v1976, %v1977
    %v1979 = vrot.slane %v1978, 4
    %v1980 = vadd.f32 %v1978, %v1979
    %v1981 = vrot.slane %v1980, 2
    %v1982 = vadd.f32 %v1980, %v1981
    %v1983 = vrot.slane %v1982, 1
    %v1984 = vadd.f32 %v1982, %v1983
    %v1985 = vmul.f32 %v1967, 0.03125
    %v1986 = vmul.f32 %v1984, 0.03125
    %v1987 = vmul.f32 %v1985, %v1985
    %v1988 = vsub.f32 %v1986, %v1987
    %v1989 = vsub.f32 %v1941, %v1985
    %v1990 = vsub.f32 %v1944, %v1985
    %v1991 = vsub.f32 %v1949, %v1985
    %v1992 = vsub.f32 %v1952, %v1985
    %v1993 = vadd.f32 %v1988, 1e-05
    %v1994 = vrsqrt.pop %v1993
    %v1995 = vmul.f32 %v1989, %v1994
    %v1996 = vmul.f32 %v1990, %v1994
    %v1997 = vmul.f32 %v1991, %v1994
    %v1998 = vmul.f32 %v1992, %v1994
    %v1999 = vld [vmem:[%s12] sm:$0x1]
    %v2001 = vlaneseq
    %v2002 = vshrl.u32 %v2001, 7
    %v2003 = vsub.s32 0, %v2002
    %v2004 = vrot.slane %v1999, %v2003
    %v2006 = vmul.f32 %v1995, %v2004
    %v2007 = vmul.f32 %v1996, %v2004
    %v2008 = vmul.f32 %v1997, %v2004
    %v2009 = vmul.f32 %v1998, %v2004
    %v2010 = vld [vmem:[%s13] sm:$0x1]
    %v2012 = vlaneseq
    %v2013 = vshrl.u32 %v2012, 7
    %v2014 = vsub.s32 0, %v2013
    %v2015 = vrot.slane %v2010, %v2014
    %v2017 = vadd.f32 %v2006, %v2015
    %v2018 = vadd.f32 %v2007, %v2015
    %v2019 = vadd.f32 %v2008, %v2015
    %v2020 = vadd.f32 %v2009, %v2015
    %v2021 = vmax.f32 %v2017, 0.0
    %v2022 = vmax.f32 %v2018, 0.0
    %v2023 = vmax.f32 %v2019, 0.0
    %v2024 = vmax.f32 %v2020, 0.0
    %2025 = vst.msk [vmem:[#allocation4 + $0x8] sm:$0xff] %vm73, %v2021
    %2026 = vst.msk [vmem:[#allocation4 + $0x10] sm:$0xff] %vm73, %v2022
    %2027 = vst.msk [vmem:[#allocation4 + $0x18] sm:$0xff] %vm73, %v2023
    %2028 = vst.msk [vmem:[#allocation4 + $0x20] sm:$0xff] %vm73, %v2024
    %v2029 = vld [vmem:[#allocation4 + $0x3] sm:$0xff]
    %v2030 = vld [vmem:[#allocation4 + $0xb] sm:$0xff]
    %v2031 = vld [vmem:[#allocation4 + $0x13] sm:$0xff]
    %v2032 = vld [vmem:[#allocation4 + $0x1b] sm:$0xff]
    %v2033 = vld [vmem:[#allocation4 + $0x4] sm:$0xff]
    %v2034 = vld [vmem:[#allocation4 + $0xc] sm:$0xff]
    %v2035 = vld [vmem:[#allocation4 + $0x14] sm:$0xff]
    %v2036 = vld [vmem:[#allocation4 + $0x1c] sm:$0xff]
    %v2037 = vld [vmem:[#allocation4 + $0x5] sm:$0xff]
    %v2038 = vld [vmem:[#allocation4 + $0xd] sm:$0xff]
    %v2039 = vld [vmem:[#allocation4 + $0x15] sm:$0xff]
    %v2040 = vld [vmem:[#allocation4 + $0x1d] sm:$0xff]
    %v2041 = vld [vmem:[#allocation4 + $0x7] sm:$0xff]
    %v2042 = vld [vmem:[#allocation4 + $0xf] sm:$0xff]
    %v2043 = vld [vmem:[#allocation4 + $0x17] sm:$0xff]
    %v2044 = vld [vmem:[#allocation4 + $0x1f] sm:$0xff]
    %v2045 = vld [vmem:[#allocation4 + $0x8] sm:$0xff]
    %v2046 = vld [vmem:[#allocation4 + $0x10] sm:$0xff]
    %v2047 = vld [vmem:[#allocation4 + $0x18] sm:$0xff]
    %v2048 = vld [vmem:[#allocation4 + $0x20] sm:$0xff]
    %v2049 = vld [vmem:[#allocation4 + $0x9] sm:$0xff]
    %v2050 = vld [vmem:[#allocation4 + $0x11] sm:$0xff]
    %v2051 = vld [vmem:[#allocation4 + $0x19] sm:$0xff]
    %v2052 = vld [vmem:[#allocation4 + $0x21] sm:$0xff]
    %v2053 = vld [vmem:[#allocation4 + $0x23] sm:$0xff]
    %v2054 = vld [vmem:[#allocation4 + $0x24] sm:$0xff]
    %v2055 = vld [vmem:[#allocation4 + $0x25] sm:$0xff]
    %2060 = vrot.lane.b32.xlu0 %v2033, 16
    %v2061 = vpop.permute.xlu0 %2060
    %2062 = vrot.lane.b32.xlu0 %v2034, 16
    %v2063 = vpop.permute.xlu0 %2062
    %2064 = vrot.lane.b32.xlu0 %v2035, 16
    %v2065 = vpop.permute.xlu0 %2064
    %2066 = vrot.lane.b32.xlu0 %v2036, 16
    %v2067 = vpop.permute.xlu0 %2066
    %2076 = vrot.lane.b32.xlu0 %v2037, 32
    %v2077 = vpop.permute.xlu0 %2076
    %2078 = vrot.lane.b32.xlu0 %v2038, 32
    %v2079 = vpop.permute.xlu0 %2078
    %2080 = vrot.lane.b32.xlu0 %v2039, 32
    %v2081 = vpop.permute.xlu0 %2080
    %2082 = vrot.lane.b32.xlu0 %v2040, 32
    %v2083 = vpop.permute.xlu0 %2082
    %2092 = vrot.lane.b32.xlu0 %v2041, 48
    %v2093 = vpop.permute.xlu0 %2092
    %2094 = vrot.lane.b32.xlu0 %v2042, 48
    %v2095 = vpop.permute.xlu0 %2094
    %2096 = vrot.lane.b32.xlu0 %v2043, 48
    %v2097 = vpop.permute.xlu0 %2096
    %2098 = vrot.lane.b32.xlu0 %v2044, 48
    %v2099 = vpop.permute.xlu0 %2098
    %2108 = vrot.lane.b32.xlu0 %v2045, 64
    %v2109 = vpop.permute.xlu0 %2108
    %2110 = vrot.lane.b32.xlu0 %v2046, 64
    %v2111 = vpop.permute.xlu0 %2110
    %2112 = vrot.lane.b32.xlu0 %v2047, 64
    %v2113 = vpop.permute.xlu0 %2112
    %2114 = vrot.lane.b32.xlu0 %v2048, 64
    %v2115 = vpop.permute.xlu0 %2114
    %2124 = vrot.lane.b32.xlu0 %v2049, 80
    %v2125 = vpop.permute.xlu0 %2124
    %2126 = vrot.lane.b32.xlu0 %v2050, 80
    %v2127 = vpop.permute.xlu0 %2126
    %2128 = vrot.lane.b32.xlu0 %v2051, 80
    %v2129 = vpop.permute.xlu0 %2128
    %2130 = vrot.lane.b32.xlu0 %v2052, 80
    %v2131 = vpop.permute.xlu0 %2130
    %2140 = vrot.lane.b32.xlu0 %v2030, 96
    %v2141 = vpop.permute.xlu0 %2140
    %2142 = vrot.lane.b32.xlu0 %v2031, 96
    %v2143 = vpop.permute.xlu0 %2142
    %2144 = vrot.lane.b32.xlu0 %v2032, 96
    %v2145 = vpop.permute.xlu0 %2144
    %2146 = vrot.lane.b32.xlu0 %v2053, 96
    %v2147 = vpop.permute.xlu0 %2146
    %2153 = vrot.lane.b32.xlu0 %v2034, 112
    %v2154 = vpop.permute.xlu0 %2153
    %2155 = vrot.lane.b32.xlu0 %v2035, 112
    %v2156 = vpop.permute.xlu0 %2155
    %2157 = vrot.lane.b32.xlu0 %v2036, 112
    %v2158 = vpop.permute.xlu0 %2157
    %2159 = vrot.lane.b32.xlu0 %v2054, 112
    %v2160 = vpop.permute.xlu0 %2159
    %v2165 = vsel %vm73, %v2029, %v2061
    %v2166 = vsel %vm73, %v2030, %v2063
    %v2167 = vsel %vm73, %v2031, %v2065
    %v2168 = vsel %vm73, %v2032, %v2067
    %v2169 = vsel %vm96, %v2165, %v2077
    %v2170 = vsel %vm96, %v2166, %v2079
    %v2171 = vsel %vm96, %v2167, %v2081
    %v2172 = vsel %vm96, %v2168, %v2083
    %v2173 = vsel %vm1086, %v2169, %v2093
    %v2174 = vsel %vm1086, %v2170, %v2095
    %v2175 = vsel %vm1086, %v2171, %v2097
    %v2176 = vsel %vm1086, %v2172, %v2099
    %v2177 = vsel %vm197, %v2173, %v2109
    %v2178 = vsel %vm197, %v2174, %v2111
    %v2179 = vsel %vm197, %v2175, %v2113
    %v2180 = vsel %vm197, %v2176, %v2115
    %v2181 = vsel %vm1119, %v2177, %v2125
    %v2182 = vsel %vm1119, %v2178, %v2127
    %v2183 = vsel %vm1119, %v2179, %v2129
    %v2184 = vsel %vm1119, %v2180, %v2131
    %v2185 = vsel %vm1136, %v2181, %v2141
    %v2186 = vsel %vm1136, %v2182, %v2143
    %v2187 = vsel %vm1136, %v2183, %v2145
    %v2188 = vsel %vm1136, %v2184, %v2147
    %v2189 = vsel %vm1153, %v2185, %v2154
    %v2190 = vsel %vm1153, %v2186, %v2156
    %v2191 = vsel %vm1153, %v2187, %v2158
    %v2192 = vsel %vm1153, %v2188, %v2160
    %v2193 = vld [vmem:[%s10] sm:$0xff]
    %v2194 = vld [vmem:[%s10 + $0x8] sm:$0xff]
    %v2195 = vld [vmem:[%s10 + $0x10] sm:$0xff]
    %v2196 = vld [vmem:[%s10 + $0x18] sm:$0xff]
    %v2197 = vld [vmem:[%s10 + $0x20] sm:$0xff]
    %v2198 = vld [vmem:[%s10 + $0x28] sm:$0xff]
    %v2199 = vld [vmem:[%s10 + $0x30] sm:$0xff]
    %v2200 = vld [vmem:[%s10 + $0x38] sm:$0xff]
    %v2201 = vmul.f32 %v2189, %v2193
    %v2202 = vmul.f32 %v2038, %v2194
    %v2203 = vmul.f32 %v2190, %v2195
    %v2204 = vmul.f32 %v2039, %v2196
    %v2205 = vmul.f32 %v2191, %v2197
    %v2206 = vmul.f32 %v2040, %v2198
    %v2207 = vmul.f32 %v2192, %v2199
    %v2208 = vmul.f32 %v2055, %v2200
    %v2209 = vpack.c.bf16 %v2203, %v2201
    %v2210 = vpack.c.bf16 %v2204, %v2202
    %v2211 = vpack.c.bf16 %v2207, %v2205
    %v2212 = vpack.c.bf16 %v2208, %v2206
    %v2213 = vld [vmem:[%s14] sm:$0xf]
    %v2214 = vld [vmem:[%s14 + $0x4] sm:$0xf]
    %v2215 = vld [vmem:[%s14 + $0x8] sm:$0xf]
    %v2216 = vld [vmem:[%s14 + $0xc] sm:$0xf]
    %v2217 = vld [vmem:[%s14 + $0x10] sm:$0xf]
    %v2218 = vld [vmem:[%s14 + $0x14] sm:$0xf]
    %v2219 = vld [vmem:[%s14 + $0x18] sm:$0xf]
    %v2220 = vld [vmem:[%s14 + $0x1c] sm:$0xf]
    %v2221 = vld [vmem:[%s14 + $0x20] sm:$0xf]
    %v2222 = vld [vmem:[%s14 + $0x24] sm:$0xf]
    %v2223 = vld [vmem:[%s14 + $0x28] sm:$0xf]
    %v2224 = vld [vmem:[%s14 + $0x2c] sm:$0xf]
    %v2225 = vld [vmem:[%s14 + $0x30] sm:$0xf]
    %v2226 = vld [vmem:[%s14 + $0x34] sm:$0xf]
    %v2227 = vld [vmem:[%s14 + $0x38] sm:$0xf]
    %v2228 = vld [vmem:[%s14 + $0x3c] sm:$0xf]
    %v2229 = vld [vmem:[%s14 + $0x40] sm:$0xf]
    %v2230 = vld [vmem:[%s14 + $0x44] sm:$0xf]
    %v2249 = vunpack.c.l.b16 %v2213
    %v2250 = vunpack.c.l.b16 %v2214
    %v2251 = vunpack.c.l.b16 %v2215
    %v2252 = vunpack.c.l.b16 %v2216
    %v2253 = vunpack.c.l.b16 %v2217
    %v2254 = vunpack.c.l.b16 %v2218
    %v2255 = vunpack.c.l.b16 %v2219
    %v2256 = vunpack.c.l.b16 %v2220
    %v2257 = vunpack.c.l.b16 %v2221
    %v2258 = vunpack.c.l.b16 %v2222
    %v2259 = vunpack.c.l.b16 %v2223
    %v2260 = vunpack.c.l.b16 %v2224
    %v2261 = vunpack.c.l.b16 %v2225
    %v2262 = vunpack.c.l.b16 %v2226
    %v2263 = vunpack.c.l.b16 %v2227
    %v2264 = vunpack.c.l.b16 %v2228
    %v2265 = vunpack.c.l.b16 %v2229
    %v2266 = vunpack.c.l.b16 %v2230
    %v2267 = vpack.c.b16 %v2250, %v2249
    %v2268 = vpack.c.b16 %v2252, %v2251
    %v2269 = vpack.c.b16 %v2254, %v2253
    %v2270 = vpack.c.b16 %v2256, %v2255
    %v2271 = vpack.c.b16 %v2258, %v2257
    %v2272 = vpack.c.b16 %v2260, %v2259
    %v2273 = vpack.c.b16 %v2262, %v2261
    %v2274 = vpack.c.b16 %v2264, %v2263
    %v2275 = vpack.c.b16 %v2266, %v2265
    %v2286 = vsel %vm73, %v2210, 0
    %v2289 = vsel %vm73, %v2212, 0
    %2291 = vmatprep.subr.bf16.mxu0 0
    %2292 = vmatpush1.bf16.msra.mxu0 %v2274
    %2293 = vmatprep.subr.bf16.mxu0 0
    %2294 = vmatpush1.bf16.msra.mxu0 %v2273
    %2295 = vmatprep.subr.bf16.mxu0 0
    %2296 = vmatpush1.bf16.msra.mxu0 %v2272
    %2297 = vmatprep.subr.bf16.mxu0 0
    %2298 = vmatpush1.bf16.msra.mxu0 %v2271
    %2299 = vmatprep.subr.bf16.mxu0 0
    %2300 = vmatpush1.bf16.msra.mxu0 %v2270
    %2301 = vmatprep.subr.bf16.mxu0 0
    %2302 = vmatpush1.bf16.msra.mxu0 %v2269
    %2303 = vmatprep.subr.bf16.mxu0 0
    %2304 = vmatpush1.bf16.msra.mxu0 %v2268
    %2305 = vmatprep.subr.bf16.mxu0 0
    %2306 = vmatpush1.bf16.msra.mxu0 %v2267
    %2307 = vmatprep.subr.bf16.mxu0 0
    %2308 = vmatpush2.bf16.msra.mxu0 0
    %2309 = vmatprep.subr.bf16.mxu0 0
    %2310 = vmatpush2.bf16.msra.mxu0 0
    %2311 = vmatprep.subr.bf16.mxu0 0
    %2312 = vmatpush2.bf16.msra.mxu0 0
    %2313 = vmatprep.subr.bf16.mxu0 0
    %2314 = vmatpush2.bf16.msra.mxu0 0
    %2315 = vmatprep.subr.bf16.mxu0 0
    %2316 = vmatpush2.bf16.msra.mxu0 0
    %2317 = vmatprep.subr.bf16.mxu0 0
    %2318 = vmatpush2.bf16.msra.mxu0 0
    %2319 = vmatprep.subr.bf16.mxu0 0
    %2320 = vmatpush2.bf16.msra.mxu0 0
    %2321 = vmatprep.subr.bf16.mxu0 0
    %2322 = vmatpush2.bf16.msra.mxu0 %v2275
    %2323 = vmatprep.mubr.bf16.mxu0 %v2286
    %2324 = vmatmul.mubr.bf16.gmra.mxu0 %v2209
    %v2325 = vpop.f32.mrf.mxu0
    %v2326 = vadd.f32 0.0, %v2325
    %v2327 = vpop.f32.mrf.mxu0
    %v2328 = vpop.f32.mrf.mxu0
    %v2329 = vadd.f32 0.0, %v2328
    %v2330 = vpop.f32.mrf.mxu0
    %2331 = vmatprep.mubr.bf16.mxu0 %v2289
    %2332 = vmatmul.mubr.bf16.gmra.mxu0 %v2211
    %v2333 = vpop.f32.mrf.mxu0
    %v2334 = vadd.f32 0.0, %v2333
    %v2335 = vpop.f32.mrf.mxu0
    %v2336 = vpop.f32.mrf.mxu0
    %v2337 = vadd.f32 0.0, %v2336
    %v2338 = vpop.f32.mrf.mxu0
    %2339 = vdwg.mxu0
    %v2340 = vsel %vm96, %v2326, 0.0
    %v2341 = vsel %vm96, %v2329, 0.0
    %v2342 = vadd.f32 %v2340, %v2341
    %v2343 = vsel %vm96, %v2334, 0.0
    %v2344 = vadd.f32 %v2342, %v2343
    %v2345 = vsel %vm96, %v2337, 0.0
    %v2346 = vadd.f32 %v2344, %v2345
    %v2347 = vrot.slane %v2346, 4
    %v2348 = vadd.f32 %v2346, %v2347
    %v2349 = vrot.slane %v2348, 2
    %v2350 = vadd.f32 %v2348, %v2349
    %v2351 = vrot.slane %v2350, 1
    %v2352 = vadd.f32 %v2350, %v2351
    %v2353 = vmul.f32 %v2326, %v2326
    %v2354 = vmul.f32 %v2329, %v2329
    %v2355 = vmul.f32 %v2334, %v2334
    %v2356 = vmul.f32 %v2337, %v2337
    %v2357 = vsel %vm96, %v2353, 0.0
    %v2358 = vsel %vm96, %v2354, 0.0
    %v2359 = vadd.f32 %v2357, %v2358
    %v2360 = vsel %vm96, %v2355, 0.0
    %v2361 = vadd.f32 %v2359, %v2360
    %v2362 = vsel %vm96, %v2356, 0.0
    %v2363 = vadd.f32 %v2361, %v2362
    %v2364 = vrot.slane %v2363, 4
    %v2365 = vadd.f32 %v2363, %v2364
    %v2366 = vrot.slane %v2365, 2
    %v2367 = vadd.f32 %v2365, %v2366
    %v2368 = vrot.slane %v2367, 1
    %v2369 = vadd.f32 %v2367, %v2368
    %v2370 = vmul.f32 %v2352, 0.03125
    %v2371 = vmul.f32 %v2369, 0.03125
    %v2372 = vmul.f32 %v2370, %v2370
    %v2373 = vsub.f32 %v2371, %v2372
    %v2374 = vsub.f32 %v2326, %v2370
    %v2375 = vsub.f32 %v2329, %v2370
    %v2376 = vsub.f32 %v2334, %v2370
    %v2377 = vsub.f32 %v2337, %v2370
    %v2378 = vadd.f32 %v2373, 1e-05
    %v2379 = vrsqrt.pop %v2378
    %v2380 = vmul.f32 %v2374, %v2379
    %v2381 = vmul.f32 %v2375, %v2379
    %v2382 = vmul.f32 %v2376, %v2379
    %v2383 = vmul.f32 %v2377, %v2379
    %v2384 = vld [vmem:[%s15] sm:$0x1]
    %v2386 = vlaneseq
    %v2387 = vshrl.u32 %v2386, 7
    %v2388 = vsub.s32 0, %v2387
    %v2389 = vrot.slane %v2384, %v2388
    %v2391 = vmul.f32 %v2380, %v2389
    %v2392 = vmul.f32 %v2381, %v2389
    %v2393 = vmul.f32 %v2382, %v2389
    %v2394 = vmul.f32 %v2383, %v2389
    %v2395 = vld [vmem:[%s16] sm:$0x1]
    %v2397 = vlaneseq
    %v2398 = vshrl.u32 %v2397, 7
    %v2399 = vsub.s32 0, %v2398
    %v2400 = vrot.slane %v2395, %v2399
    %v2402 = vadd.f32 %v2391, %v2400
    %v2403 = vadd.f32 %v2392, %v2400
    %v2404 = vadd.f32 %v2393, %v2400
    %v2405 = vadd.f32 %v2394, %v2400
    %v2406 = vadd.f32 %v2402, %v1525
    %v2407 = vadd.f32 %v2403, %v1526
    %v2408 = vadd.f32 %v2404, %v1527
    %v2409 = vadd.f32 %v2405, %v1528
    %v2410 = vmax.f32 %v2406, 0.0
    %v2411 = vmax.f32 %v2407, 0.0
    %v2412 = vmax.f32 %v2408, 0.0
    %v2413 = vmax.f32 %v2409, 0.0
    %v2414 = vsel %vm96, %v2410, 0.0
    %v2415 = vsel %vm96, %v2411, 0.0
    %v2416 = vadd.f32 %v2414, %v2415
    %v2417 = vsel %vm96, %v2412, 0.0
    %v2418 = vadd.f32 %v2416, %v2417
    %v2419 = vsel %vm96, %v2413, 0.0
    %v2420 = vadd.f32 %v2418, %v2419
    %v2421 = vrot.slane %v2420, 4
    %v2422 = vadd.f32 %v2420, %v2421
    %v2423 = vrot.slane %v2422, 2
    %v2424 = vadd.f32 %v2422, %v2423
    %v2425 = vrot.slane %v2424, 1
    %v2426 = vadd.f32 %v2424, %v2425
    %v2427 = vmul.f32 %v2410, %v2410
    %v2428 = vmul.f32 %v2411, %v2411
    %v2429 = vmul.f32 %v2412, %v2412
    %v2430 = vmul.f32 %v2413, %v2413
    %v2431 = vsel %vm96, %v2427, 0.0
    %v2432 = vsel %vm96, %v2428, 0.0
    %v2433 = vadd.f32 %v2431, %v2432
    %v2434 = vsel %vm96, %v2429, 0.0
    %v2435 = vadd.f32 %v2433, %v2434
    %v2436 = vsel %vm96, %v2430, 0.0
    %v2437 = vadd.f32 %v2435, %v2436
    %v2438 = vrot.slane %v2437, 4
    %v2439 = vadd.f32 %v2437, %v2438
    %v2440 = vrot.slane %v2439, 2
    %v2441 = vadd.f32 %v2439, %v2440
    %v2442 = vrot.slane %v2441, 1
    %v2443 = vadd.f32 %v2441, %v2442
    %v2444 = vmul.f32 %v2426, 0.03125
    %v2445 = vmul.f32 %v2443, 0.03125
    %v2446 = vmul.f32 %v2444, %v2444
    %v2447 = vsub.f32 %v2445, %v2446
    %v2448 = vsub.f32 %v2410, %v2444
    %v2449 = vsub.f32 %v2411, %v2444
    %v2450 = vsub.f32 %v2412, %v2444
    %v2451 = vsub.f32 %v2413, %v2444
    %v2452 = vadd.f32 %v2447, 1e-05
    %v2453 = vrsqrt.pop %v2452
    %v2454 = vmul.f32 %v2448, %v2453
    %v2455 = vmul.f32 %v2449, %v2453
    %v2456 = vmul.f32 %v2450, %v2453
    %v2457 = vmul.f32 %v2451, %v2453
    %v2458 = vld [vmem:[%s17] sm:$0x1]
    %v2460 = vlaneseq
    %v2461 = vshrl.u32 %v2460, 7
    %v2462 = vsub.s32 0, %v2461
    %v2463 = vrot.slane %v2458, %v2462
    %v2465 = vmul.f32 %v2454, %v2463
    %v2466 = vmul.f32 %v2455, %v2463
    %v2467 = vmul.f32 %v2456, %v2463
    %v2468 = vmul.f32 %v2457, %v2463
    %v2469 = vld [vmem:[%s18] sm:$0x1]
    %v2471 = vlaneseq
    %v2472 = vshrl.u32 %v2471, 7
    %v2473 = vsub.s32 0, %v2472
    %v2474 = vrot.slane %v2469, %v2473
    %v2476 = vadd.f32 %v2465, %v2474
    %v2477 = vadd.f32 %v2466, %v2474
    %v2478 = vadd.f32 %v2467, %v2474
    %v2479 = vadd.f32 %v2468, %v2474
    %v2480 = vpack.c.bf16 %v2477, %v2476
    %v2481 = vpack.c.bf16 %v2479, %v2478
    %v2482 = vld [vmem:[%s19] sm:$0xf]
    %v2483 = vld [vmem:[%s19 + $0x4] sm:$0xf]
    %v2484 = vld [vmem:[%s19 + $0x8] sm:$0xf]
    %v2485 = vld [vmem:[%s19 + $0xc] sm:$0xf]
    %v2490 = vunpack.c.l.b16 %v2482
    %v2491 = vunpack.c.l.b16 %v2483
    %v2492 = vunpack.c.l.b16 %v2484
    %v2493 = vunpack.c.l.b16 %v2485
    %v2494 = vpack.c.b16 %v2491, %v2490
    %v2495 = vpack.c.b16 %v2493, %v2492
    %v2499 = vsel %vm96, %v2480, 0
    %v2502 = vsel %vm96, %v2481, 0
    %2504 = vmatprep.subr.bf16.mxu0 0
    %2505 = vmatpush1.bf16.msra.mxu0 0
    %2506 = vmatprep.subr.bf16.mxu0 0
    %2507 = vmatpush1.bf16.msra.mxu0 0
    %2508 = vmatprep.subr.bf16.mxu0 0
    %2509 = vmatpush1.bf16.msra.mxu0 0
    %2510 = vmatprep.subr.bf16.mxu0 0
    %2511 = vmatpush1.bf16.msra.mxu0 0
    %2512 = vmatprep.subr.bf16.mxu0 0
    %2513 = vmatpush1.bf16.msra.mxu0 0
    %2514 = vmatprep.subr.bf16.mxu0 0
    %2515 = vmatpush1.bf16.msra.mxu0 0
    %2516 = vmatprep.subr.bf16.mxu0 0
    %2517 = vmatpush1.bf16.msra.mxu0 %v2495
    %2518 = vmatprep.subr.bf16.mxu0 0
    %2519 = vmatpush1.bf16.msra.mxu0 %v2494
    %2520 = vmatprep.subr.bf16.mxu0 0
    %2521 = vmatpush2.bf16.msra.mxu0 0
    %2522 = vmatprep.subr.bf16.mxu0 0
    %2523 = vmatpush2.bf16.msra.mxu0 0
    %2524 = vmatprep.subr.bf16.mxu0 0
    %2525 = vmatpush2.bf16.msra.mxu0 0
    %2526 = vmatprep.subr.bf16.mxu0 0
    %2527 = vmatpush2.bf16.msra.mxu0 0
    %2528 = vmatprep.subr.bf16.mxu0 0
    %2529 = vmatpush2.bf16.msra.mxu0 0
    %2530 = vmatprep.subr.bf16.mxu0 0
    %2531 = vmatpush2.bf16.msra.mxu0 0
    %2532 = vmatprep.subr.bf16.mxu0 0
    %2533 = vmatpush2.bf16.msra.mxu0 0
    %2534 = vmatprep.subr.bf16.mxu0 0
    %2535 = vmatpush2.bf16.msra.mxu0 0
    %2536 = vmatprep.mubr.bf16.mxu0 0
    %2537 = vmatmul.mubr.bf16.gmra.mxu0 %v2499
    %v2538 = vpop.f32.mrf.mxu0
    %v2539 = vadd.f32 0.0, %v2538
    %v2540 = vpop.f32.mrf.mxu0
    %v2541 = vpop.f32.mrf.mxu0
    %v2542 = vadd.f32 0.0, %v2541
    %v2543 = vpop.f32.mrf.mxu0
    %2544 = vmatprep.mubr.bf16.mxu0 0
    %2545 = vmatmul.mubr.bf16.gmra.mxu0 %v2502
    %v2546 = vpop.f32.mrf.mxu0
    %v2547 = vadd.f32 0.0, %v2546
    %v2548 = vpop.f32.mrf.mxu0
    %v2549 = vpop.f32.mrf.mxu0
    %v2550 = vadd.f32 0.0, %v2549
    %v2551 = vpop.f32.mrf.mxu0
    %2552 = vdwg.mxu0
    %vm2553 = vcmask 64512
    %v2554 = vsel %vm2553, %v2539, 0.0
    %v2555 = vsel %vm2553, %v2542, 0.0
    %v2556 = vadd.f32 %v2554, %v2555
    %v2557 = vsel %vm2553, %v2547, 0.0
    %v2558 = vadd.f32 %v2556, %v2557
    %v2559 = vsel %vm2553, %v2550, 0.0
    %v2560 = vadd.f32 %v2558, %v2559
    %v2561 = vrot.slane %v2560, 4
    %v2562 = vadd.f32 %v2560, %v2561
    %v2563 = vrot.slane %v2562, 2
    %v2564 = vadd.f32 %v2562, %v2563
    %v2565 = vrot.slane %v2564, 1
    %v2566 = vadd.f32 %v2564, %v2565
    %v2567 = vmul.f32 %v2539, %v2539
    %v2568 = vmul.f32 %v2542, %v2542
    %v2569 = vmul.f32 %v2547, %v2547
    %v2570 = vmul.f32 %v2550, %v2550
    %v2571 = vsel %vm2553, %v2567, 0.0
    %v2572 = vsel %vm2553, %v2568, 0.0
    %v2573 = vadd.f32 %v2571, %v2572
    %v2574 = vsel %vm2553, %v2569, 0.0
    %v2575 = vadd.f32 %v2573, %v2574
    %v2576 = vsel %vm2553, %v2570, 0.0
    %v2577 = vadd.f32 %v2575, %v2576
    %v2578 = vrot.slane %v2577, 4
    %v2579 = vadd.f32 %v2577, %v2578
    %v2580 = vrot.slane %v2579, 2
    %v2581 = vadd.f32 %v2579, %v2580
    %v2582 = vrot.slane %v2581, 1
    %v2583 = vadd.f32 %v2581, %v2582
    %v2584 = vmul.f32 %v2566, 0.03125
    %v2585 = vmul.f32 %v2583, 0.03125
    %v2586 = vmul.f32 %v2584, %v2584
    %v2587 = vsub.f32 %v2585, %v2586
    %v2588 = vsub.f32 %v2539, %v2584
    %v2589 = vsub.f32 %v2542, %v2584
    %v2590 = vsub.f32 %v2547, %v2584
    %v2591 = vsub.f32 %v2550, %v2584
    %v2592 = vadd.f32 %v2587, 1e-05
    %v2593 = vrsqrt.pop %v2592
    %v2594 = vmul.f32 %v2588, %v2593
    %v2595 = vmul.f32 %v2589, %v2593
    %v2596 = vmul.f32 %v2590, %v2593
    %v2597 = vmul.f32 %v2591, %v2593
    %v2598 = vld [vmem:[%s20] sm:$0x1]
    %v2600 = vlaneseq
    %v2601 = vshrl.u32 %v2600, 7
    %v2602 = vsub.s32 0, %v2601
    %v2603 = vrot.slane %v2598, %v2602
    %v2605 = vmul.f32 %v2594, %v2603
    %v2606 = vmul.f32 %v2595, %v2603
    %v2607 = vmul.f32 %v2596, %v2603
    %v2608 = vmul.f32 %v2597, %v2603
    %v2609 = vld [vmem:[%s21] sm:$0x1]
    %v2611 = vlaneseq
    %v2612 = vshrl.u32 %v2611, 7
    %v2613 = vsub.s32 0, %v2612
    %v2614 = vrot.slane %v2609, %v2613
    %v2616 = vadd.f32 %v2605, %v2614
    %v2617 = vadd.f32 %v2606, %v2614
    %v2618 = vadd.f32 %v2607, %v2614
    %v2619 = vadd.f32 %v2608, %v2614
    %2620 = vst.msk [vmem:[#allocation5] sm:$0xff] %vm2553, %v2616
    %2621 = vst.msk [vmem:[#allocation5 + $0x8] sm:$0xff] %vm2553, %v2617
    %2622 = vst.msk [vmem:[#allocation5 + $0x10] sm:$0xff] %vm2553, %v2618
    %2623 = vst.msk [vmem:[#allocation5 + $0x18] sm:$0xff] %vm2553, %v2619
    // Predicated region
    $region90: #{encoder2d_forward.1} parent=1 // pred_check
      _
    $region91: #{encoder2d_forward.1} parent=1 // pred_check_branch
      %2625 = sbr.rel (0) target = $region93
    $region92: #{encoder2d_forward.1} parent=1 // pred_region
      %s2627 = ssub.s32 512, 512
      %2628 = vsyncadd [#allocation6], %s2627
      %s2629 = sshll.u32 [#allocation5], 4
      %s2630 = int_to_ptr.vmem [resolvable:$true] %s2629
      %2635 = dma.vmem_to_hbm [thread:$0]  %s2630, 512, %s22, [#allocation6], 128, 128, 8
    $region93: #{encoder2d_forward.1} parent=1 // pred_fallthru
      _
    // Predicated region
    $region94: #{encoder2d_forward.1} parent=1 // pred_check
      _
    $region95: #{encoder2d_forward.1} parent=1 // pred_check_branch
      %2637 = sbr.rel (0) target = $region97
    $region96: #{encoder2d_forward.1} parent=1 // pred_region
      %2638 = dma.done [#allocation6], 512
    $region97: #{encoder2d_forward.1} parent=1 // pred_fallthru
      _
    %2639 = vsyncpa [#allocation6], 1

</llo_original>
